<compile_context>
chip_gen: v5e
topology: v5e:2x2
jax: 0.10.0
libtpu: 0.0.40
codegen_flags: <defaults>
</compile_context>

<pallas_src>
import numpy as np
import jax
import jax.numpy as jnp
from jax import lax
from jax.experimental import pallas as pl
from jax.experimental.pallas import tpu as pltpu

FEATURE_MAPS = [4, 8, 16, 32, 64]
POOL_AFTER = (1, 3, 4)   # maxpool follows conv layers 1, 3, 4 (0-based)
N_PAD = 128              # lane-dense output width (n_classes padded to one lane tile)


def make_schedule(H, W, feature_maps=FEATURE_MAPS):
    """Static shape schedule: [('conv', i, h, w, cin, cout) | ('pool', h, w, c)]."""
    assert len(feature_maps) == 5
    chans = [1] + list(feature_maps)
    ops = []
    h, w = H, W
    for i in range(5):
        assert h >= 3 and w >= 3, "input too small for the conv stack"
        ops.append(("conv", i, h, w, chans[i], chans[i + 1]))
        h, w = h - 2, w - 2
        if i in POOL_AFTER:
            ops.append(("pool", h, w, chans[i + 1]))
            h, w = h // 2, w // 2          # floor mode, like nn.MaxPool2d(2)
    return ops, (h, w, chans[-1])


# ---------------- host-side parameter repacking (one time) ----------------

def pack_params(params, H, W, feature_maps=FEATURE_MAPS):
    """Repack PyTorch-style params for the fused kernel's (h*TB, c*w) layout."""
    ops, (hf, wf, cf) = make_schedule(H, W, feature_maps)
    operands = []
    for op in ops:
        if op[0] == "conv":
            _, i, h, wi, cin, cout = op
            wo = wi - 2
            wnp = np.asarray(params["convs"][i][0], np.float32)      # (3,3,cin,cout)
            bnp = np.asarray(params["convs"][i][1], np.float32).reshape(-1)
            # banded matrix: band[kh, ci*wi + (t+kw), co*wo + t] = w[kh,kw,ci,co]
            band = np.zeros((3, cin * wi, cout * wo), np.float32)
            ci = np.arange(cin)[:, None]
            co = np.arange(cout)[None, :]
            for kh in range(3):
                for kw in range(3):
                    for t in range(wo):
                        band[kh, ci * wi + t + kw, co * wo + t] = wnp[kh, kw]
            operands.append(jnp.asarray(band))                        # (3, cin*wi, cout*wo)
            operands.append(jnp.asarray(np.repeat(bnp, wo)[None, :])) # (1, cout*wo)
        else:   # pool: 0/1 lane-selection matrix only (no sel_h matmul anymore)
            _, h, wi, c = op
            wp = wi // 2
            # Invariant relied on by the kernel's pool branch: the in-kernel W pair-max
            # produces column k = max(col k, col k+1); columns at channel boundaries
            # (k = ci*wi - 1) mix adjacent channels, but sel_w only ever selects even
            # in-channel offsets ci*wi + 2j <= ci*wi + wi - 2, so those columns are
            # never read.
            sel_w = np.zeros((c * wi - 1, c * wp), np.float32)
            rows = (np.arange(c)[:, None] * wi + 2 * np.arange(wp)[None, :]).ravel()
            cols = (np.arange(c)[:, None] * wp + np.arange(wp)[None, :]).ravel()
            sel_w[rows, cols] = 1.0
            operands.append(jnp.asarray(sel_w))
    # Head: fold the spatial mean (over hf x wf) into the Linear weight, pad to 128 lanes.
    w_out = np.asarray(params["w_out"], np.float32)                   # (cf, n_classes)
    b_out = np.asarray(params["b_out"], np.float32).reshape(1, -1)
    n_classes = w_out.shape[1]
    proj = np.zeros((cf * wf, cf), np.float32)
    proj[np.arange(cf * wf), np.repeat(np.arange(cf), wf)] = 1.0 / float(hf * wf)
    w_head = np.zeros((cf * wf, N_PAD), np.float32)
    w_head[:, :n_classes] = proj @ w_out
    b_head = np.zeros((1, N_PAD), np.float32)
    b_head[:, :n_classes] = b_out
    operands.append(jnp.asarray(w_head))                              # (cf*wf, 128)
    operands.append(jnp.asarray(b_head))                              # (1, 128)
    return operands


# ---------------- fused Pallas kernel ----------------

def make_cnn_forward(B, H, W, n_classes, feature_maps=FEATURE_MAPS, tb=32):
    """Build a jitted fused forward pass.

    tb = samples per grid step (batch tile), must be a multiple of 8.
    Per the perf review: >=16 on v5e (fills the 128-row MXU on the late convs),
    32-64 on v6e, 32-64 on v7x (keep B/tb >= 2 so both TensorCores get a grid
    step; v7x only has 64 MiB VMEM).  Peak VMEM here stays well under the 32 MiB
    scoped default even at tb=64.
    """
    assert tb % 8 == 0 and tb >= 8, "tb must be a positive multiple of 8"
    TB = tb
    ops, _ = make_schedule(H, W, feature_maps)
    nbt = (B + TB - 1) // TB           # number of batch tiles == grid steps
    B_pad = nbt * TB

    def kernel(*refs):
        x_ref, o_ref = refs[0], refs[-1]
        prefs = refs[1:-1]
        idx = 0
        # Activations: single 2-D f32 slab (h*TB, c*w);
        #   row  = image_row * TB + sample_in_tile
        #   lane = channel * w + column
        # Every transition below is a contiguous TB-row (8-aligned) sublane slice,
        # a full-width 2-D MXU matmul, or an elementwise op.
        x = x_ref[...] * (1.0 / 255.0)                 # x.unsqueeze(1).float() / 255
        for op in ops:
            if op[0] == "conv":                        # Conv2d(cin, cout, 3) + ReLU
                _, _, h, wi, cin, cout = op
                ho = h - 2
                assert x.shape == (h * TB, cin * wi)
                band, bias = prefs[idx], prefs[idx + 1]
                idx += 2
                # One (ho*TB, cin*wi) @ (cin*wi, cout*wo) matmul per kernel row kh,
                # accumulated immediately (single live accumulator).
                acc = jnp.dot(x[0:ho * TB], band[0],
                              preferred_element_type=jnp.float32)
                acc = acc + jnp.dot(x[TB:(ho + 1) * TB], band[1],
                                    preferred_element_type=jnp.float32)
                acc = acc + jnp.dot(x[2 * TB:(ho + 2) * TB], band[2],
                                    preferred_element_type=jnp.float32)
                x = jnp.maximum(acc + bias[...], 0.0)  # (ho*TB, cout*(wi-2))
            else:                                      # MaxPool2d(2), floor mode
                _, h, wi, c = op
                cw = c * wi
                hp = h // 2
                assert x.shape == (h * TB, cw)
                sel_w = prefs[idx]
                idx += 1
                # H direction: pairwise max of the (2i, 2i+1) row slabs — pure VPU
                # work, unrolled over the small static hp (12 / 4 / 1).
                slabs = [jnp.maximum(x[(2 * i) * TB:(2 * i + 1) * TB],
                                     x[(2 * i + 1) * TB:(2 * i + 2) * TB])
                         for i in range(hp)]
                xh = slabs[0] if hp == 1 else jnp.concatenate(slabs, axis=0)
                # W direction: lane pair-max, then ONE 0/1 selection matmul picking
                # columns ci*wi + 2j.  Cross-channel columns (lane ci*wi - 1) are
                # never selected by sel_w (see pack_params).
                xw = jnp.maximum(xh[:, :cw - 1], xh[:, 1:])          # (hp*TB, cw-1)
                x = jnp.dot(xw, sel_w[...],
                            preferred_element_type=jnp.float32)      # (hp*TB, c*(wi//2))
        # Head: spatial mean folded into the lane-padded Linear weight.
        w_head, b_head = prefs[idx], prefs[idx + 1]
        hf = x.shape[0] // TB
        feat = x[0:TB]
        for i in range(1, hf):                         # per-sample sum over rows
            feat = feat + x[i * TB:(i + 1) * TB]
        o_ref[...] = (jnp.dot(feat, w_head[...], preferred_element_type=jnp.float32)
                      + b_head[...])                   # (TB, 128)

    def forward(x_img, operands):
        x = x_img.astype(jnp.float32)
        if B_pad != B:
            x = jnp.pad(x, ((0, B_pad - B), (0, 0), (0, 0)))
        # Cheap XLA-side repack into the kernel's h-major layout: one contiguous
        # (H*TB, W) block per batch tile, row = image_row*TB + sample.
        x2d = (x.reshape(nbt, TB, H, W)
                .transpose(0, 2, 1, 3)
                .reshape(nbt * H * TB, W))
        in_specs = [pl.BlockSpec((H * TB, W), lambda g: (g, 0))]
        for arr in operands:                           # constant, revisited weight blocks
            in_specs.append(
                pl.BlockSpec(arr.shape, lambda g, nd=arr.ndim: (0,) * nd))
        out = pl.pallas_call(
            kernel,
            grid=(nbt,),
            in_specs=in_specs,
            out_specs=pl.BlockSpec((TB, N_PAD), lambda g: (g, 0)),
            out_shape=jax.ShapeDtypeStruct((B_pad, N_PAD), jnp.float32),
            compiler_params=pltpu.CompilerParams(
                dimension_semantics=("parallel",),
                vmem_limit_bytes=32 * 1024 * 1024),
        )(x2d, *operands)
        return out[:B, :n_classes]

    return jax.jit(forward)


# ---------------- parameters & pure-JAX reference ----------------

def init_params(key, n_classes, feature_maps=FEATURE_MAPS):
    chans = [1] + list(feature_maps)
    params = {"convs": []}
    for i in range(5):
        cin, cout = chans[i], chans[i + 1]
        key, kw_, kb_ = jax.random.split(key, 3)
        scale = 1.0 / np.sqrt(9.0 * cin)
        w = jax.random.uniform(kw_, (3, 3, cin, cout), jnp.float32, -scale, scale)
        b = jax.random.uniform(kb_, (cout,), jnp.float32, -scale, scale)
        params["convs"].append((w, b))
    key, kw_, kb_ = jax.random.split(key, 3)
    scale = 1.0 / np.sqrt(float(feature_maps[-1]))
    params["w_out"] = jax.random.uniform(kw_, (feature_maps[-1], n_classes),
                                         jnp.float32, -scale, scale)
    params["b_out"] = jax.random.uniform(kb_, (n_classes,),
                                         jnp.float32, -scale, scale)
    return params


def ref_forward(x_img, params):
    """Pure-JAX reference (lax.conv / reduce_window) used only for validation."""
    x = x_img.astype(jnp.float32)[..., None] / 255.0
    for i, (w, b) in enumerate(params["convs"]):
        x = lax.conv_general_dilated(
            x, w, window_strides=(1, 1), padding="VALID",
            dimension_numbers=("NHWC", "HWIO", "NHWC"))
        x = jnp.maximum(x + b.reshape(1, 1, 1, -1), 0.0)
        if i in POOL_AFTER:
            x = lax.reduce_window(x, -jnp.inf, lax.max,
                                  (1, 2, 2, 1), (1, 2, 2, 1), "VALID")
    feat = x.mean(axis=(1, 2))
    return feat @ params["w_out"] + params["b_out"]


if __name__ == "__main__":
    key = jax.random.PRNGKey(0)
    k_params, k_x = jax.random.split(key)
    n_classes = 10
    B, H, W = 20, 28, 28          # 28x28 is the minimum spatial size for this conv stack
    params = init_params(k_params, n_classes)

    # MNIST-like raw pixels in [0, 255]
    x_img = jax.random.randint(k_x, (B, H, W), 0, 256, dtype=jnp.int32)

    operands = pack_params(params, H, W)
    # TB=16 for the small demo batch (B=20 -> padded to 32, 2 grid steps, exercises
    # both batch padding and multi-step grid).  Use tb=32..64 for real batches.
    forward = make_cnn_forward(B, H, W, n_classes, tb=16)

    out = jax.block_until_ready(forward(x_img, operands))

    ref = ref_forward(x_img, params)
    assert out.shape == (B, n_classes), out.shape
    err = float(jnp.max(jnp.abs(out - ref)))
    assert jnp.allclose(out, ref, atol=1e-3, rtol=1e-3), f"max |err| = {err}"
    print("KERNEL_OK")
</pallas_src>

<mosaic_0001>
module attributes {stable_mosaic.version = 11 : i64} {
  func.func @kernel(%arg0: i32, %arg1: memref<448x28xf32, #tpu.memory_space<vmem>>, %arg2: memref<3x28x104xf32, #tpu.memory_space<vmem>>, %arg3: memref<1x104xf32, #tpu.memory_space<vmem>>, %arg4: memref<3x104x192xf32, #tpu.memory_space<vmem>>, %arg5: memref<1x192xf32, #tpu.memory_space<vmem>>, %arg6: memref<191x96xf32, #tpu.memory_space<vmem>>, %arg7: memref<3x96x160xf32, #tpu.memory_space<vmem>>, %arg8: memref<1x160xf32, #tpu.memory_space<vmem>>, %arg9: memref<3x160x256xf32, #tpu.memory_space<vmem>>, %arg10: memref<1x256xf32, #tpu.memory_space<vmem>>, %arg11: memref<255x128xf32, #tpu.memory_space<vmem>>, %arg12: memref<3x128x128xf32, #tpu.memory_space<vmem>>, %arg13: memref<1x128xf32, #tpu.memory_space<vmem>>, %arg14: memref<127x64xf32, #tpu.memory_space<vmem>>, %arg15: memref<64x128xf32, #tpu.memory_space<vmem>>, %arg16: memref<1x128xf32, #tpu.memory_space<vmem>>, %arg17: memref<16x128xf32, #tpu.memory_space<vmem>>) attributes {dimension_semantics = [#tpu.dimension_semantics<parallel>], iteration_bounds = array<i64: 2>, scalar_prefetch = 0 : i64, scratch_operands = 0 : i64, tpu.core_type = #tpu.core_type<tc>, window_params = [{transform_indices = @transform_0, window_bounds = array<i64: 448, 28>}, {pipeline_mode = #tpu.pipeline_mode<synchronous>, transform_indices = @transform_1, window_bounds = array<i64: 3, 28, 104>}, {pipeline_mode = #tpu.pipeline_mode<synchronous>, transform_indices = @transform_2, window_bounds = array<i64: 1, 104>}, {pipeline_mode = #tpu.pipeline_mode<synchronous>, transform_indices = @transform_3, window_bounds = array<i64: 3, 104, 192>}, {pipeline_mode = #tpu.pipeline_mode<synchronous>, transform_indices = @transform_4, window_bounds = array<i64: 1, 192>}, {pipeline_mode = #tpu.pipeline_mode<synchronous>, transform_indices = @transform_5, window_bounds = array<i64: 191, 96>}, {pipeline_mode = #tpu.pipeline_mode<synchronous>, transform_indices = @transform_6, window_bounds = array<i64: 3, 96, 160>}, {pipeline_mode = #tpu.pipeline_mode<synchronous>, transform_indices = @transform_7, window_bounds = array<i64: 1, 160>}, {pipeline_mode = #tpu.pipeline_mode<synchronous>, transform_indices = @transform_8, window_bounds = array<i64: 3, 160, 256>}, {pipeline_mode = #tpu.pipeline_mode<synchronous>, transform_indices = @transform_9, window_bounds = array<i64: 1, 256>}, {pipeline_mode = #tpu.pipeline_mode<synchronous>, transform_indices = @transform_10, window_bounds = array<i64: 255, 128>}, {pipeline_mode = #tpu.pipeline_mode<synchronous>, transform_indices = @transform_11, window_bounds = array<i64: 3, 128, 128>}, {pipeline_mode = #tpu.pipeline_mode<synchronous>, transform_indices = @transform_12, window_bounds = array<i64: 1, 128>}, {pipeline_mode = #tpu.pipeline_mode<synchronous>, transform_indices = @transform_13, window_bounds = array<i64: 127, 64>}, {pipeline_mode = #tpu.pipeline_mode<synchronous>, transform_indices = @transform_14, window_bounds = array<i64: 64, 128>}, {pipeline_mode = #tpu.pipeline_mode<synchronous>, transform_indices = @transform_15, window_bounds = array<i64: 1, 128>}, {transform_indices = @transform_16, window_bounds = array<i64: 16, 128>}]} {
    %c0 = arith.constant 0 : index
    %c0_0 = arith.constant 0 : index
    %0 = vector.load %arg1[%c0, %c0_0] : memref<448x28xf32, #tpu.memory_space<vmem>>, vector<448x28xf32>
    %cst = arith.constant 0.00392156886 : f32
    %1 = vector.broadcast %cst : f32 to vector<448x28xf32>
    %2 = arith.mulf %0, %1 : vector<448x28xf32>
    %3 = vector.extract_strided_slice %2 {offsets = [0, 0], sizes = [416, 28], strides = [1, 1]} : vector<448x28xf32> to vector<416x28xf32>
    %c0_1 = arith.constant 0 : index
    %c0_2 = arith.constant 0 : index
    %c0_3 = arith.constant 0 : index
    %4 = vector.load %arg2[%c0_1, %c0_2, %c0_3] : memref<3x28x104xf32, #tpu.memory_space<vmem>>, vector<1x28x104xf32>
    %5 = vector.shape_cast %4 : vector<1x28x104xf32> to vector<28x104xf32>
    %cst_4 = arith.constant dense<0.000000e+00> : vector<416x104xf32>
    %6 = tpu.matmul %3, %5, %cst_4 {dimension_numbers = #tpu.dot_dimension_numbers<[1], [0], [0], [1], [0, 0, 1, 1], [], []>} : vector<416x28xf32>, vector<28x104xf32>, vector<416x104xf32> -> vector<416x104xf32>
    %7 = vector.extract_strided_slice %2 {offsets = [16, 0], sizes = [416, 28], strides = [1, 1]} : vector<448x28xf32> to vector<416x28xf32>
    %c1 = arith.constant 1 : index
    %c0_5 = arith.constant 0 : index
    %c0_6 = arith.constant 0 : index
    %8 = vector.load %arg2[%c1, %c0_5, %c0_6] : memref<3x28x104xf32, #tpu.memory_space<vmem>>, vector<1x28x104xf32>
    %9 = vector.shape_cast %8 : vector<1x28x104xf32> to vector<28x104xf32>
    %cst_7 = arith.constant dense<0.000000e+00> : vector<416x104xf32>
    %10 = tpu.matmul %7, %9, %cst_7 {dimension_numbers = #tpu.dot_dimension_numbers<[1], [0], [0], [1], [0, 0, 1, 1], [], []>} : vector<416x28xf32>, vector<28x104xf32>, vector<416x104xf32> -> vector<416x104xf32>
    %11 = arith.addf %6, %10 : vector<416x104xf32>
    %12 = vector.extract_strided_slice %2 {offsets = [32, 0], sizes = [416, 28], strides = [1, 1]} : vector<448x28xf32> to vector<416x28xf32>
    %c2 = arith.constant 2 : index
    %c0_8 = arith.constant 0 : index
    %c0_9 = arith.constant 0 : index
    %13 = vector.load %arg2[%c2, %c0_8, %c0_9] : memref<3x28x104xf32, #tpu.memory_space<vmem>>, vector<1x28x104xf32>
    %14 = vector.shape_cast %13 : vector<1x28x104xf32> to vector<28x104xf32>
    %cst_10 = arith.constant dense<0.000000e+00> : vector<416x104xf32>
    %15 = tpu.matmul %12, %14, %cst_10 {dimension_numbers = #tpu.dot_dimension_numbers<[1], [0], [0], [1], [0, 0, 1, 1], [], []>} : vector<416x28xf32>, vector<28x104xf32>, vector<416x104xf32> -> vector<416x104xf32>
    %16 = arith.addf %11, %15 : vector<416x104xf32>
    %c0_11 = arith.constant 0 : index
    %c0_12 = arith.constant 0 : index
    %17 = vector.load %arg3[%c0_11, %c0_12] : memref<1x104xf32, #tpu.memory_space<vmem>>, vector<1x104xf32>
    %18 = vector.broadcast %17 : vector<1x104xf32> to vector<416x104xf32>
    %19 = arith.addf %16, %18 : vector<416x104xf32>
    %cst_13 = arith.constant 0.000000e+00 : f32
    %20 = vector.broadcast %cst_13 : f32 to vector<416x104xf32>
    %21 = arith.maximumf %19, %20 : vector<416x104xf32>
    %22 = vector.extract_strided_slice %21 {offsets = [0, 0], sizes = [384, 104], strides = [1, 1]} : vector<416x104xf32> to vector<384x104xf32>
    %c0_14 = arith.constant 0 : index
    %c0_15 = arith.constant 0 : index
    %c0_16 = arith.constant 0 : index
    %23 = vector.load %arg4[%c0_14, %c0_15, %c0_16] : memref<3x104x192xf32, #tpu.memory_space<vmem>>, vector<1x104x192xf32>
    %24 = vector.shape_cast %23 : vector<1x104x192xf32> to vector<104x192xf32>
    %cst_17 = arith.constant dense<0.000000e+00> : vector<384x192xf32>
    %25 = tpu.matmul %22, %24, %cst_17 {dimension_numbers = #tpu.dot_dimension_numbers<[1], [0], [0], [1], [0, 0, 1, 1], [], []>} : vector<384x104xf32>, vector<104x192xf32>, vector<384x192xf32> -> vector<384x192xf32>
    %26 = vector.extract_strided_slice %21 {offsets = [16, 0], sizes = [384, 104], strides = [1, 1]} : vector<416x104xf32> to vector<384x104xf32>
    %c1_18 = arith.constant 1 : index
    %c0_19 = arith.constant 0 : index
    %c0_20 = arith.constant 0 : index
    %27 = vector.load %arg4[%c1_18, %c0_19, %c0_20] : memref<3x104x192xf32, #tpu.memory_space<vmem>>, vector<1x104x192xf32>
    %28 = vector.shape_cast %27 : vector<1x104x192xf32> to vector<104x192xf32>
    %cst_21 = arith.constant dense<0.000000e+00> : vector<384x192xf32>
    %29 = tpu.matmul %26, %28, %cst_21 {dimension_numbers = #tpu.dot_dimension_numbers<[1], [0], [0], [1], [0, 0, 1, 1], [], []>} : vector<384x104xf32>, vector<104x192xf32>, vector<384x192xf32> -> vector<384x192xf32>
    %30 = arith.addf %25, %29 : vector<384x192xf32>
    %31 = vector.extract_strided_slice %21 {offsets = [32, 0], sizes = [384, 104], strides = [1, 1]} : vector<416x104xf32> to vector<384x104xf32>
    %c2_22 = arith.constant 2 : index
    %c0_23 = arith.constant 0 : index
    %c0_24 = arith.constant 0 : index
    %32 = vector.load %arg4[%c2_22, %c0_23, %c0_24] : memref<3x104x192xf32, #tpu.memory_space<vmem>>, vector<1x104x192xf32>
    %33 = vector.shape_cast %32 : vector<1x104x192xf32> to vector<104x192xf32>
    %cst_25 = arith.constant dense<0.000000e+00> : vector<384x192xf32>
    %34 = tpu.matmul %31, %33, %cst_25 {dimension_numbers = #tpu.dot_dimension_numbers<[1], [0], [0], [1], [0, 0, 1, 1], [], []>} : vector<384x104xf32>, vector<104x192xf32>, vector<384x192xf32> -> vector<384x192xf32>
    %35 = arith.addf %30, %34 : vector<384x192xf32>
    %c0_26 = arith.constant 0 : index
    %c0_27 = arith.constant 0 : index
    %36 = vector.load %arg5[%c0_26, %c0_27] : memref<1x192xf32, #tpu.memory_space<vmem>>, vector<1x192xf32>
    %37 = vector.broadcast %36 : vector<1x192xf32> to vector<384x192xf32>
    %38 = arith.addf %35, %37 : vector<384x192xf32>
    %cst_28 = arith.constant 0.000000e+00 : f32
    %39 = vector.broadcast %cst_28 : f32 to vector<384x192xf32>
    %40 = arith.maximumf %38, %39 : vector<384x192xf32>
    %41 = vector.extract_strided_slice %40 {offsets = [0, 0], sizes = [16, 192], strides = [1, 1]} : vector<384x192xf32> to vector<16x192xf32>
    %42 = vector.extract_strided_slice %40 {offsets = [16, 0], sizes = [16, 192], strides = [1, 1]} : vector<384x192xf32> to vector<16x192xf32>
    %43 = arith.maximumf %41, %42 : vector<16x192xf32>
    %44 = vector.extract_strided_slice %40 {offsets = [32, 0], sizes = [16, 192], strides = [1, 1]} : vector<384x192xf32> to vector<16x192xf32>
    %45 = vector.extract_strided_slice %40 {offsets = [48, 0], sizes = [16, 192], strides = [1, 1]} : vector<384x192xf32> to vector<16x192xf32>
    %46 = arith.maximumf %44, %45 : vector<16x192xf32>
    %47 = vector.extract_strided_slice %40 {offsets = [64, 0], sizes = [16, 192], strides = [1, 1]} : vector<384x192xf32> to vector<16x192xf32>
    %48 = vector.extract_strided_slice %40 {offsets = [80, 0], sizes = [16, 192], strides = [1, 1]} : vector<384x192xf32> to vector<16x192xf32>
    %49 = arith.maximumf %47, %48 : vector<16x192xf32>
    %50 = vector.extract_strided_slice %40 {offsets = [96, 0], sizes = [16, 192], strides = [1, 1]} : vector<384x192xf32> to vector<16x192xf32>
    %51 = vector.extract_strided_slice %40 {offsets = [112, 0], sizes = [16, 192], strides = [1, 1]} : vector<384x192xf32> to vector<16x192xf32>
    %52 = arith.maximumf %50, %51 : vector<16x192xf32>
    %53 = vector.extract_strided_slice %40 {offsets = [128, 0], sizes = [16, 192], strides = [1, 1]} : vector<384x192xf32> to vector<16x192xf32>
    %54 = vector.extract_strided_slice %40 {offsets = [144, 0], sizes = [16, 192], strides = [1, 1]} : vector<384x192xf32> to vector<16x192xf32>
    %55 = arith.maximumf %53, %54 : vector<16x192xf32>
    %56 = vector.extract_strided_slice %40 {offsets = [160, 0], sizes = [16, 192], strides = [1, 1]} : vector<384x192xf32> to vector<16x192xf32>
    %57 = vector.extract_strided_slice %40 {offsets = [176, 0], sizes = [16, 192], strides = [1, 1]} : vector<384x192xf32> to vector<16x192xf32>
    %58 = arith.maximumf %56, %57 : vector<16x192xf32>
    %59 = vector.extract_strided_slice %40 {offsets = [192, 0], sizes = [16, 192], strides = [1, 1]} : vector<384x192xf32> to vector<16x192xf32>
    %60 = vector.extract_strided_slice %40 {offsets = [208, 0], sizes = [16, 192], strides = [1, 1]} : vector<384x192xf32> to vector<16x192xf32>
    %61 = arith.maximumf %59, %60 : vector<16x192xf32>
    %62 = vector.extract_strided_slice %40 {offsets = [224, 0], sizes = [16, 192], strides = [1, 1]} : vector<384x192xf32> to vector<16x192xf32>
    %63 = vector.extract_strided_slice %40 {offsets = [240, 0], sizes = [16, 192], strides = [1, 1]} : vector<384x192xf32> to vector<16x192xf32>
    %64 = arith.maximumf %62, %63 : vector<16x192xf32>
    %65 = vector.extract_strided_slice %40 {offsets = [256, 0], sizes = [16, 192], strides = [1, 1]} : vector<384x192xf32> to vector<16x192xf32>
    %66 = vector.extract_strided_slice %40 {offsets = [272, 0], sizes = [16, 192], strides = [1, 1]} : vector<384x192xf32> to vector<16x192xf32>
    %67 = arith.maximumf %65, %66 : vector<16x192xf32>
    %68 = vector.extract_strided_slice %40 {offsets = [288, 0], sizes = [16, 192], strides = [1, 1]} : vector<384x192xf32> to vector<16x192xf32>
    %69 = vector.extract_strided_slice %40 {offsets = [304, 0], sizes = [16, 192], strides = [1, 1]} : vector<384x192xf32> to vector<16x192xf32>
    %70 = arith.maximumf %68, %69 : vector<16x192xf32>
    %71 = vector.extract_strided_slice %40 {offsets = [320, 0], sizes = [16, 192], strides = [1, 1]} : vector<384x192xf32> to vector<16x192xf32>
    %72 = vector.extract_strided_slice %40 {offsets = [336, 0], sizes = [16, 192], strides = [1, 1]} : vector<384x192xf32> to vector<16x192xf32>
    %73 = arith.maximumf %71, %72 : vector<16x192xf32>
    %74 = vector.extract_strided_slice %40 {offsets = [352, 0], sizes = [16, 192], strides = [1, 1]} : vector<384x192xf32> to vector<16x192xf32>
    %75 = vector.extract_strided_slice %40 {offsets = [368, 0], sizes = [16, 192], strides = [1, 1]} : vector<384x192xf32> to vector<16x192xf32>
    %76 = arith.maximumf %74, %75 : vector<16x192xf32>
    %77 = tpu.concatenate %43, %46, %49, %52, %55, %58, %61, %64, %67, %70, %73, %76 in 0 : vector<16x192xf32>, vector<16x192xf32>, vector<16x192xf32>, vector<16x192xf32>, vector<16x192xf32>, vector<16x192xf32>, vector<16x192xf32>, vector<16x192xf32>, vector<16x192xf32>, vector<16x192xf32>, vector<16x192xf32>, vector<16x192xf32> -> vector<192x192xf32>
    %78 = vector.extract_strided_slice %77 {offsets = [0, 0], sizes = [192, 191], strides = [1, 1]} : vector<192x192xf32> to vector<192x191xf32>
    %79 = vector.extract_strided_slice %77 {offsets = [0, 1], sizes = [192, 191], strides = [1, 1]} : vector<192x192xf32> to vector<192x191xf32>
    %80 = arith.maximumf %78, %79 : vector<192x191xf32>
    %c0_29 = arith.constant 0 : index
    %c0_30 = arith.constant 0 : index
    %81 = vector.load %arg6[%c0_29, %c0_30] : memref<191x96xf32, #tpu.memory_space<vmem>>, vector<191x96xf32>
    %cst_31 = arith.constant dense<0.000000e+00> : vector<192x96xf32>
    %82 = tpu.matmul %80, %81, %cst_31 {dimension_numbers = #tpu.dot_dimension_numbers<[1], [0], [0], [1], [0, 0, 1, 1], [], []>} : vector<192x191xf32>, vector<191x96xf32>, vector<192x96xf32> -> vector<192x96xf32>
    %83 = vector.extract_strided_slice %82 {offsets = [0, 0], sizes = [160, 96], strides = [1, 1]} : vector<192x96xf32> to vector<160x96xf32>
    %c0_32 = arith.constant 0 : index
    %c0_33 = arith.constant 0 : index
    %c0_34 = arith.constant 0 : index
    %84 = vector.load %arg7[%c0_32, %c0_33, %c0_34] : memref<3x96x160xf32, #tpu.memory_space<vmem>>, vector<1x96x160xf32>
    %85 = vector.shape_cast %84 : vector<1x96x160xf32> to vector<96x160xf32>
    %cst_35 = arith.constant dense<0.000000e+00> : vector<160x160xf32>
    %86 = tpu.matmul %83, %85, %cst_35 {dimension_numbers = #tpu.dot_dimension_numbers<[1], [0], [0], [1], [0, 0, 1, 1], [], []>} : vector<160x96xf32>, vector<96x160xf32>, vector<160x160xf32> -> vector<160x160xf32>
    %87 = vector.extract_strided_slice %82 {offsets = [16, 0], sizes = [160, 96], strides = [1, 1]} : vector<192x96xf32> to vector<160x96xf32>
    %c1_36 = arith.constant 1 : index
    %c0_37 = arith.constant 0 : index
    %c0_38 = arith.constant 0 : index
    %88 = vector.load %arg7[%c1_36, %c0_37, %c0_38] : memref<3x96x160xf32, #tpu.memory_space<vmem>>, vector<1x96x160xf32>
    %89 = vector.shape_cast %88 : vector<1x96x160xf32> to vector<96x160xf32>
    %cst_39 = arith.constant dense<0.000000e+00> : vector<160x160xf32>
    %90 = tpu.matmul %87, %89, %cst_39 {dimension_numbers = #tpu.dot_dimension_numbers<[1], [0], [0], [1], [0, 0, 1, 1], [], []>} : vector<160x96xf32>, vector<96x160xf32>, vector<160x160xf32> -> vector<160x160xf32>
    %91 = arith.addf %86, %90 : vector<160x160xf32>
    %92 = vector.extract_strided_slice %82 {offsets = [32, 0], sizes = [160, 96], strides = [1, 1]} : vector<192x96xf32> to vector<160x96xf32>
    %c2_40 = arith.constant 2 : index
    %c0_41 = arith.constant 0 : index
    %c0_42 = arith.constant 0 : index
    %93 = vector.load %arg7[%c2_40, %c0_41, %c0_42] : memref<3x96x160xf32, #tpu.memory_space<vmem>>, vector<1x96x160xf32>
    %94 = vector.shape_cast %93 : vector<1x96x160xf32> to vector<96x160xf32>
    %cst_43 = arith.constant dense<0.000000e+00> : vector<160x160xf32>
    %95 = tpu.matmul %92, %94, %cst_43 {dimension_numbers = #tpu.dot_dimension_numbers<[1], [0], [0], [1], [0, 0, 1, 1], [], []>} : vector<160x96xf32>, vector<96x160xf32>, vector<160x160xf32> -> vector<160x160xf32>
    %96 = arith.addf %91, %95 : vector<160x160xf32>
    %c0_44 = arith.constant 0 : index
    %c0_45 = arith.constant 0 : index
    %97 = vector.load %arg8[%c0_44, %c0_45] : memref<1x160xf32, #tpu.memory_space<vmem>>, vector<1x160xf32>
    %98 = vector.broadcast %97 : vector<1x160xf32> to vector<160x160xf32>
    %99 = arith.addf %96, %98 : vector<160x160xf32>
    %cst_46 = arith.constant 0.000000e+00 : f32
    %100 = vector.broadcast %cst_46 : f32 to vector<160x160xf32>
    %101 = arith.maximumf %99, %100 : vector<160x160xf32>
    %102 = vector.extract_strided_slice %101 {offsets = [0, 0], sizes = [128, 160], strides = [1, 1]} : vector<160x160xf32> to vector<128x160xf32>
    %c0_47 = arith.constant 0 : index
    %c0_48 = arith.constant 0 : index
    %c0_49 = arith.constant 0 : index
    %103 = vector.load %arg9[%c0_47, %c0_48, %c0_49] : memref<3x160x256xf32, #tpu.memory_space<vmem>>, vector<1x160x256xf32>
    %104 = vector.shape_cast %103 : vector<1x160x256xf32> to vector<160x256xf32>
    %cst_50 = arith.constant dense<0.000000e+00> : vector<128x256xf32>
    %105 = tpu.matmul %102, %104, %cst_50 {dimension_numbers = #tpu.dot_dimension_numbers<[1], [0], [0], [1], [0, 0, 1, 1], [], []>} : vector<128x160xf32>, vector<160x256xf32>, vector<128x256xf32> -> vector<128x256xf32>
    %106 = vector.extract_strided_slice %101 {offsets = [16, 0], sizes = [128, 160], strides = [1, 1]} : vector<160x160xf32> to vector<128x160xf32>
    %c1_51 = arith.constant 1 : index
    %c0_52 = arith.constant 0 : index
    %c0_53 = arith.constant 0 : index
    %107 = vector.load %arg9[%c1_51, %c0_52, %c0_53] : memref<3x160x256xf32, #tpu.memory_space<vmem>>, vector<1x160x256xf32>
    %108 = vector.shape_cast %107 : vector<1x160x256xf32> to vector<160x256xf32>
    %cst_54 = arith.constant dense<0.000000e+00> : vector<128x256xf32>
    %109 = tpu.matmul %106, %108, %cst_54 {dimension_numbers = #tpu.dot_dimension_numbers<[1], [0], [0], [1], [0, 0, 1, 1], [], []>} : vector<128x160xf32>, vector<160x256xf32>, vector<128x256xf32> -> vector<128x256xf32>
    %110 = arith.addf %105, %109 : vector<128x256xf32>
    %111 = vector.extract_strided_slice %101 {offsets = [32, 0], sizes = [128, 160], strides = [1, 1]} : vector<160x160xf32> to vector<128x160xf32>
    %c2_55 = arith.constant 2 : index
    %c0_56 = arith.constant 0 : index
    %c0_57 = arith.constant 0 : index
    %112 = vector.load %arg9[%c2_55, %c0_56, %c0_57] : memref<3x160x256xf32, #tpu.memory_space<vmem>>, vector<1x160x256xf32>
    %113 = vector.shape_cast %112 : vector<1x160x256xf32> to vector<160x256xf32>
    %cst_58 = arith.constant dense<0.000000e+00> : vector<128x256xf32>
    %114 = tpu.matmul %111, %113, %cst_58 {dimension_numbers = #tpu.dot_dimension_numbers<[1], [0], [0], [1], [0, 0, 1, 1], [], []>} : vector<128x160xf32>, vector<160x256xf32>, vector<128x256xf32> -> vector<128x256xf32>
    %115 = arith.addf %110, %114 : vector<128x256xf32>
    %c0_59 = arith.constant 0 : index
    %c0_60 = arith.constant 0 : index
    %116 = vector.load %arg10[%c0_59, %c0_60] : memref<1x256xf32, #tpu.memory_space<vmem>>, vector<1x256xf32>
    %117 = vector.broadcast %116 : vector<1x256xf32> to vector<128x256xf32>
    %118 = arith.addf %115, %117 : vector<128x256xf32>
    %cst_61 = arith.constant 0.000000e+00 : f32
    %119 = vector.broadcast %cst_61 : f32 to vector<128x256xf32>
    %120 = arith.maximumf %118, %119 : vector<128x256xf32>
    %121 = vector.extract_strided_slice %120 {offsets = [0, 0], sizes = [16, 256], strides = [1, 1]} : vector<128x256xf32> to vector<16x256xf32>
    %122 = vector.extract_strided_slice %120 {offsets = [16, 0], sizes = [16, 256], strides = [1, 1]} : vector<128x256xf32> to vector<16x256xf32>
    %123 = arith.maximumf %121, %122 : vector<16x256xf32>
    %124 = vector.extract_strided_slice %120 {offsets = [32, 0], sizes = [16, 256], strides = [1, 1]} : vector<128x256xf32> to vector<16x256xf32>
    %125 = vector.extract_strided_slice %120 {offsets = [48, 0], sizes = [16, 256], strides = [1, 1]} : vector<128x256xf32> to vector<16x256xf32>
    %126 = arith.maximumf %124, %125 : vector<16x256xf32>
    %127 = vector.extract_strided_slice %120 {offsets = [64, 0], sizes = [16, 256], strides = [1, 1]} : vector<128x256xf32> to vector<16x256xf32>
    %128 = vector.extract_strided_slice %120 {offsets = [80, 0], sizes = [16, 256], strides = [1, 1]} : vector<128x256xf32> to vector<16x256xf32>
    %129 = arith.maximumf %127, %128 : vector<16x256xf32>
    %130 = vector.extract_strided_slice %120 {offsets = [96, 0], sizes = [16, 256], strides = [1, 1]} : vector<128x256xf32> to vector<16x256xf32>
    %131 = vector.extract_strided_slice %120 {offsets = [112, 0], sizes = [16, 256], strides = [1, 1]} : vector<128x256xf32> to vector<16x256xf32>
    %132 = arith.maximumf %130, %131 : vector<16x256xf32>
    %133 = tpu.concatenate %123, %126, %129, %132 in 0 : vector<16x256xf32>, vector<16x256xf32>, vector<16x256xf32>, vector<16x256xf32> -> vector<64x256xf32>
    %134 = vector.extract_strided_slice %133 {offsets = [0, 0], sizes = [64, 255], strides = [1, 1]} : vector<64x256xf32> to vector<64x255xf32>
    %135 = vector.extract_strided_slice %133 {offsets = [0, 1], sizes = [64, 255], strides = [1, 1]} : vector<64x256xf32> to vector<64x255xf32>
    %136 = arith.maximumf %134, %135 : vector<64x255xf32>
    %c0_62 = arith.constant 0 : index
    %c0_63 = arith.constant 0 : index
    %137 = vector.load %arg11[%c0_62, %c0_63] : memref<255x128xf32, #tpu.memory_space<vmem>>, vector<255x128xf32>
    %cst_64 = arith.constant dense<0.000000e+00> : vector<64x128xf32>
    %138 = tpu.matmul %136, %137, %cst_64 {dimension_numbers = #tpu.dot_dimension_numbers<[1], [0], [0], [1], [0, 0, 1, 1], [], []>} : vector<64x255xf32>, vector<255x128xf32>, vector<64x128xf32> -> vector<64x128xf32>
    %139 = vector.extract_strided_slice %138 {offsets = [0, 0], sizes = [32, 128], strides = [1, 1]} : vector<64x128xf32> to vector<32x128xf32>
    %c0_65 = arith.constant 0 : index
    %c0_66 = arith.constant 0 : index
    %c0_67 = arith.constant 0 : index
    %140 = vector.load %arg12[%c0_65, %c0_66, %c0_67] : memref<3x128x128xf32, #tpu.memory_space<vmem>>, vector<1x128x128xf32>
    %141 = vector.shape_cast %140 : vector<1x128x128xf32> to vector<128x128xf32>
    %cst_68 = arith.constant dense<0.000000e+00> : vector<32x128xf32>
    %142 = tpu.matmul %139, %141, %cst_68 {dimension_numbers = #tpu.dot_dimension_numbers<[1], [0], [0], [1], [0, 0, 1, 1], [], []>} : vector<32x128xf32>, vector<128x128xf32>, vector<32x128xf32> -> vector<32x128xf32>
    %143 = vector.extract_strided_slice %138 {offsets = [16, 0], sizes = [32, 128], strides = [1, 1]} : vector<64x128xf32> to vector<32x128xf32>
    %c1_69 = arith.constant 1 : index
    %c0_70 = arith.constant 0 : index
    %c0_71 = arith.constant 0 : index
    %144 = vector.load %arg12[%c1_69, %c0_70, %c0_71] : memref<3x128x128xf32, #tpu.memory_space<vmem>>, vector<1x128x128xf32>
    %145 = vector.shape_cast %144 : vector<1x128x128xf32> to vector<128x128xf32>
    %cst_72 = arith.constant dense<0.000000e+00> : vector<32x128xf32>
    %146 = tpu.matmul %143, %145, %cst_72 {dimension_numbers = #tpu.dot_dimension_numbers<[1], [0], [0], [1], [0, 0, 1, 1], [], []>} : vector<32x128xf32>, vector<128x128xf32>, vector<32x128xf32> -> vector<32x128xf32>
    %147 = arith.addf %142, %146 : vector<32x128xf32>
    %148 = vector.extract_strided_slice %138 {offsets = [32, 0], sizes = [32, 128], strides = [1, 1]} : vector<64x128xf32> to vector<32x128xf32>
    %c2_73 = arith.constant 2 : index
    %c0_74 = arith.constant 0 : index
    %c0_75 = arith.constant 0 : index
    %149 = vector.load %arg12[%c2_73, %c0_74, %c0_75] : memref<3x128x128xf32, #tpu.memory_space<vmem>>, vector<1x128x128xf32>
    %150 = vector.shape_cast %149 : vector<1x128x128xf32> to vector<128x128xf32>
    %cst_76 = arith.constant dense<0.000000e+00> : vector<32x128xf32>
    %151 = tpu.matmul %148, %150, %cst_76 {dimension_numbers = #tpu.dot_dimension_numbers<[1], [0], [0], [1], [0, 0, 1, 1], [], []>} : vector<32x128xf32>, vector<128x128xf32>, vector<32x128xf32> -> vector<32x128xf32>
    %152 = arith.addf %147, %151 : vector<32x128xf32>
    %c0_77 = arith.constant 0 : index
    %c0_78 = arith.constant 0 : index
    %153 = vector.load %arg13[%c0_77, %c0_78] : memref<1x128xf32, #tpu.memory_space<vmem>>, vector<1x128xf32>
    %154 = vector.broadcast %153 : vector<1x128xf32> to vector<32x128xf32>
    %155 = arith.addf %152, %154 : vector<32x128xf32>
    %cst_79 = arith.constant 0.000000e+00 : f32
    %156 = vector.broadcast %cst_79 : f32 to vector<32x128xf32>
    %157 = arith.maximumf %155, %156 : vector<32x128xf32>
    %158 = vector.extract_strided_slice %157 {offsets = [0, 0], sizes = [16, 128], strides = [1, 1]} : vector<32x128xf32> to vector<16x128xf32>
    %159 = vector.extract_strided_slice %157 {offsets = [16, 0], sizes = [16, 128], strides = [1, 1]} : vector<32x128xf32> to vector<16x128xf32>
    %160 = arith.maximumf %158, %159 : vector<16x128xf32>
    %161 = vector.extract_strided_slice %160 {offsets = [0, 0], sizes = [16, 127], strides = [1, 1]} : vector<16x128xf32> to vector<16x127xf32>
    %162 = vector.extract_strided_slice %160 {offsets = [0, 1], sizes = [16, 127], strides = [1, 1]} : vector<16x128xf32> to vector<16x127xf32>
    %163 = arith.maximumf %161, %162 : vector<16x127xf32>
    %c0_80 = arith.constant 0 : index
    %c0_81 = arith.constant 0 : index
    %164 = vector.load %arg14[%c0_80, %c0_81] : memref<127x64xf32, #tpu.memory_space<vmem>>, vector<127x64xf32>
    %cst_82 = arith.constant dense<0.000000e+00> : vector<16x64xf32>
    %165 = tpu.matmul %163, %164, %cst_82 {dimension_numbers = #tpu.dot_dimension_numbers<[1], [0], [0], [1], [0, 0, 1, 1], [], []>} : vector<16x127xf32>, vector<127x64xf32>, vector<16x64xf32> -> vector<16x64xf32>
    %c0_83 = arith.constant 0 : index
    %c0_84 = arith.constant 0 : index
    %166 = vector.load %arg15[%c0_83, %c0_84] : memref<64x128xf32, #tpu.memory_space<vmem>>, vector<64x128xf32>
    %cst_85 = arith.constant dense<0.000000e+00> : vector<16x128xf32>
    %167 = tpu.matmul %165, %166, %cst_85 {dimension_numbers = #tpu.dot_dimension_numbers<[1], [0], [0], [1], [0, 0, 1, 1], [], []>} : vector<16x64xf32>, vector<64x128xf32>, vector<16x128xf32> -> vector<16x128xf32>
    %c0_86 = arith.constant 0 : index
    %c0_87 = arith.constant 0 : index
    %168 = vector.load %arg16[%c0_86, %c0_87] : memref<1x128xf32, #tpu.memory_space<vmem>>, vector<1x128xf32>
    %169 = vector.broadcast %168 : vector<1x128xf32> to vector<16x128xf32>
    %170 = arith.addf %167, %169 : vector<16x128xf32>
    %c0_88 = arith.constant 0 : index
    %c0_89 = arith.constant 0 : index
    %171 = vector.load %arg17[%c0_88, %c0_89] : memref<16x128xf32, #tpu.memory_space<vmem>>, vector<16x128xf32>
    tpu.vector_store %arg17[%c0_88, %c0_89], %170 {strides = array<i32>} : memref<16x128xf32, #tpu.memory_space<vmem>>, vector<16x128xf32>,
    return
  }
  func.func @transform_0(%arg0: i32) -> (i32, i32) {
    %c0_i32 = arith.constant 0 : i32
    %c0_i32_0 = arith.constant 0 : i32
    return %arg0, %c0_i32 : i32, i32
  }
  func.func @transform_1(%arg0: i32) -> (i32, i32, i32) {
    %c0_i32 = arith.constant 0 : i32
    %c0_i32_0 = arith.constant 0 : i32
    %c0_i32_1 = arith.constant 0 : i32
    %c0_i32_2 = arith.constant 0 : i32
    return %c0_i32, %c0_i32_0, %c0_i32_1 : i32, i32, i32
  }
  func.func @transform_2(%arg0: i32) -> (i32, i32) {
    %c0_i32 = arith.constant 0 : i32
    %c0_i32_0 = arith.constant 0 : i32
    %c0_i32_1 = arith.constant 0 : i32
    return %c0_i32, %c0_i32_0 : i32, i32
  }
  func.func @transform_3(%arg0: i32) -> (i32, i32, i32) {
    %c0_i32 = arith.constant 0 : i32
    %c0_i32_0 = arith.constant 0 : i32
    %c0_i32_1 = arith.constant 0 : i32
    %c0_i32_2 = arith.constant 0 : i32
    return %c0_i32, %c0_i32_0, %c0_i32_1 : i32, i32, i32
  }
  func.func @transform_4(%arg0: i32) -> (i32, i32) {
    %c0_i32 = arith.constant 0 : i32
    %c0_i32_0 = arith.constant 0 : i32
    %c0_i32_1 = arith.constant 0 : i32
    return %c0_i32, %c0_i32_0 : i32, i32
  }
  func.func @transform_5(%arg0: i32) -> (i32, i32) {
    %c0_i32 = arith.constant 0 : i32
    %c0_i32_0 = arith.constant 0 : i32
    %c0_i32_1 = arith.constant 0 : i32
    return %c0_i32, %c0_i32_0 : i32, i32
  }
  func.func @transform_6(%arg0: i32) -> (i32, i32, i32) {
    %c0_i32 = arith.constant 0 : i32
    %c0_i32_0 = arith.constant 0 : i32
    %c0_i32_1 = arith.constant 0 : i32
    %c0_i32_2 = arith.constant 0 : i32
    return %c0_i32, %c0_i32_0, %c0_i32_1 : i32, i32, i32
  }
  func.func @transform_7(%arg0: i32) -> (i32, i32) {
    %c0_i32 = arith.constant 0 : i32
    %c0_i32_0 = arith.constant 0 : i32
    %c0_i32_1 = arith.constant 0 : i32
    return %c0_i32, %c0_i32_0 : i32, i32
  }
  func.func @transform_8(%arg0: i32) -> (i32, i32, i32) {
    %c0_i32 = arith.constant 0 : i32
    %c0_i32_0 = arith.constant 0 : i32
    %c0_i32_1 = arith.constant 0 : i32
    %c0_i32_2 = arith.constant 0 : i32
    return %c0_i32, %c0_i32_0, %c0_i32_1 : i32, i32, i32
  }
  func.func @transform_9(%arg0: i32) -> (i32, i32) {
    %c0_i32 = arith.constant 0 : i32
    %c0_i32_0 = arith.constant 0 : i32
    %c0_i32_1 = arith.constant 0 : i32
    return %c0_i32, %c0_i32_0 : i32, i32
  }
  func.func @transform_10(%arg0: i32) -> (i32, i32) {
    %c0_i32 = arith.constant 0 : i32
    %c0_i32_0 = arith.constant 0 : i32
    %c0_i32_1 = arith.constant 0 : i32
    return %c0_i32, %c0_i32_0 : i32, i32
  }
  func.func @transform_11(%arg0: i32) -> (i32, i32, i32) {
    %c0_i32 = arith.constant 0 : i32
    %c0_i32_0 = arith.constant 0 : i32
    %c0_i32_1 = arith.constant 0 : i32
    %c0_i32_2 = arith.constant 0 : i32
    return %c0_i32, %c0_i32_0, %c0_i32_1 : i32, i32, i32
  }
  func.func @transform_12(%arg0: i32) -> (i32, i32) {
    %c0_i32 = arith.constant 0 : i32
    %c0_i32_0 = arith.constant 0 : i32
    %c0_i32_1 = arith.constant 0 : i32
    return %c0_i32, %c0_i32_0 : i32, i32
  }
  func.func @transform_13(%arg0: i32) -> (i32, i32) {
    %c0_i32 = arith.constant 0 : i32
    %c0_i32_0 = arith.constant 0 : i32
    %c0_i32_1 = arith.constant 0 : i32
    return %c0_i32, %c0_i32_0 : i32, i32
  }
  func.func @transform_14(%arg0: i32) -> (i32, i32) {
    %c0_i32 = arith.constant 0 : i32
    %c0_i32_0 = arith.constant 0 : i32
    %c0_i32_1 = arith.constant 0 : i32
    return %c0_i32, %c0_i32_0 : i32, i32
  }
  func.func @transform_15(%arg0: i32) -> (i32, i32) {
    %c0_i32 = arith.constant 0 : i32
    %c0_i32_0 = arith.constant 0 : i32
    %c0_i32_1 = arith.constant 0 : i32
    return %c0_i32, %c0_i32_0 : i32, i32
  }
  func.func @transform_16(%arg0: i32) -> (i32, i32) {
    %c0_i32 = arith.constant 0 : i32
    %c0_i32_0 = arith.constant 0 : i32
    return %arg0, %c0_i32 : i32, i32
  }
}

</mosaic_0001>

<llo_original>
// kernel: forward.1
$region0: #{forward.1}
  #allocation0 [shape = 'u32[]', space=smem, size = 0x4, offset = 0x4, fixed_abs, tag = 'smem constant byte address 0x4 - core index']
  #allocation1 [shape = 'u32[72,128]{1,0:T(1,128)}', space=vmem, size = 0x9000, scoped, tag = 'internal scratch']
  %s0 = inlined_call_operand.vmem [shape: f32[896,28], index: 0, kind: input, shape index: {}]
  %s1 = inlined_call_operand.vmem [shape: f32[3,28,104], index: 1, kind: input, shape index: {}]
  %s2 = inlined_call_operand.vmem [shape: f32[1,104], index: 2, kind: input, shape index: {}]
  %s3 = inlined_call_operand.vmem [shape: f32[3,104,192], index: 3, kind: input, shape index: {}]
  %s4 = inlined_call_operand.vmem [shape: f32[1,192], index: 4, kind: input, shape index: {}]
  %s5 = inlined_call_operand.vmem [shape: f32[191,96], index: 5, kind: input, shape index: {}]
  %s6 = inlined_call_operand.vmem [shape: f32[3,96,160], index: 6, kind: input, shape index: {}]
  %s7 = inlined_call_operand.vmem [shape: f32[1,160], index: 7, kind: input, shape index: {}]
  %s8 = inlined_call_operand.vmem [shape: f32[3,160,256], index: 8, kind: input, shape index: {}]
  %s9 = inlined_call_operand.vmem [shape: f32[1,256], index: 9, kind: input, shape index: {}]
  %s10 = inlined_call_operand.vmem [shape: f32[255,128], index: 10, kind: input, shape index: {}]
  %s11 = inlined_call_operand.vmem [shape: f32[3,128,128], index: 11, kind: input, shape index: {}]
  %s12 = inlined_call_operand.vmem [shape: f32[1,128], index: 12, kind: input, shape index: {}]
  %s13 = inlined_call_operand.vmem [shape: f32[127,64], index: 13, kind: input, shape index: {}]
  %s14 = inlined_call_operand.vmem [shape: f32[64,128], index: 14, kind: input, shape index: {}]
  %s15 = inlined_call_operand.vmem [shape: f32[1,128], index: 15, kind: input, shape index: {}]
  %s16 = inlined_call_operand.vmem [shape: f32[32,128], index: 16, kind: output, shape index: {}]
  %s17 = sld [smem:[#allocation0]]
  $region97: #{forward.1} parent=0
    _
  %s19 = ssub.s32 1, %s17
  %s20 = scalar_select 0, %s19, %s17
  loop: start=0, step=1, limit=4
  $region2: #{forward.1} parent=0 // loop_pre_header
    _
  $region3: #{forward.1} parent=0 // loop_header
    %s22 = sphi 0, %s26
    %p23 = scmp.ge.s32.totalorder %s22, 4
    %s32 = sphi 0, %s34
    %s35 = sphi 0, %s32
    %s36 = sphi 0, %s35
    %s52 = sphi 0, %s36
    %s56 = sphi 0, %s56
    %s58 = sphi 0, %s56
    %s59 = sphi 0, %s58
    %s73 = sphi 0, %s59
    %s77 = sphi 0, %s77
    %s79 = sphi 0, %s77
    %s80 = sphi 0, %s79
    %s94 = sphi 0, %s80
    %s98 = sphi 0, %s98
    %s100 = sphi 0, %s98
    %s101 = sphi 0, %s100
    %s115 = sphi 0, %s101
    %s119 = sphi 0, %s119
    %s121 = sphi 0, %s119
    %s122 = sphi 0, %s121
    %s136 = sphi 0, %s122
    %s140 = sphi 0, %s140
    %s142 = sphi 0, %s140
    %s143 = sphi 0, %s142
    %s157 = sphi 0, %s143
    %s161 = sphi 0, %s161
    %s163 = sphi 0, %s161
    %s164 = sphi 0, %s163
    %s178 = sphi 0, %s164
    %s182 = sphi 0, %s182
    %s184 = sphi 0, %s182
    %s185 = sphi 0, %s184
    %s199 = sphi 0, %s185
    %s203 = sphi 0, %s203
    %s205 = sphi 0, %s203
    %s206 = sphi 0, %s205
    %s220 = sphi 0, %s206
    %s224 = sphi 0, %s224
    %s226 = sphi 0, %s224
    %s227 = sphi 0, %s226
    %s241 = sphi 0, %s227
    %s245 = sphi 0, %s245
    %s247 = sphi 0, %s245
    %s248 = sphi 0, %s247
    %s262 = sphi 0, %s248
    %s266 = sphi 0, %s266
    %s268 = sphi 0, %s266
    %s269 = sphi 0, %s268
    %s283 = sphi 0, %s269
    %s287 = sphi 0, %s287
    %s289 = sphi 0, %s287
    %s290 = sphi 0, %s289
    %s304 = sphi 0, %s290
    %s308 = sphi 0, %s308
    %s310 = sphi 0, %s308
    %s311 = sphi 0, %s310
    %s325 = sphi 0, %s311
    %s329 = sphi 0, %s329
    %s331 = sphi 0, %s329
    %s332 = sphi 0, %s331
    %s346 = sphi 0, %s332
    %s350 = sphi 0, %s350
    %s352 = sphi 0, %s350
    %s353 = sphi 0, %s352
    %s367 = sphi 0, %s353
    %s373 = sphi 0, %s375
    %s376 = sphi 0, %s373
    %s377 = sphi 0, %s376
    %s393 = sphi 0, %s377
  $region4: #{forward.1} parent=0 // loop_header_branch
    %25 = sbr.rel (%p23) target = $region8
  $region5: #{forward.1} parent=0 // loop_body
    %s27 = ssub.s32 %s22, 1
    %s28 = ssub.s32 %s22, 2
    %s29 = sadd.s32 %s22, 1
    %s30 = ssub.s32 %s22, %s29
    %p31 = scmp.eq.s32.totalorder %s30, 0
    %s33 = sadd.s32 %s32, 1
    %s34 = scalar_select %p31, %s32, %s33
    %p37 = pneg %p31
    %p38 = scmp.eq.s32.totalorder %s22, 1
    %p39 = por %p37, %p38
    %p40 = scmp.ne.s32.totalorder %s32, %s35
    %p41 = scmp.eq.s32.totalorder %s22, 0
    %p42 = por %p40, %p41
    %p43 = scmp.ne.s32.totalorder %s32, %s35
    %p44 = scmp.eq.s32.totalorder %s27, 1
    %p45 = por %p43, %p44
    %p46 = scmp.ne.s32.totalorder %s35, %s36
    %p47 = scmp.eq.s32.totalorder %s27, 0
    %p48 = por %p46, %p47
    %p49 = scmp.ne.s32.totalorder %s35, %s36
    %p50 = scmp.eq.s32.totalorder %s28, 1
    %p51 = por %p49, %p50
    %p53 = scmp.ne.s32.totalorder %s36, %s52
    %p54 = scmp.eq.s32.totalorder %s28, 0
    %p55 = por %p53, %p54
    %s57 = sadd.s32 %s56, 1
    %p60 = scmp.eq.s32.totalorder %s22, 1
    %p61 = scmp.ne.s32.totalorder %s56, %s58
    %p62 = scmp.eq.s32.totalorder %s22, 0
    %p63 = por %p61, %p62
    %p64 = scmp.ne.s32.totalorder %s56, %s58
    %p65 = scmp.eq.s32.totalorder %s27, 1
    %p66 = por %p64, %p65
    %p67 = scmp.ne.s32.totalorder %s58, %s59
    %p68 = scmp.eq.s32.totalorder %s27, 0
    %p69 = por %p67, %p68
    %p70 = scmp.ne.s32.totalorder %s58, %s59
    %p71 = scmp.eq.s32.totalorder %s28, 1
    %p72 = por %p70, %p71
    %p74 = scmp.ne.s32.totalorder %s59, %s73
    %p75 = scmp.eq.s32.totalorder %s28, 0
    %p76 = por %p74, %p75
    %s78 = sadd.s32 %s77, 1
    %p81 = scmp.eq.s32.totalorder %s22, 1
    %p82 = scmp.ne.s32.totalorder %s77, %s79
    %p83 = scmp.eq.s32.totalorder %s22, 0
    %p84 = por %p82, %p83
    %p85 = scmp.ne.s32.totalorder %s77, %s79
    %p86 = scmp.eq.s32.totalorder %s27, 1
    %p87 = por %p85, %p86
    %p88 = scmp.ne.s32.totalorder %s79, %s80
    %p89 = scmp.eq.s32.totalorder %s27, 0
    %p90 = por %p88, %p89
    %p91 = scmp.ne.s32.totalorder %s79, %s80
    %p92 = scmp.eq.s32.totalorder %s28, 1
    %p93 = por %p91, %p92
    %p95 = scmp.ne.s32.totalorder %s80, %s94
    %p96 = scmp.eq.s32.totalorder %s28, 0
    %p97 = por %p95, %p96
    %s99 = sadd.s32 %s98, 1
    %p102 = scmp.eq.s32.totalorder %s22, 1
    %p103 = scmp.ne.s32.totalorder %s98, %s100
    %p104 = scmp.eq.s32.totalorder %s22, 0
    %p105 = por %p103, %p104
    %p106 = scmp.ne.s32.totalorder %s98, %s100
    %p107 = scmp.eq.s32.totalorder %s27, 1
    %p108 = por %p106, %p107
    %p109 = scmp.ne.s32.totalorder %s100, %s101
    %p110 = scmp.eq.s32.totalorder %s27, 0
    %p111 = por %p109, %p110
    %p112 = scmp.ne.s32.totalorder %s100, %s101
    %p113 = scmp.eq.s32.totalorder %s28, 1
    %p114 = por %p112, %p113
    %p116 = scmp.ne.s32.totalorder %s101, %s115
    %p117 = scmp.eq.s32.totalorder %s28, 0
    %p118 = por %p116, %p117
    %s120 = sadd.s32 %s119, 1
    %p123 = scmp.eq.s32.totalorder %s22, 1
    %p124 = scmp.ne.s32.totalorder %s119, %s121
    %p125 = scmp.eq.s32.totalorder %s22, 0
    %p126 = por %p124, %p125
    %p127 = scmp.ne.s32.totalorder %s119, %s121
    %p128 = scmp.eq.s32.totalorder %s27, 1
    %p129 = por %p127, %p128
    %p130 = scmp.ne.s32.totalorder %s121, %s122
    %p131 = scmp.eq.s32.totalorder %s27, 0
    %p132 = por %p130, %p131
    %p133 = scmp.ne.s32.totalorder %s121, %s122
    %p134 = scmp.eq.s32.totalorder %s28, 1
    %p135 = por %p133, %p134
    %p137 = scmp.ne.s32.totalorder %s122, %s136
    %p138 = scmp.eq.s32.totalorder %s28, 0
    %p139 = por %p137, %p138
    %s141 = sadd.s32 %s140, 1
    %p144 = scmp.eq.s32.totalorder %s22, 1
    %p145 = scmp.ne.s32.totalorder %s140, %s142
    %p146 = scmp.eq.s32.totalorder %s22, 0
    %p147 = por %p145, %p146
    %p148 = scmp.ne.s32.totalorder %s140, %s142
    %p149 = scmp.eq.s32.totalorder %s27, 1
    %p150 = por %p148, %p149
    %p151 = scmp.ne.s32.totalorder %s142, %s143
    %p152 = scmp.eq.s32.totalorder %s27, 0
    %p153 = por %p151, %p152
    %p154 = scmp.ne.s32.totalorder %s142, %s143
    %p155 = scmp.eq.s32.totalorder %s28, 1
    %p156 = por %p154, %p155
    %p158 = scmp.ne.s32.totalorder %s143, %s157
    %p159 = scmp.eq.s32.totalorder %s28, 0
    %p160 = por %p158, %p159
    %s162 = sadd.s32 %s161, 1
    %p165 = scmp.eq.s32.totalorder %s22, 1
    %p166 = scmp.ne.s32.totalorder %s161, %s163
    %p167 = scmp.eq.s32.totalorder %s22, 0
    %p168 = por %p166, %p167
    %p169 = scmp.ne.s32.totalorder %s161, %s163
    %p170 = scmp.eq.s32.totalorder %s27, 1
    %p171 = por %p169, %p170
    %p172 = scmp.ne.s32.totalorder %s163, %s164
    %p173 = scmp.eq.s32.totalorder %s27, 0
    %p174 = por %p172, %p173
    %p175 = scmp.ne.s32.totalorder %s163, %s164
    %p176 = scmp.eq.s32.totalorder %s28, 1
    %p177 = por %p175, %p176
    %p179 = scmp.ne.s32.totalorder %s164, %s178
    %p180 = scmp.eq.s32.totalorder %s28, 0
    %p181 = por %p179, %p180
    %s183 = sadd.s32 %s182, 1
    %p186 = scmp.eq.s32.totalorder %s22, 1
    %p187 = scmp.ne.s32.totalorder %s182, %s184
    %p188 = scmp.eq.s32.totalorder %s22, 0
    %p189 = por %p187, %p188
    %p190 = scmp.ne.s32.totalorder %s182, %s184
    %p191 = scmp.eq.s32.totalorder %s27, 1
    %p192 = por %p190, %p191
    %p193 = scmp.ne.s32.totalorder %s184, %s185
    %p194 = scmp.eq.s32.totalorder %s27, 0
    %p195 = por %p193, %p194
    %p196 = scmp.ne.s32.totalorder %s184, %s185
    %p197 = scmp.eq.s32.totalorder %s28, 1
    %p198 = por %p196, %p197
    %p200 = scmp.ne.s32.totalorder %s185, %s199
    %p201 = scmp.eq.s32.totalorder %s28, 0
    %p202 = por %p200, %p201
    %s204 = sadd.s32 %s203, 1
    %p207 = scmp.eq.s32.totalorder %s22, 1
    %p208 = scmp.ne.s32.totalorder %s203, %s205
    %p209 = scmp.eq.s32.totalorder %s22, 0
    %p210 = por %p208, %p209
    %p211 = scmp.ne.s32.totalorder %s203, %s205
    %p212 = scmp.eq.s32.totalorder %s27, 1
    %p213 = por %p211, %p212
    %p214 = scmp.ne.s32.totalorder %s205, %s206
    %p215 = scmp.eq.s32.totalorder %s27, 0
    %p216 = por %p214, %p215
    %p217 = scmp.ne.s32.totalorder %s205, %s206
    %p218 = scmp.eq.s32.totalorder %s28, 1
    %p219 = por %p217, %p218
    %p221 = scmp.ne.s32.totalorder %s206, %s220
    %p222 = scmp.eq.s32.totalorder %s28, 0
    %p223 = por %p221, %p222
    %s225 = sadd.s32 %s224, 1
    %p228 = scmp.eq.s32.totalorder %s22, 1
    %p229 = scmp.ne.s32.totalorder %s224, %s226
    %p230 = scmp.eq.s32.totalorder %s22, 0
    %p231 = por %p229, %p230
    %p232 = scmp.ne.s32.totalorder %s224, %s226
    %p233 = scmp.eq.s32.totalorder %s27, 1
    %p234 = por %p232, %p233
    %p235 = scmp.ne.s32.totalorder %s226, %s227
    %p236 = scmp.eq.s32.totalorder %s27, 0
    %p237 = por %p235, %p236
    %p238 = scmp.ne.s32.totalorder %s226, %s227
    %p239 = scmp.eq.s32.totalorder %s28, 1
    %p240 = por %p238, %p239
    %p242 = scmp.ne.s32.totalorder %s227, %s241
    %p243 = scmp.eq.s32.totalorder %s28, 0
    %p244 = por %p242, %p243
    %s246 = sadd.s32 %s245, 1
    %p249 = scmp.eq.s32.totalorder %s22, 1
    %p250 = scmp.ne.s32.totalorder %s245, %s247
    %p251 = scmp.eq.s32.totalorder %s22, 0
    %p252 = por %p250, %p251
    %p253 = scmp.ne.s32.totalorder %s245, %s247
    %p254 = scmp.eq.s32.totalorder %s27, 1
    %p255 = por %p253, %p254
    %p256 = scmp.ne.s32.totalorder %s247, %s248
    %p257 = scmp.eq.s32.totalorder %s27, 0
    %p258 = por %p256, %p257
    %p259 = scmp.ne.s32.totalorder %s247, %s248
    %p260 = scmp.eq.s32.totalorder %s28, 1
    %p261 = por %p259, %p260
    %p263 = scmp.ne.s32.totalorder %s248, %s262
    %p264 = scmp.eq.s32.totalorder %s28, 0
    %p265 = por %p263, %p264
    %s267 = sadd.s32 %s266, 1
    %p270 = scmp.eq.s32.totalorder %s22, 1
    %p271 = scmp.ne.s32.totalorder %s266, %s268
    %p272 = scmp.eq.s32.totalorder %s22, 0
    %p273 = por %p271, %p272
    %p274 = scmp.ne.s32.totalorder %s266, %s268
    %p275 = scmp.eq.s32.totalorder %s27, 1
    %p276 = por %p274, %p275
    %p277 = scmp.ne.s32.totalorder %s268, %s269
    %p278 = scmp.eq.s32.totalorder %s27, 0
    %p279 = por %p277, %p278
    %p280 = scmp.ne.s32.totalorder %s268, %s269
    %p281 = scmp.eq.s32.totalorder %s28, 1
    %p282 = por %p280, %p281
    %p284 = scmp.ne.s32.totalorder %s269, %s283
    %p285 = scmp.eq.s32.totalorder %s28, 0
    %p286 = por %p284, %p285
    %s288 = sadd.s32 %s287, 1
    %p291 = scmp.eq.s32.totalorder %s22, 1
    %p292 = scmp.ne.s32.totalorder %s287, %s289
    %p293 = scmp.eq.s32.totalorder %s22, 0
    %p294 = por %p292, %p293
    %p295 = scmp.ne.s32.totalorder %s287, %s289
    %p296 = scmp.eq.s32.totalorder %s27, 1
    %p297 = por %p295, %p296
    %p298 = scmp.ne.s32.totalorder %s289, %s290
    %p299 = scmp.eq.s32.totalorder %s27, 0
    %p300 = por %p298, %p299
    %p301 = scmp.ne.s32.totalorder %s289, %s290
    %p302 = scmp.eq.s32.totalorder %s28, 1
    %p303 = por %p301, %p302
    %p305 = scmp.ne.s32.totalorder %s290, %s304
    %p306 = scmp.eq.s32.totalorder %s28, 0
    %p307 = por %p305, %p306
    %s309 = sadd.s32 %s308, 1
    %p312 = scmp.eq.s32.totalorder %s22, 1
    %p313 = scmp.ne.s32.totalorder %s308, %s310
    %p314 = scmp.eq.s32.totalorder %s22, 0
    %p315 = por %p313, %p314
    %p316 = scmp.ne.s32.totalorder %s308, %s310
    %p317 = scmp.eq.s32.totalorder %s27, 1
    %p318 = por %p316, %p317
    %p319 = scmp.ne.s32.totalorder %s310, %s311
    %p320 = scmp.eq.s32.totalorder %s27, 0
    %p321 = por %p319, %p320
    %p322 = scmp.ne.s32.totalorder %s310, %s311
    %p323 = scmp.eq.s32.totalorder %s28, 1
    %p324 = por %p322, %p323
    %p326 = scmp.ne.s32.totalorder %s311, %s325
    %p327 = scmp.eq.s32.totalorder %s28, 0
    %p328 = por %p326, %p327
    %s330 = sadd.s32 %s329, 1
    %p333 = scmp.eq.s32.totalorder %s22, 1
    %p334 = scmp.ne.s32.totalorder %s329, %s331
    %p335 = scmp.eq.s32.totalorder %s22, 0
    %p336 = por %p334, %p335
    %p337 = scmp.ne.s32.totalorder %s329, %s331
    %p338 = scmp.eq.s32.totalorder %s27, 1
    %p339 = por %p337, %p338
    %p340 = scmp.ne.s32.totalorder %s331, %s332
    %p341 = scmp.eq.s32.totalorder %s27, 0
    %p342 = por %p340, %p341
    %p343 = scmp.ne.s32.totalorder %s331, %s332
    %p344 = scmp.eq.s32.totalorder %s28, 1
    %p345 = por %p343, %p344
    %p347 = scmp.ne.s32.totalorder %s332, %s346
    %p348 = scmp.eq.s32.totalorder %s28, 0
    %p349 = por %p347, %p348
    %s351 = sadd.s32 %s350, 1
    %p354 = scmp.eq.s32.totalorder %s22, 1
    %p355 = scmp.ne.s32.totalorder %s350, %s352
    %p356 = scmp.eq.s32.totalorder %s22, 0
    %p357 = por %p355, %p356
    %p358 = scmp.ne.s32.totalorder %s350, %s352
    %p359 = scmp.eq.s32.totalorder %s27, 1
    %p360 = por %p358, %p359
    %p361 = scmp.ne.s32.totalorder %s352, %s353
    %p362 = scmp.eq.s32.totalorder %s27, 0
    %p363 = por %p361, %p362
    %p364 = scmp.ne.s32.totalorder %s352, %s353
    %p365 = scmp.eq.s32.totalorder %s28, 1
    %p366 = por %p364, %p365
    %p368 = scmp.ne.s32.totalorder %s353, %s367
    %p369 = scmp.eq.s32.totalorder %s28, 0
    %p370 = por %p368, %p369
    %s371 = ssub.s32 %s22, %s29
    %p372 = scmp.eq.s32.totalorder %s371, 0
    %s374 = sadd.s32 %s373, 1
    %s375 = scalar_select %p372, %s373, %s374
    %p378 = pneg %p372
    %p379 = scmp.eq.s32.totalorder %s22, 1
    %p380 = por %p378, %p379
    %p381 = scmp.ne.s32.totalorder %s373, %s376
    %p382 = scmp.eq.s32.totalorder %s22, 0
    %p383 = por %p381, %p382
    %p384 = scmp.ne.s32.totalorder %s373, %s376
    %p385 = scmp.eq.s32.totalorder %s27, 1
    %p386 = por %p384, %p385
    %p387 = scmp.ne.s32.totalorder %s376, %s377
    %p388 = scmp.eq.s32.totalorder %s27, 0
    %p389 = por %p387, %p388
    %p390 = scmp.ne.s32.totalorder %s376, %s377
    %p391 = scmp.eq.s32.totalorder %s28, 1
    %p392 = por %p390, %p391
    %p394 = scmp.ne.s32.totalorder %s377, %s393
    %p395 = scmp.eq.s32.totalorder %s28, 0
    %p396 = por %p394, %p395
    %p397 = scmp.le.s32.totalorder 1, %s22
    %p398 = scmp.lt.s32.totalorder %s22, 3
    %p399 = pnand %p397, %p398
    %p400 = pneg %p399
    // Predicated region
    $region9: #{forward.1} parent=5 // pred_check
      _
    $region10: #{forward.1} parent=5 // pred_check_branch
      %402 = sbr.rel (%p399) target = $region12
    $region11: #{forward.1} parent=5 // pred_region
      %s403 = ssub.s32 %s22, 1
      // Predicated region
      $region13: #{forward.1} parent=11 // pred_check
        %p404 = pneg %p69
      $region14: #{forward.1} parent=11 // pred_check_branch
        %406 = sbr.rel (%p404) target = $region16
      $region15: #{forward.1} parent=11 // pred_region
        _
      $region16: #{forward.1} parent=11 // pred_fallthru
        _
      // Predicated region
      $region17: #{forward.1} parent=11 // pred_check
        %p407 = pneg %p90
      $region18: #{forward.1} parent=11 // pred_check_branch
        %409 = sbr.rel (%p407) target = $region20
      $region19: #{forward.1} parent=11 // pred_region
        _
      $region20: #{forward.1} parent=11 // pred_fallthru
        _
      // Predicated region
      $region21: #{forward.1} parent=11 // pred_check
        %p410 = pneg %p111
      $region22: #{forward.1} parent=11 // pred_check_branch
        %412 = sbr.rel (%p410) target = $region24
      $region23: #{forward.1} parent=11 // pred_region
        _
      $region24: #{forward.1} parent=11 // pred_fallthru
        _
      // Predicated region
      $region25: #{forward.1} parent=11 // pred_check
        %p413 = pneg %p132
      $region26: #{forward.1} parent=11 // pred_check_branch
        %415 = sbr.rel (%p413) target = $region28
      $region27: #{forward.1} parent=11 // pred_region
        _
      $region28: #{forward.1} parent=11 // pred_fallthru
        _
      // Predicated region
      $region29: #{forward.1} parent=11 // pred_check
        %p416 = pneg %p153
      $region30: #{forward.1} parent=11 // pred_check_branch
        %418 = sbr.rel (%p416) target = $region32
      $region31: #{forward.1} parent=11 // pred_region
        _
      $region32: #{forward.1} parent=11 // pred_fallthru
        _
      // Predicated region
      $region33: #{forward.1} parent=11 // pred_check
        %p419 = pneg %p174
      $region34: #{forward.1} parent=11 // pred_check_branch
        %421 = sbr.rel (%p419) target = $region36
      $region35: #{forward.1} parent=11 // pred_region
        _
      $region36: #{forward.1} parent=11 // pred_fallthru
        _
      // Predicated region
      $region37: #{forward.1} parent=11 // pred_check
        %p422 = pneg %p195
      $region38: #{forward.1} parent=11 // pred_check_branch
        %424 = sbr.rel (%p422) target = $region40
      $region39: #{forward.1} parent=11 // pred_region
        _
      $region40: #{forward.1} parent=11 // pred_fallthru
        _
      // Predicated region
      $region41: #{forward.1} parent=11 // pred_check
        %p425 = pneg %p216
      $region42: #{forward.1} parent=11 // pred_check_branch
        %427 = sbr.rel (%p425) target = $region44
      $region43: #{forward.1} parent=11 // pred_region
        _
      $region44: #{forward.1} parent=11 // pred_fallthru
        _
      // Predicated region
      $region45: #{forward.1} parent=11 // pred_check
        %p428 = pneg %p237
      $region46: #{forward.1} parent=11 // pred_check_branch
        %430 = sbr.rel (%p428) target = $region48
      $region47: #{forward.1} parent=11 // pred_region
        _
      $region48: #{forward.1} parent=11 // pred_fallthru
        _
      // Predicated region
      $region49: #{forward.1} parent=11 // pred_check
        %p431 = pneg %p258
      $region50: #{forward.1} parent=11 // pred_check_branch
        %433 = sbr.rel (%p431) target = $region52
      $region51: #{forward.1} parent=11 // pred_region
        _
      $region52: #{forward.1} parent=11 // pred_fallthru
        _
      // Predicated region
      $region53: #{forward.1} parent=11 // pred_check
        %p434 = pneg %p279
      $region54: #{forward.1} parent=11 // pred_check_branch
        %436 = sbr.rel (%p434) target = $region56
      $region55: #{forward.1} parent=11 // pred_region
        _
      $region56: #{forward.1} parent=11 // pred_fallthru
        _
      // Predicated region
      $region57: #{forward.1} parent=11 // pred_check
        %p437 = pneg %p300
      $region58: #{forward.1} parent=11 // pred_check_branch
        %439 = sbr.rel (%p437) target = $region60
      $region59: #{forward.1} parent=11 // pred_region
        _
      $region60: #{forward.1} parent=11 // pred_fallthru
        _
      // Predicated region
      $region61: #{forward.1} parent=11 // pred_check
        %p440 = pneg %p321
      $region62: #{forward.1} parent=11 // pred_check_branch
        %442 = sbr.rel (%p440) target = $region64
      $region63: #{forward.1} parent=11 // pred_region
        _
      $region64: #{forward.1} parent=11 // pred_fallthru
        _
      // Predicated region
      $region65: #{forward.1} parent=11 // pred_check
        %p443 = pneg %p342
      $region66: #{forward.1} parent=11 // pred_check_branch
        %445 = sbr.rel (%p443) target = $region68
      $region67: #{forward.1} parent=11 // pred_region
        _
      $region68: #{forward.1} parent=11 // pred_fallthru
        _
      // Predicated region
      $region69: #{forward.1} parent=11 // pred_check
        %p446 = pneg %p363
      $region70: #{forward.1} parent=11 // pred_check_branch
        %448 = sbr.rel (%p446) target = $region72
      $region71: #{forward.1} parent=11 // pred_region
        _
      $region72: #{forward.1} parent=11 // pred_fallthru
        _
    $region12: #{forward.1} parent=5 // pred_fallthru
      _
    %p449 = scmp.lt.s32.totalorder %s22, 2
    // Predicated region
    $region73: #{forward.1} parent=5 // pred_check
      %p450 = pneg %p449
    $region74: #{forward.1} parent=5 // pred_check_branch
      %452 = sbr.rel (%p450) target = $region76
    $region75: #{forward.1} parent=5 // pred_region
      // Predicated region
      $region77: #{forward.1} parent=75 // pred_check
        %p453 = pneg %p42
      $region78: #{forward.1} parent=75 // pred_check_branch
        %455 = sbr.rel (%p453) target = $region80
      $region79: #{forward.1} parent=75 // pred_region
        %s456 = smul.u32 56, %s22
        %p457 = scmp.lt.s32.totalorder %s456, 111
        %s458 = scalar_select %p457, %s456, 111
        %s459 = smul.addr %s458, 8
        %s460 = scalar_lea.vmem %s0, %s459
        %s461 = smul.u32 56, %s22
      $region80: #{forward.1} parent=75 // pred_fallthru
        _
    $region76: #{forward.1} parent=5 // pred_fallthru
      _
    %p462 = scmp.le.s32.totalorder 1, %s22
    %p463 = scmp.lt.s32.totalorder %s22, 3
    %p464 = pnand %p462, %p463
    %p465 = pneg %p464
    // Predicated region
    $region81: #{forward.1} parent=5 // pred_check
      _
    $region82: #{forward.1} parent=5 // pred_check_branch
      %467 = sbr.rel (%p464) target = $region84
    $region83: #{forward.1} parent=5 // pred_region
      %s468 = ssub.s32 %s22, 1
      %s469 = smul.u32 56, %s27
      %p470 = scmp.lt.s32.totalorder %s469, 111
      %s471 = scalar_select %p470, %s469, 111
      %s472 = smul.addr %s471, 8
      %s473 = scalar_lea.vmem %s0, %s472
      %p474 = pneg %p48
      %p475 = pneg %p45
      %p476 = pneg %p69
      %p477 = pneg %p66
      %p478 = pneg %p90
      %p479 = pneg %p87
      %p480 = pneg %p111
      %p481 = pneg %p108
      %p482 = pneg %p132
      %p483 = pneg %p129
      %p484 = pneg %p153
      %p485 = pneg %p150
      %p486 = pneg %p174
      %p487 = pneg %p171
      %p488 = pneg %p195
      %p489 = pneg %p192
      %p490 = pneg %p216
      %p491 = pneg %p213
      %p492 = pneg %p237
      %p493 = pneg %p234
      %p494 = pneg %p258
      %p495 = pneg %p255
      %p496 = pneg %p279
      %p497 = pneg %p276
      %p498 = pneg %p300
      %p499 = pneg %p297
      %p500 = pneg %p321
      %p501 = pneg %p318
      %p502 = pneg %p342
      %p503 = pneg %p339
      %p504 = pneg %p363
      %p505 = pneg %p360
      %p506 = pneg %p389
      %p507 = pneg %p386
      %s508 = smul.u32 2, %s27
      %p509 = scmp.lt.s32.totalorder %s508, 3
      %s510 = scalar_select %p509, %s508, 3
      %s511 = smul.addr %s510, 8
      %s512 = scalar_lea.vmem %s16, %s511
      %s513 = smul.u32 56, %s27
      %p514 = scmp.lt.s32.totalorder %s513, 111
      %s515 = scalar_select %p514, %s513, 111
      %s516 = smul.addr %s515, 8
      %s517 = scalar_lea.vmem %s0, %s516
      %s518 = smul.u32 56, %s27
      %s519 = smul.u32 2, %s27
      %p520 = scmp.lt.s32.totalorder %s519, 3
      %s521 = scalar_select %p520, %s519, 3
      %s522 = smul.addr %s521, 8
      %s523 = scalar_lea.vmem %s16, %s522
      %s524 = smul.u32 2, %s27
      %v525 = vld [vmem:[%s517] sm:$0xff]
      %v526 = vld [vmem:[%s517 + $0x8] sm:$0xff]
      %v527 = vld [vmem:[%s517 + $0x10] sm:$0xff]
      %v528 = vld [vmem:[%s517 + $0x18] sm:$0xff]
      %v529 = vld [vmem:[%s517 + $0x20] sm:$0xff]
      %v530 = vld [vmem:[%s517 + $0x28] sm:$0xff]
      %v531 = vld [vmem:[%s517 + $0x30] sm:$0xff]
      %v532 = vld [vmem:[%s517 + $0x38] sm:$0xff]
      %v533 = vld [vmem:[%s517 + $0x40] sm:$0xff]
      %v534 = vld [vmem:[%s517 + $0x48] sm:$0xff]
      %v535 = vld [vmem:[%s517 + $0x50] sm:$0xff]
      %v536 = vld [vmem:[%s517 + $0x58] sm:$0xff]
      %v537 = vld [vmem:[%s517 + $0x60] sm:$0xff]
      %v538 = vld [vmem:[%s517 + $0x68] sm:$0xff]
      %v539 = vld [vmem:[%s517 + $0x70] sm:$0xff]
      %v540 = vld [vmem:[%s517 + $0x78] sm:$0xff]
      %v541 = vld [vmem:[%s517 + $0x80] sm:$0xff]
      %v542 = vld [vmem:[%s517 + $0x88] sm:$0xff]
      %v543 = vld [vmem:[%s517 + $0x90] sm:$0xff]
      %v544 = vld [vmem:[%s517 + $0x98] sm:$0xff]
      %v545 = vld [vmem:[%s517 + $0xa0] sm:$0xff]
      %v546 = vld [vmem:[%s517 + $0xa8] sm:$0xff]
      %v547 = vld [vmem:[%s517 + $0xb0] sm:$0xff]
      %v548 = vld [vmem:[%s517 + $0xb8] sm:$0xff]
      %v549 = vld [vmem:[%s517 + $0xc0] sm:$0xff]
      %v550 = vld [vmem:[%s517 + $0xc8] sm:$0xff]
      %v551 = vld [vmem:[%s517 + $0xd0] sm:$0xff]
      %v552 = vld [vmem:[%s517 + $0xd8] sm:$0xff]
      %v553 = vld [vmem:[%s517 + $0xe0] sm:$0xff]
      %v554 = vld [vmem:[%s517 + $0xe8] sm:$0xff]
      %v555 = vld [vmem:[%s517 + $0xf0] sm:$0xff]
      %v556 = vld [vmem:[%s517 + $0xf8] sm:$0xff]
      %v557 = vld [vmem:[%s517 + $0x100] sm:$0xff]
      %v558 = vld [vmem:[%s517 + $0x108] sm:$0xff]
      %v559 = vld [vmem:[%s517 + $0x110] sm:$0xff]
      %v560 = vld [vmem:[%s517 + $0x118] sm:$0xff]
      %v561 = vld [vmem:[%s517 + $0x120] sm:$0xff]
      %v562 = vld [vmem:[%s517 + $0x128] sm:$0xff]
      %v563 = vld [vmem:[%s517 + $0x130] sm:$0xff]
      %v564 = vld [vmem:[%s517 + $0x138] sm:$0xff]
      %v565 = vld [vmem:[%s517 + $0x140] sm:$0xff]
      %v566 = vld [vmem:[%s517 + $0x148] sm:$0xff]
      %v567 = vld [vmem:[%s517 + $0x150] sm:$0xff]
      %v568 = vld [vmem:[%s517 + $0x158] sm:$0xff]
      %v569 = vld [vmem:[%s517 + $0x160] sm:$0xff]
      %v570 = vld [vmem:[%s517 + $0x168] sm:$0xff]
      %v571 = vld [vmem:[%s517 + $0x170] sm:$0xff]
      %v572 = vld [vmem:[%s517 + $0x178] sm:$0xff]
      %v573 = vld [vmem:[%s517 + $0x180] sm:$0xff]
      %v574 = vld [vmem:[%s517 + $0x188] sm:$0xff]
      %v575 = vld [vmem:[%s517 + $0x190] sm:$0xff]
      %v576 = vld [vmem:[%s517 + $0x198] sm:$0xff]
      %v577 = vld [vmem:[%s517 + $0x1a0] sm:$0xff]
      %v578 = vld [vmem:[%s517 + $0x1a8] sm:$0xff]
      %v579 = vld [vmem:[%s517 + $0x1b0] sm:$0xff]
      %v580 = vld [vmem:[%s517 + $0x1b8] sm:$0xff]
      %v581 = vmul.f32 %v525, 0.003921569
      %v582 = vmul.f32 %v526, 0.003921569
      %v583 = vmul.f32 %v527, 0.003921569
      %v584 = vmul.f32 %v528, 0.003921569
      %v585 = vmul.f32 %v529, 0.003921569
      %v586 = vmul.f32 %v530, 0.003921569
      %v587 = vmul.f32 %v531, 0.003921569
      %v588 = vmul.f32 %v532, 0.003921569
      %v589 = vmul.f32 %v533, 0.003921569
      %v590 = vmul.f32 %v534, 0.003921569
      %v591 = vmul.f32 %v535, 0.003921569
      %v592 = vmul.f32 %v536, 0.003921569
      %v593 = vmul.f32 %v537, 0.003921569
      %v594 = vmul.f32 %v538, 0.003921569
      %v595 = vmul.f32 %v539, 0.003921569
      %v596 = vmul.f32 %v540, 0.003921569
      %v597 = vmul.f32 %v541, 0.003921569
      %v598 = vmul.f32 %v542, 0.003921569
      %v599 = vmul.f32 %v543, 0.003921569
      %v600 = vmul.f32 %v544, 0.003921569
      %v601 = vmul.f32 %v545, 0.003921569
      %v602 = vmul.f32 %v546, 0.003921569
      %v603 = vmul.f32 %v547, 0.003921569
      %v604 = vmul.f32 %v548, 0.003921569
      %v605 = vmul.f32 %v549, 0.003921569
      %v606 = vmul.f32 %v550, 0.003921569
      %v607 = vmul.f32 %v551, 0.003921569
      %v608 = vmul.f32 %v552, 0.003921569
      %v609 = vmul.f32 %v553, 0.003921569
      %v610 = vmul.f32 %v554, 0.003921569
      %v611 = vmul.f32 %v555, 0.003921569
      %v612 = vmul.f32 %v556, 0.003921569
      %v613 = vmul.f32 %v557, 0.003921569
      %v614 = vmul.f32 %v558, 0.003921569
      %v615 = vmul.f32 %v559, 0.003921569
      %v616 = vmul.f32 %v560, 0.003921569
      %v617 = vmul.f32 %v561, 0.003921569
      %v618 = vmul.f32 %v562, 0.003921569
      %v619 = vmul.f32 %v563, 0.003921569
      %v620 = vmul.f32 %v564, 0.003921569
      %v621 = vmul.f32 %v565, 0.003921569
      %v622 = vmul.f32 %v566, 0.003921569
      %v623 = vmul.f32 %v567, 0.003921569
      %v624 = vmul.f32 %v568, 0.003921569
      %v625 = vmul.f32 %v569, 0.003921569
      %v626 = vmul.f32 %v570, 0.003921569
      %v627 = vmul.f32 %v571, 0.003921569
      %v628 = vmul.f32 %v572, 0.003921569
      %v629 = vmul.f32 %v573, 0.003921569
      %v630 = vmul.f32 %v574, 0.003921569
      %v631 = vmul.f32 %v575, 0.003921569
      %v632 = vmul.f32 %v576, 0.003921569
      %v633 = vmul.f32 %v577, 0.003921569
      %v634 = vmul.f32 %v578, 0.003921569
      %v635 = vmul.f32 %v579, 0.003921569
      %v636 = vmul.f32 %v580, 0.003921569
      %v637 = vld [vmem:[%s1] sm:$0xff]
      %v638 = vld [vmem:[%s1 + $0x8] sm:$0xff]
      %v639 = vld [vmem:[%s1 + $0x10] sm:$0xff]
      %v640 = vld [vmem:[%s1 + $0x18] sm:$0xf]
      %s641 = scalar_lea.vmem %s1, 32
      %v642 = vld [vmem:[%s641] sm:$0xff]
      %v643 = vld [vmem:[%s641 + $0x8] sm:$0xff]
      %v644 = vld [vmem:[%s641 + $0x10] sm:$0xff]
      %v645 = vld [vmem:[%s641 + $0x18] sm:$0xf]
      %vm646 = vcmask 228352
      %v648 = vsel %vm646, %v583, 0
      %v651 = vsel %vm646, %v584, 0
      %v654 = vsel %vm646, %v585, 0
      %v657 = vsel %vm646, %v586, 0
      %v660 = vsel %vm646, %v587, 0
      %v663 = vsel %vm646, %v588, 0
      %v666 = vsel %vm646, %v589, 0
      %v669 = vsel %vm646, %v590, 0
      %v672 = vsel %vm646, %v591, 0
      %v675 = vsel %vm646, %v592, 0
      %v678 = vsel %vm646, %v593, 0
      %v681 = vsel %vm646, %v594, 0
      %v684 = vsel %vm646, %v595, 0
      %v687 = vsel %vm646, %v596, 0
      %v690 = vsel %vm646, %v597, 0
      %v693 = vsel %vm646, %v598, 0
      %v696 = vsel %vm646, %v599, 0
      %v699 = vsel %vm646, %v600, 0
      %v702 = vsel %vm646, %v601, 0
      %v705 = vsel %vm646, %v602, 0
      %v708 = vsel %vm646, %v603, 0
      %v711 = vsel %vm646, %v604, 0
      %v714 = vsel %vm646, %v605, 0
      %v717 = vsel %vm646, %v606, 0
      %v720 = vsel %vm646, %v607, 0
      %v723 = vsel %vm646, %v608, 0
      %v726 = vsel %vm646, %v609, 0
      %v729 = vsel %vm646, %v610, 0
      %v732 = vsel %vm646, %v611, 0
      %v735 = vsel %vm646, %v612, 0
      %v738 = vsel %vm646, %v613, 0
      %v741 = vsel %vm646, %v614, 0
      %v744 = vsel %vm646, %v615, 0
      %v747 = vsel %vm646, %v616, 0
      %v750 = vsel %vm646, %v617, 0
      %v753 = vsel %vm646, %v618, 0
      %v756 = vsel %vm646, %v619, 0
      %v759 = vsel %vm646, %v620, 0
      %v762 = vsel %vm646, %v621, 0
      %v765 = vsel %vm646, %v622, 0
      %v768 = vsel %vm646, %v623, 0
      %v771 = vsel %vm646, %v624, 0
      %v774 = vsel %vm646, %v625, 0
      %v777 = vsel %vm646, %v626, 0
      %v780 = vsel %vm646, %v627, 0
      %v783 = vsel %vm646, %v628, 0
      %v786 = vsel %vm646, %v629, 0
      %v789 = vsel %vm646, %v630, 0
      %v792 = vsel %vm646, %v631, 0
      %v795 = vsel %vm646, %v632, 0
      %v798 = vsel %vm646, %v633, 0
      %v801 = vsel %vm646, %v634, 0
      %vm803 = vcmask 1043456
      %v805 = vsel %vm803, %v645, 0
      %807 = vmatpush.msra.mxu0 0.0
      %808 = vmatpush.msra.mxu0 0.0
      %809 = vmatpush.msra.mxu0 0.0
      %810 = vmatpush.msra.mxu0 0.0
      %811 = vmatpush.msra.mxu0 0.0
      %812 = vmatpush.msra.mxu0 0.0
      %813 = vmatpush.msra.mxu0 0.0
      %814 = vmatpush.msra.mxu0 0.0
      %815 = vmatpush.msra.mxu0 0.0
      %816 = vmatpush.msra.mxu0 0.0
      %817 = vmatpush.msra.mxu0 0.0
      %818 = vmatpush.msra.mxu0 0.0
      %819 = vmatpush.msra.mxu0 %v805
      %820 = vmatpush.msra.mxu0 %v644
      %821 = vmatpush.msra.mxu0 %v643
      %822 = vmatpush.msra.mxu0 %v642
      %823 = vmatmul.f32.gmra.mxu0 %v648
      %v824 = vpop.f32.mrf.mxu0
      %v825 = vadd.f32 0.0, %v824
      %826 = vmatmul.f32.gmra.mxu0 %v651
      %v827 = vpop.f32.mrf.mxu0
      %v828 = vadd.f32 0.0, %v827
      %829 = vmatmul.f32.gmra.mxu0 %v654
      %v830 = vpop.f32.mrf.mxu0
      %v831 = vadd.f32 0.0, %v830
      %832 = vmatmul.f32.gmra.mxu0 %v657
      %v833 = vpop.f32.mrf.mxu0
      %v834 = vadd.f32 0.0, %v833
      %835 = vmatmul.f32.gmra.mxu0 %v660
      %v836 = vpop.f32.mrf.mxu0
      %v837 = vadd.f32 0.0, %v836
      %838 = vmatmul.f32.gmra.mxu0 %v663
      %v839 = vpop.f32.mrf.mxu0
      %v840 = vadd.f32 0.0, %v839
      %841 = vmatmul.f32.gmra.mxu0 %v666
      %v842 = vpop.f32.mrf.mxu0
      %v843 = vadd.f32 0.0, %v842
      %844 = vmatmul.f32.gmra.mxu0 %v669
      %v845 = vpop.f32.mrf.mxu0
      %v846 = vadd.f32 0.0, %v845
      %847 = vmatmul.f32.gmra.mxu0 %v672
      %v848 = vpop.f32.mrf.mxu0
      %v849 = vadd.f32 0.0, %v848
      %850 = vmatmul.f32.gmra.mxu0 %v675
      %v851 = vpop.f32.mrf.mxu0
      %v852 = vadd.f32 0.0, %v851
      %853 = vmatmul.f32.gmra.mxu0 %v678
      %v854 = vpop.f32.mrf.mxu0
      %v855 = vadd.f32 0.0, %v854
      %856 = vmatmul.f32.gmra.mxu0 %v681
      %v857 = vpop.f32.mrf.mxu0
      %v858 = vadd.f32 0.0, %v857
      %859 = vmatmul.f32.gmra.mxu0 %v684
      %v860 = vpop.f32.mrf.mxu0
      %v861 = vadd.f32 0.0, %v860
      %862 = vmatmul.f32.gmra.mxu0 %v687
      %v863 = vpop.f32.mrf.mxu0
      %v864 = vadd.f32 0.0, %v863
      %865 = vmatmul.f32.gmra.mxu0 %v690
      %v866 = vpop.f32.mrf.mxu0
      %v867 = vadd.f32 0.0, %v866
      %868 = vmatmul.f32.gmra.mxu0 %v693
      %v869 = vpop.f32.mrf.mxu0
      %v870 = vadd.f32 0.0, %v869
      %871 = vmatmul.f32.gmra.mxu0 %v696
      %v872 = vpop.f32.mrf.mxu0
      %v873 = vadd.f32 0.0, %v872
      %874 = vmatmul.f32.gmra.mxu0 %v699
      %v875 = vpop.f32.mrf.mxu0
      %v876 = vadd.f32 0.0, %v875
      %877 = vmatmul.f32.gmra.mxu0 %v702
      %v878 = vpop.f32.mrf.mxu0
      %v879 = vadd.f32 0.0, %v878
      %880 = vmatmul.f32.gmra.mxu0 %v705
      %v881 = vpop.f32.mrf.mxu0
      %v882 = vadd.f32 0.0, %v881
      %883 = vmatmul.f32.gmra.mxu0 %v708
      %v884 = vpop.f32.mrf.mxu0
      %v885 = vadd.f32 0.0, %v884
      %886 = vmatmul.f32.gmra.mxu0 %v711
      %v887 = vpop.f32.mrf.mxu0
      %v888 = vadd.f32 0.0, %v887
      %889 = vmatmul.f32.gmra.mxu0 %v714
      %v890 = vpop.f32.mrf.mxu0
      %v891 = vadd.f32 0.0, %v890
      %892 = vmatmul.f32.gmra.mxu0 %v717
      %v893 = vpop.f32.mrf.mxu0
      %v894 = vadd.f32 0.0, %v893
      %895 = vmatmul.f32.gmra.mxu0 %v720
      %v896 = vpop.f32.mrf.mxu0
      %v897 = vadd.f32 0.0, %v896
      %898 = vmatmul.f32.gmra.mxu0 %v723
      %v899 = vpop.f32.mrf.mxu0
      %v900 = vadd.f32 0.0, %v899
      %901 = vmatmul.f32.gmra.mxu0 %v726
      %v902 = vpop.f32.mrf.mxu0
      %v903 = vadd.f32 0.0, %v902
      %904 = vmatmul.f32.gmra.mxu0 %v729
      %v905 = vpop.f32.mrf.mxu0
      %v906 = vadd.f32 0.0, %v905
      %907 = vmatmul.f32.gmra.mxu0 %v732
      %v908 = vpop.f32.mrf.mxu0
      %v909 = vadd.f32 0.0, %v908
      %910 = vmatmul.f32.gmra.mxu0 %v735
      %v911 = vpop.f32.mrf.mxu0
      %v912 = vadd.f32 0.0, %v911
      %913 = vmatmul.f32.gmra.mxu0 %v738
      %v914 = vpop.f32.mrf.mxu0
      %v915 = vadd.f32 0.0, %v914
      %916 = vmatmul.f32.gmra.mxu0 %v741
      %v917 = vpop.f32.mrf.mxu0
      %v918 = vadd.f32 0.0, %v917
      %919 = vmatmul.f32.gmra.mxu0 %v744
      %v920 = vpop.f32.mrf.mxu0
      %v921 = vadd.f32 0.0, %v920
      %922 = vmatmul.f32.gmra.mxu0 %v747
      %v923 = vpop.f32.mrf.mxu0
      %v924 = vadd.f32 0.0, %v923
      %925 = vmatmul.f32.gmra.mxu0 %v750
      %v926 = vpop.f32.mrf.mxu0
      %v927 = vadd.f32 0.0, %v926
      %928 = vmatmul.f32.gmra.mxu0 %v753
      %v929 = vpop.f32.mrf.mxu0
      %v930 = vadd.f32 0.0, %v929
      %931 = vmatmul.f32.gmra.mxu0 %v756
      %v932 = vpop.f32.mrf.mxu0
      %v933 = vadd.f32 0.0, %v932
      %934 = vmatmul.f32.gmra.mxu0 %v759
      %v935 = vpop.f32.mrf.mxu0
      %v936 = vadd.f32 0.0, %v935
      %937 = vmatmul.f32.gmra.mxu0 %v762
      %v938 = vpop.f32.mrf.mxu0
      %v939 = vadd.f32 0.0, %v938
      %940 = vmatmul.f32.gmra.mxu0 %v765
      %v941 = vpop.f32.mrf.mxu0
      %v942 = vadd.f32 0.0, %v941
      %943 = vmatmul.f32.gmra.mxu0 %v768
      %v944 = vpop.f32.mrf.mxu0
      %v945 = vadd.f32 0.0, %v944
      %946 = vmatmul.f32.gmra.mxu0 %v771
      %v947 = vpop.f32.mrf.mxu0
      %v948 = vadd.f32 0.0, %v947
      %949 = vmatmul.f32.gmra.mxu0 %v774
      %v950 = vpop.f32.mrf.mxu0
      %v951 = vadd.f32 0.0, %v950
      %952 = vmatmul.f32.gmra.mxu0 %v777
      %v953 = vpop.f32.mrf.mxu0
      %v954 = vadd.f32 0.0, %v953
      %955 = vmatmul.f32.gmra.mxu0 %v780
      %v956 = vpop.f32.mrf.mxu0
      %v957 = vadd.f32 0.0, %v956
      %958 = vmatmul.f32.gmra.mxu0 %v783
      %v959 = vpop.f32.mrf.mxu0
      %v960 = vadd.f32 0.0, %v959
      %961 = vmatmul.f32.gmra.mxu0 %v786
      %v962 = vpop.f32.mrf.mxu0
      %v963 = vadd.f32 0.0, %v962
      %964 = vmatmul.f32.gmra.mxu0 %v789
      %v965 = vpop.f32.mrf.mxu0
      %v966 = vadd.f32 0.0, %v965
      %967 = vmatmul.f32.gmra.mxu0 %v792
      %v968 = vpop.f32.mrf.mxu0
      %v969 = vadd.f32 0.0, %v968
      %970 = vmatmul.f32.gmra.mxu0 %v795
      %v971 = vpop.f32.mrf.mxu0
      %v972 = vadd.f32 0.0, %v971
      %973 = vmatmul.f32.gmra.mxu0 %v798
      %v974 = vpop.f32.mrf.mxu0
      %v975 = vadd.f32 0.0, %v974
      %976 = vmatmul.f32.gmra.mxu0 %v801
      %v977 = vpop.f32.mrf.mxu0
      %v978 = vadd.f32 0.0, %v977
      %979 = vdwg.mxu0
      %v981 = vsel %vm646, %v581, 0
      %v984 = vsel %vm646, %v582, 0
      %v987 = vsel %vm803, %v640, 0
      %989 = vmatpush.msra.mxu0 0.0
      %990 = vmatpush.msra.mxu0 0.0
      %991 = vmatpush.msra.mxu0 0.0
      %992 = vmatpush.msra.mxu0 0.0
      %993 = vmatpush.msra.mxu0 0.0
      %994 = vmatpush.msra.mxu0 0.0
      %995 = vmatpush.msra.mxu0 0.0
      %996 = vmatpush.msra.mxu0 0.0
      %997 = vmatpush.msra.mxu0 0.0
      %998 = vmatpush.msra.mxu0 0.0
      %999 = vmatpush.msra.mxu0 0.0
      %1000 = vmatpush.msra.mxu0 0.0
      %1001 = vmatpush.msra.mxu0 %v987
      %1002 = vmatpush.msra.mxu0 %v639
      %1003 = vmatpush.msra.mxu0 %v638
      %1004 = vmatpush.msra.mxu0 %v637
      %1005 = vmatmul.f32.gmra.mxu0 %v981
      %v1006 = vpop.f32.mrf.mxu0
      %v1007 = vadd.f32 %v825, %v1006
      %1008 = vmatmul.f32.gmra.mxu0 %v984
      %v1009 = vpop.f32.mrf.mxu0
      %v1010 = vadd.f32 %v828, %v1009
      %1011 = vmatmul.f32.gmra.mxu0 %v648
      %v1012 = vpop.f32.mrf.mxu0
      %v1013 = vadd.f32 %v831, %v1012
      %1014 = vmatmul.f32.gmra.mxu0 %v651
      %v1015 = vpop.f32.mrf.mxu0
      %v1016 = vadd.f32 %v834, %v1015
      %1017 = vmatmul.f32.gmra.mxu0 %v654
      %v1018 = vpop.f32.mrf.mxu0
      %v1019 = vadd.f32 %v837, %v1018
      %1020 = vmatmul.f32.gmra.mxu0 %v657
      %v1021 = vpop.f32.mrf.mxu0
      %v1022 = vadd.f32 %v840, %v1021
      %1023 = vmatmul.f32.gmra.mxu0 %v660
      %v1024 = vpop.f32.mrf.mxu0
      %v1025 = vadd.f32 %v843, %v1024
      %1026 = vmatmul.f32.gmra.mxu0 %v663
      %v1027 = vpop.f32.mrf.mxu0
      %v1028 = vadd.f32 %v846, %v1027
      %1029 = vmatmul.f32.gmra.mxu0 %v666
      %v1030 = vpop.f32.mrf.mxu0
      %v1031 = vadd.f32 %v849, %v1030
      %1032 = vmatmul.f32.gmra.mxu0 %v669
      %v1033 = vpop.f32.mrf.mxu0
      %v1034 = vadd.f32 %v852, %v1033
      %1035 = vmatmul.f32.gmra.mxu0 %v672
      %v1036 = vpop.f32.mrf.mxu0
      %v1037 = vadd.f32 %v855, %v1036
      %1038 = vmatmul.f32.gmra.mxu0 %v675
      %v1039 = vpop.f32.mrf.mxu0
      %v1040 = vadd.f32 %v858, %v1039
      %1041 = vmatmul.f32.gmra.mxu0 %v678
      %v1042 = vpop.f32.mrf.mxu0
      %v1043 = vadd.f32 %v861, %v1042
      %1044 = vmatmul.f32.gmra.mxu0 %v681
      %v1045 = vpop.f32.mrf.mxu0
      %v1046 = vadd.f32 %v864, %v1045
      %1047 = vmatmul.f32.gmra.mxu0 %v684
      %v1048 = vpop.f32.mrf.mxu0
      %v1049 = vadd.f32 %v867, %v1048
      %1050 = vmatmul.f32.gmra.mxu0 %v687
      %v1051 = vpop.f32.mrf.mxu0
      %v1052 = vadd.f32 %v870, %v1051
      %1053 = vmatmul.f32.gmra.mxu0 %v690
      %v1054 = vpop.f32.mrf.mxu0
      %v1055 = vadd.f32 %v873, %v1054
      %1056 = vmatmul.f32.gmra.mxu0 %v693
      %v1057 = vpop.f32.mrf.mxu0
      %v1058 = vadd.f32 %v876, %v1057
      %1059 = vmatmul.f32.gmra.mxu0 %v696
      %v1060 = vpop.f32.mrf.mxu0
      %v1061 = vadd.f32 %v879, %v1060
      %1062 = vmatmul.f32.gmra.mxu0 %v699
      %v1063 = vpop.f32.mrf.mxu0
      %v1064 = vadd.f32 %v882, %v1063
      %1065 = vmatmul.f32.gmra.mxu0 %v702
      %v1066 = vpop.f32.mrf.mxu0
      %v1067 = vadd.f32 %v885, %v1066
      %1068 = vmatmul.f32.gmra.mxu0 %v705
      %v1069 = vpop.f32.mrf.mxu0
      %v1070 = vadd.f32 %v888, %v1069
      %1071 = vmatmul.f32.gmra.mxu0 %v708
      %v1072 = vpop.f32.mrf.mxu0
      %v1073 = vadd.f32 %v891, %v1072
      %1074 = vmatmul.f32.gmra.mxu0 %v711
      %v1075 = vpop.f32.mrf.mxu0
      %v1076 = vadd.f32 %v894, %v1075
      %1077 = vmatmul.f32.gmra.mxu0 %v714
      %v1078 = vpop.f32.mrf.mxu0
      %v1079 = vadd.f32 %v897, %v1078
      %1080 = vmatmul.f32.gmra.mxu0 %v717
      %v1081 = vpop.f32.mrf.mxu0
      %v1082 = vadd.f32 %v900, %v1081
      %1083 = vmatmul.f32.gmra.mxu0 %v720
      %v1084 = vpop.f32.mrf.mxu0
      %v1085 = vadd.f32 %v903, %v1084
      %1086 = vmatmul.f32.gmra.mxu0 %v723
      %v1087 = vpop.f32.mrf.mxu0
      %v1088 = vadd.f32 %v906, %v1087
      %1089 = vmatmul.f32.gmra.mxu0 %v726
      %v1090 = vpop.f32.mrf.mxu0
      %v1091 = vadd.f32 %v909, %v1090
      %1092 = vmatmul.f32.gmra.mxu0 %v729
      %v1093 = vpop.f32.mrf.mxu0
      %v1094 = vadd.f32 %v912, %v1093
      %1095 = vmatmul.f32.gmra.mxu0 %v732
      %v1096 = vpop.f32.mrf.mxu0
      %v1097 = vadd.f32 %v915, %v1096
      %1098 = vmatmul.f32.gmra.mxu0 %v735
      %v1099 = vpop.f32.mrf.mxu0
      %v1100 = vadd.f32 %v918, %v1099
      %1101 = vmatmul.f32.gmra.mxu0 %v738
      %v1102 = vpop.f32.mrf.mxu0
      %v1103 = vadd.f32 %v921, %v1102
      %1104 = vmatmul.f32.gmra.mxu0 %v741
      %v1105 = vpop.f32.mrf.mxu0
      %v1106 = vadd.f32 %v924, %v1105
      %1107 = vmatmul.f32.gmra.mxu0 %v744
      %v1108 = vpop.f32.mrf.mxu0
      %v1109 = vadd.f32 %v927, %v1108
      %1110 = vmatmul.f32.gmra.mxu0 %v747
      %v1111 = vpop.f32.mrf.mxu0
      %v1112 = vadd.f32 %v930, %v1111
      %1113 = vmatmul.f32.gmra.mxu0 %v750
      %v1114 = vpop.f32.mrf.mxu0
      %v1115 = vadd.f32 %v933, %v1114
      %1116 = vmatmul.f32.gmra.mxu0 %v753
      %v1117 = vpop.f32.mrf.mxu0
      %v1118 = vadd.f32 %v936, %v1117
      %1119 = vmatmul.f32.gmra.mxu0 %v756
      %v1120 = vpop.f32.mrf.mxu0
      %v1121 = vadd.f32 %v939, %v1120
      %1122 = vmatmul.f32.gmra.mxu0 %v759
      %v1123 = vpop.f32.mrf.mxu0
      %v1124 = vadd.f32 %v942, %v1123
      %1125 = vmatmul.f32.gmra.mxu0 %v762
      %v1126 = vpop.f32.mrf.mxu0
      %v1127 = vadd.f32 %v945, %v1126
      %1128 = vmatmul.f32.gmra.mxu0 %v765
      %v1129 = vpop.f32.mrf.mxu0
      %v1130 = vadd.f32 %v948, %v1129
      %1131 = vmatmul.f32.gmra.mxu0 %v768
      %v1132 = vpop.f32.mrf.mxu0
      %v1133 = vadd.f32 %v951, %v1132
      %1134 = vmatmul.f32.gmra.mxu0 %v771
      %v1135 = vpop.f32.mrf.mxu0
      %v1136 = vadd.f32 %v954, %v1135
      %1137 = vmatmul.f32.gmra.mxu0 %v774
      %v1138 = vpop.f32.mrf.mxu0
      %v1139 = vadd.f32 %v957, %v1138
      %1140 = vmatmul.f32.gmra.mxu0 %v777
      %v1141 = vpop.f32.mrf.mxu0
      %v1142 = vadd.f32 %v960, %v1141
      %1143 = vmatmul.f32.gmra.mxu0 %v780
      %v1144 = vpop.f32.mrf.mxu0
      %v1145 = vadd.f32 %v963, %v1144
      %1146 = vmatmul.f32.gmra.mxu0 %v783
      %v1147 = vpop.f32.mrf.mxu0
      %v1148 = vadd.f32 %v966, %v1147
      %1149 = vmatmul.f32.gmra.mxu0 %v786
      %v1150 = vpop.f32.mrf.mxu0
      %v1151 = vadd.f32 %v969, %v1150
      %1152 = vmatmul.f32.gmra.mxu0 %v789
      %v1153 = vpop.f32.mrf.mxu0
      %v1154 = vadd.f32 %v972, %v1153
      %1155 = vmatmul.f32.gmra.mxu0 %v792
      %v1156 = vpop.f32.mrf.mxu0
      %v1157 = vadd.f32 %v975, %v1156
      %1158 = vmatmul.f32.gmra.mxu0 %v795
      %v1159 = vpop.f32.mrf.mxu0
      %v1160 = vadd.f32 %v978, %v1159
      %1161 = vdwg.mxu0
      %s1162 = scalar_lea.vmem %s1, 64
      %v1163 = vld [vmem:[%s1162] sm:$0xff]
      %v1164 = vld [vmem:[%s1162 + $0x8] sm:$0xff]
      %v1165 = vld [vmem:[%s1162 + $0x10] sm:$0xff]
      %v1166 = vld [vmem:[%s1162 + $0x18] sm:$0xf]
      %v1168 = vsel %vm646, %v635, 0
      %v1171 = vsel %vm646, %v636, 0
      %v1174 = vsel %vm803, %v1166, 0
      %1176 = vmatpush.msra.mxu0 0.0
      %1177 = vmatpush.msra.mxu0 0.0
      %1178 = vmatpush.msra.mxu0 0.0
      %1179 = vmatpush.msra.mxu0 0.0
      %1180 = vmatpush.msra.mxu0 0.0
      %1181 = vmatpush.msra.mxu0 0.0
      %1182 = vmatpush.msra.mxu0 0.0
      %1183 = vmatpush.msra.mxu0 0.0
      %1184 = vmatpush.msra.mxu0 0.0
      %1185 = vmatpush.msra.mxu0 0.0
      %1186 = vmatpush.msra.mxu0 0.0
      %1187 = vmatpush.msra.mxu0 0.0
      %1188 = vmatpush.msra.mxu0 %v1174
      %1189 = vmatpush.msra.mxu0 %v1165
      %1190 = vmatpush.msra.mxu0 %v1164
      %1191 = vmatpush.msra.mxu0 %v1163
      %1192 = vmatmul.f32.gmra.mxu0 %v654
      %v1193 = vpop.f32.mrf.mxu0
      %v1194 = vadd.f32 0.0, %v1193
      %1195 = vmatmul.f32.gmra.mxu0 %v657
      %v1196 = vpop.f32.mrf.mxu0
      %v1197 = vadd.f32 0.0, %v1196
      %1198 = vmatmul.f32.gmra.mxu0 %v660
      %v1199 = vpop.f32.mrf.mxu0
      %v1200 = vadd.f32 0.0, %v1199
      %1201 = vmatmul.f32.gmra.mxu0 %v663
      %v1202 = vpop.f32.mrf.mxu0
      %v1203 = vadd.f32 0.0, %v1202
      %1204 = vmatmul.f32.gmra.mxu0 %v666
      %v1205 = vpop.f32.mrf.mxu0
      %v1206 = vadd.f32 0.0, %v1205
      %1207 = vmatmul.f32.gmra.mxu0 %v669
      %v1208 = vpop.f32.mrf.mxu0
      %v1209 = vadd.f32 0.0, %v1208
      %1210 = vmatmul.f32.gmra.mxu0 %v672
      %v1211 = vpop.f32.mrf.mxu0
      %v1212 = vadd.f32 0.0, %v1211
      %1213 = vmatmul.f32.gmra.mxu0 %v675
      %v1214 = vpop.f32.mrf.mxu0
      %v1215 = vadd.f32 0.0, %v1214
      %1216 = vmatmul.f32.gmra.mxu0 %v678
      %v1217 = vpop.f32.mrf.mxu0
      %v1218 = vadd.f32 0.0, %v1217
      %1219 = vmatmul.f32.gmra.mxu0 %v681
      %v1220 = vpop.f32.mrf.mxu0
      %v1221 = vadd.f32 0.0, %v1220
      %1222 = vmatmul.f32.gmra.mxu0 %v684
      %v1223 = vpop.f32.mrf.mxu0
      %v1224 = vadd.f32 0.0, %v1223
      %1225 = vmatmul.f32.gmra.mxu0 %v687
      %v1226 = vpop.f32.mrf.mxu0
      %v1227 = vadd.f32 0.0, %v1226
      %1228 = vmatmul.f32.gmra.mxu0 %v690
      %v1229 = vpop.f32.mrf.mxu0
      %v1230 = vadd.f32 0.0, %v1229
      %1231 = vmatmul.f32.gmra.mxu0 %v693
      %v1232 = vpop.f32.mrf.mxu0
      %v1233 = vadd.f32 0.0, %v1232
      %1234 = vmatmul.f32.gmra.mxu0 %v696
      %v1235 = vpop.f32.mrf.mxu0
      %v1236 = vadd.f32 0.0, %v1235
      %1237 = vmatmul.f32.gmra.mxu0 %v699
      %v1238 = vpop.f32.mrf.mxu0
      %v1239 = vadd.f32 0.0, %v1238
      %1240 = vmatmul.f32.gmra.mxu0 %v702
      %v1241 = vpop.f32.mrf.mxu0
      %v1242 = vadd.f32 0.0, %v1241
      %1243 = vmatmul.f32.gmra.mxu0 %v705
      %v1244 = vpop.f32.mrf.mxu0
      %v1245 = vadd.f32 0.0, %v1244
      %1246 = vmatmul.f32.gmra.mxu0 %v708
      %v1247 = vpop.f32.mrf.mxu0
      %v1248 = vadd.f32 0.0, %v1247
      %1249 = vmatmul.f32.gmra.mxu0 %v711
      %v1250 = vpop.f32.mrf.mxu0
      %v1251 = vadd.f32 0.0, %v1250
      %1252 = vmatmul.f32.gmra.mxu0 %v714
      %v1253 = vpop.f32.mrf.mxu0
      %v1254 = vadd.f32 0.0, %v1253
      %1255 = vmatmul.f32.gmra.mxu0 %v717
      %v1256 = vpop.f32.mrf.mxu0
      %v1257 = vadd.f32 0.0, %v1256
      %1258 = vmatmul.f32.gmra.mxu0 %v720
      %v1259 = vpop.f32.mrf.mxu0
      %v1260 = vadd.f32 0.0, %v1259
      %1261 = vmatmul.f32.gmra.mxu0 %v723
      %v1262 = vpop.f32.mrf.mxu0
      %v1263 = vadd.f32 0.0, %v1262
      %1264 = vmatmul.f32.gmra.mxu0 %v726
      %v1265 = vpop.f32.mrf.mxu0
      %v1266 = vadd.f32 0.0, %v1265
      %1267 = vmatmul.f32.gmra.mxu0 %v729
      %v1268 = vpop.f32.mrf.mxu0
      %v1269 = vadd.f32 0.0, %v1268
      %1270 = vmatmul.f32.gmra.mxu0 %v732
      %v1271 = vpop.f32.mrf.mxu0
      %v1272 = vadd.f32 0.0, %v1271
      %1273 = vmatmul.f32.gmra.mxu0 %v735
      %v1274 = vpop.f32.mrf.mxu0
      %v1275 = vadd.f32 0.0, %v1274
      %1276 = vmatmul.f32.gmra.mxu0 %v738
      %v1277 = vpop.f32.mrf.mxu0
      %v1278 = vadd.f32 0.0, %v1277
      %1279 = vmatmul.f32.gmra.mxu0 %v741
      %v1280 = vpop.f32.mrf.mxu0
      %v1281 = vadd.f32 0.0, %v1280
      %1282 = vmatmul.f32.gmra.mxu0 %v744
      %v1283 = vpop.f32.mrf.mxu0
      %v1284 = vadd.f32 0.0, %v1283
      %1285 = vmatmul.f32.gmra.mxu0 %v747
      %v1286 = vpop.f32.mrf.mxu0
      %v1287 = vadd.f32 0.0, %v1286
      %1288 = vmatmul.f32.gmra.mxu0 %v750
      %v1289 = vpop.f32.mrf.mxu0
      %v1290 = vadd.f32 0.0, %v1289
      %1291 = vmatmul.f32.gmra.mxu0 %v753
      %v1292 = vpop.f32.mrf.mxu0
      %v1293 = vadd.f32 0.0, %v1292
      %1294 = vmatmul.f32.gmra.mxu0 %v756
      %v1295 = vpop.f32.mrf.mxu0
      %v1296 = vadd.f32 0.0, %v1295
      %1297 = vmatmul.f32.gmra.mxu0 %v759
      %v1298 = vpop.f32.mrf.mxu0
      %v1299 = vadd.f32 0.0, %v1298
      %1300 = vmatmul.f32.gmra.mxu0 %v762
      %v1301 = vpop.f32.mrf.mxu0
      %v1302 = vadd.f32 0.0, %v1301
      %1303 = vmatmul.f32.gmra.mxu0 %v765
      %v1304 = vpop.f32.mrf.mxu0
      %v1305 = vadd.f32 0.0, %v1304
      %1306 = vmatmul.f32.gmra.mxu0 %v768
      %v1307 = vpop.f32.mrf.mxu0
      %v1308 = vadd.f32 0.0, %v1307
      %1309 = vmatmul.f32.gmra.mxu0 %v771
      %v1310 = vpop.f32.mrf.mxu0
      %v1311 = vadd.f32 0.0, %v1310
      %1312 = vmatmul.f32.gmra.mxu0 %v774
      %v1313 = vpop.f32.mrf.mxu0
      %v1314 = vadd.f32 0.0, %v1313
      %1315 = vmatmul.f32.gmra.mxu0 %v777
      %v1316 = vpop.f32.mrf.mxu0
      %v1317 = vadd.f32 0.0, %v1316
      %1318 = vmatmul.f32.gmra.mxu0 %v780
      %v1319 = vpop.f32.mrf.mxu0
      %v1320 = vadd.f32 0.0, %v1319
      %1321 = vmatmul.f32.gmra.mxu0 %v783
      %v1322 = vpop.f32.mrf.mxu0
      %v1323 = vadd.f32 0.0, %v1322
      %1324 = vmatmul.f32.gmra.mxu0 %v786
      %v1325 = vpop.f32.mrf.mxu0
      %v1326 = vadd.f32 0.0, %v1325
      %1327 = vmatmul.f32.gmra.mxu0 %v789
      %v1328 = vpop.f32.mrf.mxu0
      %v1329 = vadd.f32 0.0, %v1328
      %1330 = vmatmul.f32.gmra.mxu0 %v792
      %v1331 = vpop.f32.mrf.mxu0
      %v1332 = vadd.f32 0.0, %v1331
      %1333 = vmatmul.f32.gmra.mxu0 %v795
      %v1334 = vpop.f32.mrf.mxu0
      %v1335 = vadd.f32 0.0, %v1334
      %1336 = vmatmul.f32.gmra.mxu0 %v798
      %v1337 = vpop.f32.mrf.mxu0
      %v1338 = vadd.f32 0.0, %v1337
      %1339 = vmatmul.f32.gmra.mxu0 %v801
      %v1340 = vpop.f32.mrf.mxu0
      %v1341 = vadd.f32 0.0, %v1340
      %1342 = vmatmul.f32.gmra.mxu0 %v1168
      %v1343 = vpop.f32.mrf.mxu0
      %v1344 = vadd.f32 0.0, %v1343
      %1345 = vmatmul.f32.gmra.mxu0 %v1171
      %v1346 = vpop.f32.mrf.mxu0
      %v1347 = vadd.f32 0.0, %v1346
      %1348 = vdwg.mxu0
      %v1349 = vadd.f32 %v1007, %v1194
      %v1350 = vadd.f32 %v1010, %v1197
      %v1351 = vadd.f32 %v1013, %v1200
      %v1352 = vadd.f32 %v1016, %v1203
      %v1353 = vadd.f32 %v1019, %v1206
      %v1354 = vadd.f32 %v1022, %v1209
      %v1355 = vadd.f32 %v1025, %v1212
      %v1356 = vadd.f32 %v1028, %v1215
      %v1357 = vadd.f32 %v1031, %v1218
      %v1358 = vadd.f32 %v1034, %v1221
      %v1359 = vadd.f32 %v1037, %v1224
      %v1360 = vadd.f32 %v1040, %v1227
      %v1361 = vadd.f32 %v1043, %v1230
      %v1362 = vadd.f32 %v1046, %v1233
      %v1363 = vadd.f32 %v1049, %v1236
      %v1364 = vadd.f32 %v1052, %v1239
      %v1365 = vadd.f32 %v1055, %v1242
      %v1366 = vadd.f32 %v1058, %v1245
      %v1367 = vadd.f32 %v1061, %v1248
      %v1368 = vadd.f32 %v1064, %v1251
      %v1369 = vadd.f32 %v1067, %v1254
      %v1370 = vadd.f32 %v1070, %v1257
      %v1371 = vadd.f32 %v1073, %v1260
      %v1372 = vadd.f32 %v1076, %v1263
      %v1373 = vadd.f32 %v1079, %v1266
      %v1374 = vadd.f32 %v1082, %v1269
      %v1375 = vadd.f32 %v1085, %v1272
      %v1376 = vadd.f32 %v1088, %v1275
      %v1377 = vadd.f32 %v1091, %v1278
      %v1378 = vadd.f32 %v1094, %v1281
      %v1379 = vadd.f32 %v1097, %v1284
      %v1380 = vadd.f32 %v1100, %v1287
      %v1381 = vadd.f32 %v1103, %v1290
      %v1382 = vadd.f32 %v1106, %v1293
      %v1383 = vadd.f32 %v1109, %v1296
      %v1384 = vadd.f32 %v1112, %v1299
      %v1385 = vadd.f32 %v1115, %v1302
      %v1386 = vadd.f32 %v1118, %v1305
      %v1387 = vadd.f32 %v1121, %v1308
      %v1388 = vadd.f32 %v1124, %v1311
      %v1389 = vadd.f32 %v1127, %v1314
      %v1390 = vadd.f32 %v1130, %v1317
      %v1391 = vadd.f32 %v1133, %v1320
      %v1392 = vadd.f32 %v1136, %v1323
      %v1393 = vadd.f32 %v1139, %v1326
      %v1394 = vadd.f32 %v1142, %v1329
      %v1395 = vadd.f32 %v1145, %v1332
      %v1396 = vadd.f32 %v1148, %v1335
      %v1397 = vadd.f32 %v1151, %v1338
      %v1398 = vadd.f32 %v1154, %v1341
      %v1399 = vadd.f32 %v1157, %v1344
      %v1400 = vadd.f32 %v1160, %v1347
      %v1401 = vld [vmem:[%s2] sm:$0x1]
      %v1403 = vperm.slane %v1401, 0
      %v1405 = vadd.f32 %v1349, %v1403
      %v1406 = vadd.f32 %v1350, %v1403
      %v1407 = vadd.f32 %v1351, %v1403
      %v1408 = vadd.f32 %v1352, %v1403
      %v1409 = vadd.f32 %v1353, %v1403
      %v1410 = vadd.f32 %v1354, %v1403
      %v1411 = vadd.f32 %v1355, %v1403
      %v1412 = vadd.f32 %v1356, %v1403
      %v1413 = vadd.f32 %v1357, %v1403
      %v1414 = vadd.f32 %v1358, %v1403
      %v1415 = vadd.f32 %v1359, %v1403
      %v1416 = vadd.f32 %v1360, %v1403
      %v1417 = vadd.f32 %v1361, %v1403
      %v1418 = vadd.f32 %v1362, %v1403
      %v1419 = vadd.f32 %v1363, %v1403
      %v1420 = vadd.f32 %v1364, %v1403
      %v1421 = vadd.f32 %v1365, %v1403
      %v1422 = vadd.f32 %v1366, %v1403
      %v1423 = vadd.f32 %v1367, %v1403
      %v1424 = vadd.f32 %v1368, %v1403
      %v1425 = vadd.f32 %v1369, %v1403
      %v1426 = vadd.f32 %v1370, %v1403
      %v1427 = vadd.f32 %v1371, %v1403
      %v1428 = vadd.f32 %v1372, %v1403
      %v1429 = vadd.f32 %v1373, %v1403
      %v1430 = vadd.f32 %v1374, %v1403
      %v1431 = vadd.f32 %v1375, %v1403
      %v1432 = vadd.f32 %v1376, %v1403
      %v1433 = vadd.f32 %v1377, %v1403
      %v1434 = vadd.f32 %v1378, %v1403
      %v1435 = vadd.f32 %v1379, %v1403
      %v1436 = vadd.f32 %v1380, %v1403
      %v1437 = vadd.f32 %v1381, %v1403
      %v1438 = vadd.f32 %v1382, %v1403
      %v1439 = vadd.f32 %v1383, %v1403
      %v1440 = vadd.f32 %v1384, %v1403
      %v1441 = vadd.f32 %v1385, %v1403
      %v1442 = vadd.f32 %v1386, %v1403
      %v1443 = vadd.f32 %v1387, %v1403
      %v1444 = vadd.f32 %v1388, %v1403
      %v1445 = vadd.f32 %v1389, %v1403
      %v1446 = vadd.f32 %v1390, %v1403
      %v1447 = vadd.f32 %v1391, %v1403
      %v1448 = vadd.f32 %v1392, %v1403
      %v1449 = vadd.f32 %v1393, %v1403
      %v1450 = vadd.f32 %v1394, %v1403
      %v1451 = vadd.f32 %v1395, %v1403
      %v1452 = vadd.f32 %v1396, %v1403
      %v1453 = vadd.f32 %v1397, %v1403
      %v1454 = vadd.f32 %v1398, %v1403
      %v1455 = vadd.f32 %v1399, %v1403
      %v1456 = vadd.f32 %v1400, %v1403
      %v1457 = vmax.f32 %v1405, 0.0
      %v1458 = vmax.f32 %v1406, 0.0
      %v1459 = vmax.f32 %v1407, 0.0
      %v1460 = vmax.f32 %v1408, 0.0
      %v1461 = vmax.f32 %v1409, 0.0
      %v1462 = vmax.f32 %v1410, 0.0
      %v1463 = vmax.f32 %v1411, 0.0
      %v1464 = vmax.f32 %v1412, 0.0
      %v1465 = vmax.f32 %v1413, 0.0
      %v1466 = vmax.f32 %v1414, 0.0
      %v1467 = vmax.f32 %v1415, 0.0
      %v1468 = vmax.f32 %v1416, 0.0
      %v1469 = vmax.f32 %v1417, 0.0
      %v1470 = vmax.f32 %v1418, 0.0
      %v1471 = vmax.f32 %v1419, 0.0
      %v1472 = vmax.f32 %v1420, 0.0
      %v1473 = vmax.f32 %v1421, 0.0
      %v1474 = vmax.f32 %v1422, 0.0
      %v1475 = vmax.f32 %v1423, 0.0
      %v1476 = vmax.f32 %v1424, 0.0
      %v1477 = vmax.f32 %v1425, 0.0
      %v1478 = vmax.f32 %v1426, 0.0
      %v1479 = vmax.f32 %v1427, 0.0
      %v1480 = vmax.f32 %v1428, 0.0
      %v1481 = vmax.f32 %v1429, 0.0
      %v1482 = vmax.f32 %v1430, 0.0
      %v1483 = vmax.f32 %v1431, 0.0
      %v1484 = vmax.f32 %v1432, 0.0
      %v1485 = vmax.f32 %v1433, 0.0
      %v1486 = vmax.f32 %v1434, 0.0
      %v1487 = vmax.f32 %v1435, 0.0
      %v1488 = vmax.f32 %v1436, 0.0
      %v1489 = vmax.f32 %v1437, 0.0
      %v1490 = vmax.f32 %v1438, 0.0
      %v1491 = vmax.f32 %v1439, 0.0
      %v1492 = vmax.f32 %v1440, 0.0
      %v1493 = vmax.f32 %v1441, 0.0
      %v1494 = vmax.f32 %v1442, 0.0
      %v1495 = vmax.f32 %v1443, 0.0
      %v1496 = vmax.f32 %v1444, 0.0
      %v1497 = vmax.f32 %v1445, 0.0
      %v1498 = vmax.f32 %v1446, 0.0
      %v1499 = vmax.f32 %v1447, 0.0
      %v1500 = vmax.f32 %v1448, 0.0
      %v1501 = vmax.f32 %v1449, 0.0
      %v1502 = vmax.f32 %v1450, 0.0
      %v1503 = vmax.f32 %v1451, 0.0
      %v1504 = vmax.f32 %v1452, 0.0
      %v1505 = vmax.f32 %v1453, 0.0
      %v1506 = vmax.f32 %v1454, 0.0
      %v1507 = vmax.f32 %v1455, 0.0
      %v1508 = vmax.f32 %v1456, 0.0
      %v1509 = vld [vmem:[%s3] sm:$0xff]
      %v1510 = vld [vmem:[%s3 + $0x8] sm:$0xff]
      %v1511 = vld [vmem:[%s3 + $0x10] sm:$0xff]
      %v1512 = vld [vmem:[%s3 + $0x18] sm:$0xff]
      %v1513 = vld [vmem:[%s3 + $0x20] sm:$0xff]
      %v1514 = vld [vmem:[%s3 + $0x28] sm:$0xff]
      %v1515 = vld [vmem:[%s3 + $0x30] sm:$0xff]
      %v1516 = vld [vmem:[%s3 + $0x38] sm:$0xff]
      %v1517 = vld [vmem:[%s3 + $0x40] sm:$0xff]
      %v1518 = vld [vmem:[%s3 + $0x48] sm:$0xff]
      %v1519 = vld [vmem:[%s3 + $0x50] sm:$0xff]
      %v1520 = vld [vmem:[%s3 + $0x58] sm:$0xff]
      %v1521 = vld [vmem:[%s3 + $0x60] sm:$0xff]
      %v1522 = vld [vmem:[%s3 + $0x68] sm:$0xff]
      %v1523 = vld [vmem:[%s3 + $0x70] sm:$0xff]
      %v1524 = vld [vmem:[%s3 + $0x78] sm:$0xff]
      %v1525 = vld [vmem:[%s3 + $0x80] sm:$0xff]
      %v1526 = vld [vmem:[%s3 + $0x88] sm:$0xff]
      %v1527 = vld [vmem:[%s3 + $0x90] sm:$0xff]
      %v1528 = vld [vmem:[%s3 + $0x98] sm:$0xff]
      %v1529 = vld [vmem:[%s3 + $0xa0] sm:$0xff]
      %v1530 = vld [vmem:[%s3 + $0xa8] sm:$0xff]
      %v1531 = vld [vmem:[%s3 + $0xb0] sm:$0xff]
      %v1532 = vld [vmem:[%s3 + $0xb8] sm:$0xff]
      %v1533 = vld [vmem:[%s3 + $0xc0] sm:$0xff]
      %v1534 = vld [vmem:[%s3 + $0xc8] sm:$0xff]
      %s1535 = scalar_lea.vmem %s3, 208
      %v1536 = vld [vmem:[%s1535] sm:$0xff]
      %v1537 = vld [vmem:[%s1535 + $0x8] sm:$0xff]
      %v1538 = vld [vmem:[%s1535 + $0x10] sm:$0xff]
      %v1539 = vld [vmem:[%s1535 + $0x18] sm:$0xff]
      %v1540 = vld [vmem:[%s1535 + $0x20] sm:$0xff]
      %v1541 = vld [vmem:[%s1535 + $0x28] sm:$0xff]
      %v1542 = vld [vmem:[%s1535 + $0x30] sm:$0xff]
      %v1543 = vld [vmem:[%s1535 + $0x38] sm:$0xff]
      %v1544 = vld [vmem:[%s1535 + $0x40] sm:$0xff]
      %v1545 = vld [vmem:[%s1535 + $0x48] sm:$0xff]
      %v1546 = vld [vmem:[%s1535 + $0x50] sm:$0xff]
      %v1547 = vld [vmem:[%s1535 + $0x58] sm:$0xff]
      %v1548 = vld [vmem:[%s1535 + $0x60] sm:$0xff]
      %v1549 = vld [vmem:[%s1535 + $0x68] sm:$0xff]
      %v1550 = vld [vmem:[%s1535 + $0x70] sm:$0xff]
      %v1551 = vld [vmem:[%s1535 + $0x78] sm:$0xff]
      %v1552 = vld [vmem:[%s1535 + $0x80] sm:$0xff]
      %v1553 = vld [vmem:[%s1535 + $0x88] sm:$0xff]
      %v1554 = vld [vmem:[%s1535 + $0x90] sm:$0xff]
      %v1555 = vld [vmem:[%s1535 + $0x98] sm:$0xff]
      %v1556 = vld [vmem:[%s1535 + $0xa0] sm:$0xff]
      %v1557 = vld [vmem:[%s1535 + $0xa8] sm:$0xff]
      %v1558 = vld [vmem:[%s1535 + $0xb0] sm:$0xff]
      %v1559 = vld [vmem:[%s1535 + $0xb8] sm:$0xff]
      %v1560 = vld [vmem:[%s1535 + $0xc0] sm:$0xff]
      %v1561 = vld [vmem:[%s1535 + $0xc8] sm:$0xff]
      %vm1562 = vcmask 850944
      %v1564 = vsel %vm1562, %v1459, 0
      %v1567 = vsel %vm1562, %v1460, 0
      %v1570 = vsel %vm1562, %v1461, 0
      %v1573 = vsel %vm1562, %v1462, 0
      %v1576 = vsel %vm1562, %v1463, 0
      %v1579 = vsel %vm1562, %v1464, 0
      %v1582 = vsel %vm1562, %v1465, 0
      %v1585 = vsel %vm1562, %v1466, 0
      %v1588 = vsel %vm1562, %v1467, 0
      %v1591 = vsel %vm1562, %v1468, 0
      %v1594 = vsel %vm1562, %v1469, 0
      %v1597 = vsel %vm1562, %v1470, 0
      %v1600 = vsel %vm1562, %v1471, 0
      %v1603 = vsel %vm1562, %v1472, 0
      %v1606 = vsel %vm1562, %v1473, 0
      %v1609 = vsel %vm1562, %v1474, 0
      %v1612 = vsel %vm1562, %v1475, 0
      %v1615 = vsel %vm1562, %v1476, 0
      %v1618 = vsel %vm1562, %v1477, 0
      %v1621 = vsel %vm1562, %v1478, 0
      %v1624 = vsel %vm1562, %v1479, 0
      %v1627 = vsel %vm1562, %v1480, 0
      %v1630 = vsel %vm1562, %v1481, 0
      %v1633 = vsel %vm1562, %v1482, 0
      %v1636 = vsel %vm1562, %v1483, 0
      %v1639 = vsel %vm1562, %v1484, 0
      %v1642 = vsel %vm1562, %v1485, 0
      %v1645 = vsel %vm1562, %v1486, 0
      %v1648 = vsel %vm1562, %v1487, 0
      %v1651 = vsel %vm1562, %v1488, 0
      %v1654 = vsel %vm1562, %v1489, 0
      %v1657 = vsel %vm1562, %v1490, 0
      %v1660 = vsel %vm1562, %v1491, 0
      %v1663 = vsel %vm1562, %v1492, 0
      %v1666 = vsel %vm1562, %v1493, 0
      %v1669 = vsel %vm1562, %v1494, 0
      %v1672 = vsel %vm1562, %v1495, 0
      %v1675 = vsel %vm1562, %v1496, 0
      %v1678 = vsel %vm1562, %v1497, 0
      %v1681 = vsel %vm1562, %v1498, 0
      %v1684 = vsel %vm1562, %v1499, 0
      %v1687 = vsel %vm1562, %v1500, 0
      %v1690 = vsel %vm1562, %v1501, 0
      %v1693 = vsel %vm1562, %v1502, 0
      %v1696 = vsel %vm1562, %v1503, 0
      %v1699 = vsel %vm1562, %v1504, 0
      %v1702 = vsel %vm1562, %v1505, 0
      %v1705 = vsel %vm1562, %v1506, 0
      %1707 = vmatpush.msra.mxu0 0.0
      %1708 = vmatpush.msra.mxu0 0.0
      %1709 = vmatpush.msra.mxu0 0.0
      %1710 = vmatpush.msra.mxu0 %v1560
      %1711 = vmatpush.msra.mxu0 %v1558
      %1712 = vmatpush.msra.mxu0 %v1556
      %1713 = vmatpush.msra.mxu0 %v1554
      %1714 = vmatpush.msra.mxu0 %v1552
      %1715 = vmatpush.msra.mxu0 %v1550
      %1716 = vmatpush.msra.mxu0 %v1548
      %1717 = vmatpush.msra.mxu0 %v1546
      %1718 = vmatpush.msra.mxu0 %v1544
      %1719 = vmatpush.msra.mxu0 %v1542
      %1720 = vmatpush.msra.mxu0 %v1540
      %1721 = vmatpush.msra.mxu0 %v1538
      %1722 = vmatpush.msra.mxu0 %v1536
      %1723 = vmatmul.f32.gmra.mxu0 %v1564
      %v1724 = vpop.f32.mrf.mxu0
      %v1725 = vadd.f32 0.0, %v1724
      %1726 = vmatmul.f32.gmra.mxu0 %v1567
      %v1727 = vpop.f32.mrf.mxu0
      %v1728 = vadd.f32 0.0, %v1727
      %1729 = vmatmul.f32.gmra.mxu0 %v1570
      %v1730 = vpop.f32.mrf.mxu0
      %v1731 = vadd.f32 0.0, %v1730
      %1732 = vmatmul.f32.gmra.mxu0 %v1573
      %v1733 = vpop.f32.mrf.mxu0
      %v1734 = vadd.f32 0.0, %v1733
      %1735 = vmatmul.f32.gmra.mxu0 %v1576
      %v1736 = vpop.f32.mrf.mxu0
      %v1737 = vadd.f32 0.0, %v1736
      %1738 = vmatmul.f32.gmra.mxu0 %v1579
      %v1739 = vpop.f32.mrf.mxu0
      %v1740 = vadd.f32 0.0, %v1739
      %1741 = vmatmul.f32.gmra.mxu0 %v1582
      %v1742 = vpop.f32.mrf.mxu0
      %v1743 = vadd.f32 0.0, %v1742
      %1744 = vmatmul.f32.gmra.mxu0 %v1585
      %v1745 = vpop.f32.mrf.mxu0
      %v1746 = vadd.f32 0.0, %v1745
      %1747 = vmatmul.f32.gmra.mxu0 %v1588
      %v1748 = vpop.f32.mrf.mxu0
      %v1749 = vadd.f32 0.0, %v1748
      %1750 = vmatmul.f32.gmra.mxu0 %v1591
      %v1751 = vpop.f32.mrf.mxu0
      %v1752 = vadd.f32 0.0, %v1751
      %1753 = vmatmul.f32.gmra.mxu0 %v1594
      %v1754 = vpop.f32.mrf.mxu0
      %v1755 = vadd.f32 0.0, %v1754
      %1756 = vmatmul.f32.gmra.mxu0 %v1597
      %v1757 = vpop.f32.mrf.mxu0
      %v1758 = vadd.f32 0.0, %v1757
      %1759 = vmatmul.f32.gmra.mxu0 %v1600
      %v1760 = vpop.f32.mrf.mxu0
      %v1761 = vadd.f32 0.0, %v1760
      %1762 = vmatmul.f32.gmra.mxu0 %v1603
      %v1763 = vpop.f32.mrf.mxu0
      %v1764 = vadd.f32 0.0, %v1763
      %1765 = vmatmul.f32.gmra.mxu0 %v1606
      %v1766 = vpop.f32.mrf.mxu0
      %v1767 = vadd.f32 0.0, %v1766
      %1768 = vmatmul.f32.gmra.mxu0 %v1609
      %v1769 = vpop.f32.mrf.mxu0
      %v1770 = vadd.f32 0.0, %v1769
      %1771 = vmatmul.f32.gmra.mxu0 %v1612
      %v1772 = vpop.f32.mrf.mxu0
      %v1773 = vadd.f32 0.0, %v1772
      %1774 = vmatmul.f32.gmra.mxu0 %v1615
      %v1775 = vpop.f32.mrf.mxu0
      %v1776 = vadd.f32 0.0, %v1775
      %1777 = vmatmul.f32.gmra.mxu0 %v1618
      %v1778 = vpop.f32.mrf.mxu0
      %v1779 = vadd.f32 0.0, %v1778
      %1780 = vmatmul.f32.gmra.mxu0 %v1621
      %v1781 = vpop.f32.mrf.mxu0
      %v1782 = vadd.f32 0.0, %v1781
      %1783 = vmatmul.f32.gmra.mxu0 %v1624
      %v1784 = vpop.f32.mrf.mxu0
      %v1785 = vadd.f32 0.0, %v1784
      %1786 = vmatmul.f32.gmra.mxu0 %v1627
      %v1787 = vpop.f32.mrf.mxu0
      %v1788 = vadd.f32 0.0, %v1787
      %1789 = vmatmul.f32.gmra.mxu0 %v1630
      %v1790 = vpop.f32.mrf.mxu0
      %v1791 = vadd.f32 0.0, %v1790
      %1792 = vmatmul.f32.gmra.mxu0 %v1633
      %v1793 = vpop.f32.mrf.mxu0
      %v1794 = vadd.f32 0.0, %v1793
      %1795 = vmatmul.f32.gmra.mxu0 %v1636
      %v1796 = vpop.f32.mrf.mxu0
      %v1797 = vadd.f32 0.0, %v1796
      %1798 = vmatmul.f32.gmra.mxu0 %v1639
      %v1799 = vpop.f32.mrf.mxu0
      %v1800 = vadd.f32 0.0, %v1799
      %1801 = vmatmul.f32.gmra.mxu0 %v1642
      %v1802 = vpop.f32.mrf.mxu0
      %v1803 = vadd.f32 0.0, %v1802
      %1804 = vmatmul.f32.gmra.mxu0 %v1645
      %v1805 = vpop.f32.mrf.mxu0
      %v1806 = vadd.f32 0.0, %v1805
      %1807 = vmatmul.f32.gmra.mxu0 %v1648
      %v1808 = vpop.f32.mrf.mxu0
      %v1809 = vadd.f32 0.0, %v1808
      %1810 = vmatmul.f32.gmra.mxu0 %v1651
      %v1811 = vpop.f32.mrf.mxu0
      %v1812 = vadd.f32 0.0, %v1811
      %1813 = vmatmul.f32.gmra.mxu0 %v1654
      %v1814 = vpop.f32.mrf.mxu0
      %v1815 = vadd.f32 0.0, %v1814
      %1816 = vmatmul.f32.gmra.mxu0 %v1657
      %v1817 = vpop.f32.mrf.mxu0
      %v1818 = vadd.f32 0.0, %v1817
      %1819 = vmatmul.f32.gmra.mxu0 %v1660
      %v1820 = vpop.f32.mrf.mxu0
      %v1821 = vadd.f32 0.0, %v1820
      %1822 = vmatmul.f32.gmra.mxu0 %v1663
      %v1823 = vpop.f32.mrf.mxu0
      %v1824 = vadd.f32 0.0, %v1823
      %1825 = vmatmul.f32.gmra.mxu0 %v1666
      %v1826 = vpop.f32.mrf.mxu0
      %v1827 = vadd.f32 0.0, %v1826
      %1828 = vmatmul.f32.gmra.mxu0 %v1669
      %v1829 = vpop.f32.mrf.mxu0
      %v1830 = vadd.f32 0.0, %v1829
      %1831 = vmatmul.f32.gmra.mxu0 %v1672
      %v1832 = vpop.f32.mrf.mxu0
      %v1833 = vadd.f32 0.0, %v1832
      %1834 = vmatmul.f32.gmra.mxu0 %v1675
      %v1835 = vpop.f32.mrf.mxu0
      %v1836 = vadd.f32 0.0, %v1835
      %1837 = vmatmul.f32.gmra.mxu0 %v1678
      %v1838 = vpop.f32.mrf.mxu0
      %v1839 = vadd.f32 0.0, %v1838
      %1840 = vmatmul.f32.gmra.mxu0 %v1681
      %v1841 = vpop.f32.mrf.mxu0
      %v1842 = vadd.f32 0.0, %v1841
      %1843 = vmatmul.f32.gmra.mxu0 %v1684
      %v1844 = vpop.f32.mrf.mxu0
      %v1845 = vadd.f32 0.0, %v1844
      %1846 = vmatmul.f32.gmra.mxu0 %v1687
      %v1847 = vpop.f32.mrf.mxu0
      %v1848 = vadd.f32 0.0, %v1847
      %1849 = vmatmul.f32.gmra.mxu0 %v1690
      %v1850 = vpop.f32.mrf.mxu0
      %v1851 = vadd.f32 0.0, %v1850
      %1852 = vmatmul.f32.gmra.mxu0 %v1693
      %v1853 = vpop.f32.mrf.mxu0
      %v1854 = vadd.f32 0.0, %v1853
      %1855 = vmatmul.f32.gmra.mxu0 %v1696
      %v1856 = vpop.f32.mrf.mxu0
      %v1857 = vadd.f32 0.0, %v1856
      %1858 = vmatmul.f32.gmra.mxu0 %v1699
      %v1859 = vpop.f32.mrf.mxu0
      %v1860 = vadd.f32 0.0, %v1859
      %1861 = vmatmul.f32.gmra.mxu0 %v1702
      %v1862 = vpop.f32.mrf.mxu0
      %v1863 = vadd.f32 0.0, %v1862
      %1864 = vmatmul.f32.gmra.mxu0 %v1705
      %v1865 = vpop.f32.mrf.mxu0
      %v1866 = vadd.f32 0.0, %v1865
      %1867 = vdwg.mxu0
      %1868 = vmatpush.msra.mxu0 0.0
      %1869 = vmatpush.msra.mxu0 0.0
      %1870 = vmatpush.msra.mxu0 0.0
      %1871 = vmatpush.msra.mxu0 %v1561
      %1872 = vmatpush.msra.mxu0 %v1559
      %1873 = vmatpush.msra.mxu0 %v1557
      %1874 = vmatpush.msra.mxu0 %v1555
      %1875 = vmatpush.msra.mxu0 %v1553
      %1876 = vmatpush.msra.mxu0 %v1551
      %1877 = vmatpush.msra.mxu0 %v1549
      %1878 = vmatpush.msra.mxu0 %v1547
      %1879 = vmatpush.msra.mxu0 %v1545
      %1880 = vmatpush.msra.mxu0 %v1543
      %1881 = vmatpush.msra.mxu0 %v1541
      %1882 = vmatpush.msra.mxu0 %v1539
      %1883 = vmatpush.msra.mxu0 %v1537
      %1884 = vmatmul.f32.gmra.mxu0 %v1564
      %v1885 = vpop.f32.mrf.mxu0
      %v1886 = vadd.f32 0.0, %v1885
      %1887 = vmatmul.f32.gmra.mxu0 %v1567
      %v1888 = vpop.f32.mrf.mxu0
      %v1889 = vadd.f32 0.0, %v1888
      %1890 = vmatmul.f32.gmra.mxu0 %v1570
      %v1891 = vpop.f32.mrf.mxu0
      %v1892 = vadd.f32 0.0, %v1891
      %1893 = vmatmul.f32.gmra.mxu0 %v1573
      %v1894 = vpop.f32.mrf.mxu0
      %v1895 = vadd.f32 0.0, %v1894
      %1896 = vmatmul.f32.gmra.mxu0 %v1576
      %v1897 = vpop.f32.mrf.mxu0
      %v1898 = vadd.f32 0.0, %v1897
      %1899 = vmatmul.f32.gmra.mxu0 %v1579
      %v1900 = vpop.f32.mrf.mxu0
      %v1901 = vadd.f32 0.0, %v1900
      %1902 = vmatmul.f32.gmra.mxu0 %v1582
      %v1903 = vpop.f32.mrf.mxu0
      %v1904 = vadd.f32 0.0, %v1903
      %1905 = vmatmul.f32.gmra.mxu0 %v1585
      %v1906 = vpop.f32.mrf.mxu0
      %v1907 = vadd.f32 0.0, %v1906
      %1908 = vmatmul.f32.gmra.mxu0 %v1588
      %v1909 = vpop.f32.mrf.mxu0
      %v1910 = vadd.f32 0.0, %v1909
      %1911 = vmatmul.f32.gmra.mxu0 %v1591
      %v1912 = vpop.f32.mrf.mxu0
      %v1913 = vadd.f32 0.0, %v1912
      %1914 = vmatmul.f32.gmra.mxu0 %v1594
      %v1915 = vpop.f32.mrf.mxu0
      %v1916 = vadd.f32 0.0, %v1915
      %1917 = vmatmul.f32.gmra.mxu0 %v1597
      %v1918 = vpop.f32.mrf.mxu0
      %v1919 = vadd.f32 0.0, %v1918
      %1920 = vmatmul.f32.gmra.mxu0 %v1600
      %v1921 = vpop.f32.mrf.mxu0
      %v1922 = vadd.f32 0.0, %v1921
      %1923 = vmatmul.f32.gmra.mxu0 %v1603
      %v1924 = vpop.f32.mrf.mxu0
      %v1925 = vadd.f32 0.0, %v1924
      %1926 = vmatmul.f32.gmra.mxu0 %v1606
      %v1927 = vpop.f32.mrf.mxu0
      %v1928 = vadd.f32 0.0, %v1927
      %1929 = vmatmul.f32.gmra.mxu0 %v1609
      %v1930 = vpop.f32.mrf.mxu0
      %v1931 = vadd.f32 0.0, %v1930
      %1932 = vmatmul.f32.gmra.mxu0 %v1612
      %v1933 = vpop.f32.mrf.mxu0
      %v1934 = vadd.f32 0.0, %v1933
      %1935 = vmatmul.f32.gmra.mxu0 %v1615
      %v1936 = vpop.f32.mrf.mxu0
      %v1937 = vadd.f32 0.0, %v1936
      %1938 = vmatmul.f32.gmra.mxu0 %v1618
      %v1939 = vpop.f32.mrf.mxu0
      %v1940 = vadd.f32 0.0, %v1939
      %1941 = vmatmul.f32.gmra.mxu0 %v1621
      %v1942 = vpop.f32.mrf.mxu0
      %v1943 = vadd.f32 0.0, %v1942
      %1944 = vmatmul.f32.gmra.mxu0 %v1624
      %v1945 = vpop.f32.mrf.mxu0
      %v1946 = vadd.f32 0.0, %v1945
      %1947 = vmatmul.f32.gmra.mxu0 %v1627
      %v1948 = vpop.f32.mrf.mxu0
      %v1949 = vadd.f32 0.0, %v1948
      %1950 = vmatmul.f32.gmra.mxu0 %v1630
      %v1951 = vpop.f32.mrf.mxu0
      %v1952 = vadd.f32 0.0, %v1951
      %1953 = vmatmul.f32.gmra.mxu0 %v1633
      %v1954 = vpop.f32.mrf.mxu0
      %v1955 = vadd.f32 0.0, %v1954
      %1956 = vmatmul.f32.gmra.mxu0 %v1636
      %v1957 = vpop.f32.mrf.mxu0
      %v1958 = vadd.f32 0.0, %v1957
      %1959 = vmatmul.f32.gmra.mxu0 %v1639
      %v1960 = vpop.f32.mrf.mxu0
      %v1961 = vadd.f32 0.0, %v1960
      %1962 = vmatmul.f32.gmra.mxu0 %v1642
      %v1963 = vpop.f32.mrf.mxu0
      %v1964 = vadd.f32 0.0, %v1963
      %1965 = vmatmul.f32.gmra.mxu0 %v1645
      %v1966 = vpop.f32.mrf.mxu0
      %v1967 = vadd.f32 0.0, %v1966
      %1968 = vmatmul.f32.gmra.mxu0 %v1648
      %v1969 = vpop.f32.mrf.mxu0
      %v1970 = vadd.f32 0.0, %v1969
      %1971 = vmatmul.f32.gmra.mxu0 %v1651
      %v1972 = vpop.f32.mrf.mxu0
      %v1973 = vadd.f32 0.0, %v1972
      %1974 = vmatmul.f32.gmra.mxu0 %v1654
      %v1975 = vpop.f32.mrf.mxu0
      %v1976 = vadd.f32 0.0, %v1975
      %1977 = vmatmul.f32.gmra.mxu0 %v1657
      %v1978 = vpop.f32.mrf.mxu0
      %v1979 = vadd.f32 0.0, %v1978
      %1980 = vmatmul.f32.gmra.mxu0 %v1660
      %v1981 = vpop.f32.mrf.mxu0
      %v1982 = vadd.f32 0.0, %v1981
      %1983 = vmatmul.f32.gmra.mxu0 %v1663
      %v1984 = vpop.f32.mrf.mxu0
      %v1985 = vadd.f32 0.0, %v1984
      %1986 = vmatmul.f32.gmra.mxu0 %v1666
      %v1987 = vpop.f32.mrf.mxu0
      %v1988 = vadd.f32 0.0, %v1987
      %1989 = vmatmul.f32.gmra.mxu0 %v1669
      %v1990 = vpop.f32.mrf.mxu0
      %v1991 = vadd.f32 0.0, %v1990
      %1992 = vmatmul.f32.gmra.mxu0 %v1672
      %v1993 = vpop.f32.mrf.mxu0
      %v1994 = vadd.f32 0.0, %v1993
      %1995 = vmatmul.f32.gmra.mxu0 %v1675
      %v1996 = vpop.f32.mrf.mxu0
      %v1997 = vadd.f32 0.0, %v1996
      %1998 = vmatmul.f32.gmra.mxu0 %v1678
      %v1999 = vpop.f32.mrf.mxu0
      %v2000 = vadd.f32 0.0, %v1999
      %2001 = vmatmul.f32.gmra.mxu0 %v1681
      %v2002 = vpop.f32.mrf.mxu0
      %v2003 = vadd.f32 0.0, %v2002
      %2004 = vmatmul.f32.gmra.mxu0 %v1684
      %v2005 = vpop.f32.mrf.mxu0
      %v2006 = vadd.f32 0.0, %v2005
      %2007 = vmatmul.f32.gmra.mxu0 %v1687
      %v2008 = vpop.f32.mrf.mxu0
      %v2009 = vadd.f32 0.0, %v2008
      %2010 = vmatmul.f32.gmra.mxu0 %v1690
      %v2011 = vpop.f32.mrf.mxu0
      %v2012 = vadd.f32 0.0, %v2011
      %2013 = vmatmul.f32.gmra.mxu0 %v1693
      %v2014 = vpop.f32.mrf.mxu0
      %v2015 = vadd.f32 0.0, %v2014
      %2016 = vmatmul.f32.gmra.mxu0 %v1696
      %v2017 = vpop.f32.mrf.mxu0
      %v2018 = vadd.f32 0.0, %v2017
      %2019 = vmatmul.f32.gmra.mxu0 %v1699
      %v2020 = vpop.f32.mrf.mxu0
      %v2021 = vadd.f32 0.0, %v2020
      %2022 = vmatmul.f32.gmra.mxu0 %v1702
      %v2023 = vpop.f32.mrf.mxu0
      %v2024 = vadd.f32 0.0, %v2023
      %2025 = vmatmul.f32.gmra.mxu0 %v1705
      %v2026 = vpop.f32.mrf.mxu0
      %v2027 = vadd.f32 0.0, %v2026
      %2028 = vdwg.mxu0
      %v2030 = vsel %vm1562, %v1457, 0
      %v2033 = vsel %vm1562, %v1458, 0
      %2035 = vmatpush.msra.mxu0 0.0
      %2036 = vmatpush.msra.mxu0 0.0
      %2037 = vmatpush.msra.mxu0 0.0
      %2038 = vmatpush.msra.mxu0 %v1533
      %2039 = vmatpush.msra.mxu0 %v1531
      %2040 = vmatpush.msra.mxu0 %v1529
      %2041 = vmatpush.msra.mxu0 %v1527
      %2042 = vmatpush.msra.mxu0 %v1525
      %2043 = vmatpush.msra.mxu0 %v1523
      %2044 = vmatpush.msra.mxu0 %v1521
      %2045 = vmatpush.msra.mxu0 %v1519
      %2046 = vmatpush.msra.mxu0 %v1517
      %2047 = vmatpush.msra.mxu0 %v1515
      %2048 = vmatpush.msra.mxu0 %v1513
      %2049 = vmatpush.msra.mxu0 %v1511
      %2050 = vmatpush.msra.mxu0 %v1509
      %2051 = vmatmul.f32.gmra.mxu0 %v2030
      %v2052 = vpop.f32.mrf.mxu0
      %v2053 = vadd.f32 %v1725, %v2052
      %2054 = vmatmul.f32.gmra.mxu0 %v2033
      %v2055 = vpop.f32.mrf.mxu0
      %v2056 = vadd.f32 %v1728, %v2055
      %2057 = vmatmul.f32.gmra.mxu0 %v1564
      %v2058 = vpop.f32.mrf.mxu0
      %v2059 = vadd.f32 %v1731, %v2058
      %2060 = vmatmul.f32.gmra.mxu0 %v1567
      %v2061 = vpop.f32.mrf.mxu0
      %v2062 = vadd.f32 %v1734, %v2061
      %2063 = vmatmul.f32.gmra.mxu0 %v1570
      %v2064 = vpop.f32.mrf.mxu0
      %v2065 = vadd.f32 %v1737, %v2064
      %2066 = vmatmul.f32.gmra.mxu0 %v1573
      %v2067 = vpop.f32.mrf.mxu0
      %v2068 = vadd.f32 %v1740, %v2067
      %2069 = vmatmul.f32.gmra.mxu0 %v1576
      %v2070 = vpop.f32.mrf.mxu0
      %v2071 = vadd.f32 %v1743, %v2070
      %2072 = vmatmul.f32.gmra.mxu0 %v1579
      %v2073 = vpop.f32.mrf.mxu0
      %v2074 = vadd.f32 %v1746, %v2073
      %2075 = vmatmul.f32.gmra.mxu0 %v1582
      %v2076 = vpop.f32.mrf.mxu0
      %v2077 = vadd.f32 %v1749, %v2076
      %2078 = vmatmul.f32.gmra.mxu0 %v1585
      %v2079 = vpop.f32.mrf.mxu0
      %v2080 = vadd.f32 %v1752, %v2079
      %2081 = vmatmul.f32.gmra.mxu0 %v1588
      %v2082 = vpop.f32.mrf.mxu0
      %v2083 = vadd.f32 %v1755, %v2082
      %2084 = vmatmul.f32.gmra.mxu0 %v1591
      %v2085 = vpop.f32.mrf.mxu0
      %v2086 = vadd.f32 %v1758, %v2085
      %2087 = vmatmul.f32.gmra.mxu0 %v1594
      %v2088 = vpop.f32.mrf.mxu0
      %v2089 = vadd.f32 %v1761, %v2088
      %2090 = vmatmul.f32.gmra.mxu0 %v1597
      %v2091 = vpop.f32.mrf.mxu0
      %v2092 = vadd.f32 %v1764, %v2091
      %2093 = vmatmul.f32.gmra.mxu0 %v1600
      %v2094 = vpop.f32.mrf.mxu0
      %v2095 = vadd.f32 %v1767, %v2094
      %2096 = vmatmul.f32.gmra.mxu0 %v1603
      %v2097 = vpop.f32.mrf.mxu0
      %v2098 = vadd.f32 %v1770, %v2097
      %2099 = vmatmul.f32.gmra.mxu0 %v1606
      %v2100 = vpop.f32.mrf.mxu0
      %v2101 = vadd.f32 %v1773, %v2100
      %2102 = vmatmul.f32.gmra.mxu0 %v1609
      %v2103 = vpop.f32.mrf.mxu0
      %v2104 = vadd.f32 %v1776, %v2103
      %2105 = vmatmul.f32.gmra.mxu0 %v1612
      %v2106 = vpop.f32.mrf.mxu0
      %v2107 = vadd.f32 %v1779, %v2106
      %2108 = vmatmul.f32.gmra.mxu0 %v1615
      %v2109 = vpop.f32.mrf.mxu0
      %v2110 = vadd.f32 %v1782, %v2109
      %2111 = vmatmul.f32.gmra.mxu0 %v1618
      %v2112 = vpop.f32.mrf.mxu0
      %v2113 = vadd.f32 %v1785, %v2112
      %2114 = vmatmul.f32.gmra.mxu0 %v1621
      %v2115 = vpop.f32.mrf.mxu0
      %v2116 = vadd.f32 %v1788, %v2115
      %2117 = vmatmul.f32.gmra.mxu0 %v1624
      %v2118 = vpop.f32.mrf.mxu0
      %v2119 = vadd.f32 %v1791, %v2118
      %2120 = vmatmul.f32.gmra.mxu0 %v1627
      %v2121 = vpop.f32.mrf.mxu0
      %v2122 = vadd.f32 %v1794, %v2121
      %2123 = vmatmul.f32.gmra.mxu0 %v1630
      %v2124 = vpop.f32.mrf.mxu0
      %v2125 = vadd.f32 %v1797, %v2124
      %2126 = vmatmul.f32.gmra.mxu0 %v1633
      %v2127 = vpop.f32.mrf.mxu0
      %v2128 = vadd.f32 %v1800, %v2127
      %2129 = vmatmul.f32.gmra.mxu0 %v1636
      %v2130 = vpop.f32.mrf.mxu0
      %v2131 = vadd.f32 %v1803, %v2130
      %2132 = vmatmul.f32.gmra.mxu0 %v1639
      %v2133 = vpop.f32.mrf.mxu0
      %v2134 = vadd.f32 %v1806, %v2133
      %2135 = vmatmul.f32.gmra.mxu0 %v1642
      %v2136 = vpop.f32.mrf.mxu0
      %v2137 = vadd.f32 %v1809, %v2136
      %2138 = vmatmul.f32.gmra.mxu0 %v1645
      %v2139 = vpop.f32.mrf.mxu0
      %v2140 = vadd.f32 %v1812, %v2139
      %2141 = vmatmul.f32.gmra.mxu0 %v1648
      %v2142 = vpop.f32.mrf.mxu0
      %v2143 = vadd.f32 %v1815, %v2142
      %2144 = vmatmul.f32.gmra.mxu0 %v1651
      %v2145 = vpop.f32.mrf.mxu0
      %v2146 = vadd.f32 %v1818, %v2145
      %2147 = vmatmul.f32.gmra.mxu0 %v1654
      %v2148 = vpop.f32.mrf.mxu0
      %v2149 = vadd.f32 %v1821, %v2148
      %2150 = vmatmul.f32.gmra.mxu0 %v1657
      %v2151 = vpop.f32.mrf.mxu0
      %v2152 = vadd.f32 %v1824, %v2151
      %2153 = vmatmul.f32.gmra.mxu0 %v1660
      %v2154 = vpop.f32.mrf.mxu0
      %v2155 = vadd.f32 %v1827, %v2154
      %2156 = vmatmul.f32.gmra.mxu0 %v1663
      %v2157 = vpop.f32.mrf.mxu0
      %v2158 = vadd.f32 %v1830, %v2157
      %2159 = vmatmul.f32.gmra.mxu0 %v1666
      %v2160 = vpop.f32.mrf.mxu0
      %v2161 = vadd.f32 %v1833, %v2160
      %2162 = vmatmul.f32.gmra.mxu0 %v1669
      %v2163 = vpop.f32.mrf.mxu0
      %v2164 = vadd.f32 %v1836, %v2163
      %2165 = vmatmul.f32.gmra.mxu0 %v1672
      %v2166 = vpop.f32.mrf.mxu0
      %v2167 = vadd.f32 %v1839, %v2166
      %2168 = vmatmul.f32.gmra.mxu0 %v1675
      %v2169 = vpop.f32.mrf.mxu0
      %v2170 = vadd.f32 %v1842, %v2169
      %2171 = vmatmul.f32.gmra.mxu0 %v1678
      %v2172 = vpop.f32.mrf.mxu0
      %v2173 = vadd.f32 %v1845, %v2172
      %2174 = vmatmul.f32.gmra.mxu0 %v1681
      %v2175 = vpop.f32.mrf.mxu0
      %v2176 = vadd.f32 %v1848, %v2175
      %2177 = vmatmul.f32.gmra.mxu0 %v1684
      %v2178 = vpop.f32.mrf.mxu0
      %v2179 = vadd.f32 %v1851, %v2178
      %2180 = vmatmul.f32.gmra.mxu0 %v1687
      %v2181 = vpop.f32.mrf.mxu0
      %v2182 = vadd.f32 %v1854, %v2181
      %2183 = vmatmul.f32.gmra.mxu0 %v1690
      %v2184 = vpop.f32.mrf.mxu0
      %v2185 = vadd.f32 %v1857, %v2184
      %2186 = vmatmul.f32.gmra.mxu0 %v1693
      %v2187 = vpop.f32.mrf.mxu0
      %v2188 = vadd.f32 %v1860, %v2187
      %2189 = vmatmul.f32.gmra.mxu0 %v1696
      %v2190 = vpop.f32.mrf.mxu0
      %v2191 = vadd.f32 %v1863, %v2190
      %2192 = vmatmul.f32.gmra.mxu0 %v1699
      %v2193 = vpop.f32.mrf.mxu0
      %v2194 = vadd.f32 %v1866, %v2193
      %2195 = vdwg.mxu0
      %2196 = vmatpush.msra.mxu0 0.0
      %2197 = vmatpush.msra.mxu0 0.0
      %2198 = vmatpush.msra.mxu0 0.0
      %2199 = vmatpush.msra.mxu0 %v1534
      %2200 = vmatpush.msra.mxu0 %v1532
      %2201 = vmatpush.msra.mxu0 %v1530
      %2202 = vmatpush.msra.mxu0 %v1528
      %2203 = vmatpush.msra.mxu0 %v1526
      %2204 = vmatpush.msra.mxu0 %v1524
      %2205 = vmatpush.msra.mxu0 %v1522
      %2206 = vmatpush.msra.mxu0 %v1520
      %2207 = vmatpush.msra.mxu0 %v1518
      %2208 = vmatpush.msra.mxu0 %v1516
      %2209 = vmatpush.msra.mxu0 %v1514
      %2210 = vmatpush.msra.mxu0 %v1512
      %2211 = vmatpush.msra.mxu0 %v1510
      %2212 = vmatmul.f32.gmra.mxu0 %v2030
      %v2213 = vpop.f32.mrf.mxu0
      %v2214 = vadd.f32 %v1886, %v2213
      %2215 = vmatmul.f32.gmra.mxu0 %v2033
      %v2216 = vpop.f32.mrf.mxu0
      %v2217 = vadd.f32 %v1889, %v2216
      %2218 = vmatmul.f32.gmra.mxu0 %v1564
      %v2219 = vpop.f32.mrf.mxu0
      %v2220 = vadd.f32 %v1892, %v2219
      %2221 = vmatmul.f32.gmra.mxu0 %v1567
      %v2222 = vpop.f32.mrf.mxu0
      %v2223 = vadd.f32 %v1895, %v2222
      %2224 = vmatmul.f32.gmra.mxu0 %v1570
      %v2225 = vpop.f32.mrf.mxu0
      %v2226 = vadd.f32 %v1898, %v2225
      %2227 = vmatmul.f32.gmra.mxu0 %v1573
      %v2228 = vpop.f32.mrf.mxu0
      %v2229 = vadd.f32 %v1901, %v2228
      %2230 = vmatmul.f32.gmra.mxu0 %v1576
      %v2231 = vpop.f32.mrf.mxu0
      %v2232 = vadd.f32 %v1904, %v2231
      %2233 = vmatmul.f32.gmra.mxu0 %v1579
      %v2234 = vpop.f32.mrf.mxu0
      %v2235 = vadd.f32 %v1907, %v2234
      %2236 = vmatmul.f32.gmra.mxu0 %v1582
      %v2237 = vpop.f32.mrf.mxu0
      %v2238 = vadd.f32 %v1910, %v2237
      %2239 = vmatmul.f32.gmra.mxu0 %v1585
      %v2240 = vpop.f32.mrf.mxu0
      %v2241 = vadd.f32 %v1913, %v2240
      %2242 = vmatmul.f32.gmra.mxu0 %v1588
      %v2243 = vpop.f32.mrf.mxu0
      %v2244 = vadd.f32 %v1916, %v2243
      %2245 = vmatmul.f32.gmra.mxu0 %v1591
      %v2246 = vpop.f32.mrf.mxu0
      %v2247 = vadd.f32 %v1919, %v2246
      %2248 = vmatmul.f32.gmra.mxu0 %v1594
      %v2249 = vpop.f32.mrf.mxu0
      %v2250 = vadd.f32 %v1922, %v2249
      %2251 = vmatmul.f32.gmra.mxu0 %v1597
      %v2252 = vpop.f32.mrf.mxu0
      %v2253 = vadd.f32 %v1925, %v2252
      %2254 = vmatmul.f32.gmra.mxu0 %v1600
      %v2255 = vpop.f32.mrf.mxu0
      %v2256 = vadd.f32 %v1928, %v2255
      %2257 = vmatmul.f32.gmra.mxu0 %v1603
      %v2258 = vpop.f32.mrf.mxu0
      %v2259 = vadd.f32 %v1931, %v2258
      %2260 = vmatmul.f32.gmra.mxu0 %v1606
      %v2261 = vpop.f32.mrf.mxu0
      %v2262 = vadd.f32 %v1934, %v2261
      %2263 = vmatmul.f32.gmra.mxu0 %v1609
      %v2264 = vpop.f32.mrf.mxu0
      %v2265 = vadd.f32 %v1937, %v2264
      %2266 = vmatmul.f32.gmra.mxu0 %v1612
      %v2267 = vpop.f32.mrf.mxu0
      %v2268 = vadd.f32 %v1940, %v2267
      %2269 = vmatmul.f32.gmra.mxu0 %v1615
      %v2270 = vpop.f32.mrf.mxu0
      %v2271 = vadd.f32 %v1943, %v2270
      %2272 = vmatmul.f32.gmra.mxu0 %v1618
      %v2273 = vpop.f32.mrf.mxu0
      %v2274 = vadd.f32 %v1946, %v2273
      %2275 = vmatmul.f32.gmra.mxu0 %v1621
      %v2276 = vpop.f32.mrf.mxu0
      %v2277 = vadd.f32 %v1949, %v2276
      %2278 = vmatmul.f32.gmra.mxu0 %v1624
      %v2279 = vpop.f32.mrf.mxu0
      %v2280 = vadd.f32 %v1952, %v2279
      %2281 = vmatmul.f32.gmra.mxu0 %v1627
      %v2282 = vpop.f32.mrf.mxu0
      %v2283 = vadd.f32 %v1955, %v2282
      %2284 = vmatmul.f32.gmra.mxu0 %v1630
      %v2285 = vpop.f32.mrf.mxu0
      %v2286 = vadd.f32 %v1958, %v2285
      %2287 = vmatmul.f32.gmra.mxu0 %v1633
      %v2288 = vpop.f32.mrf.mxu0
      %v2289 = vadd.f32 %v1961, %v2288
      %2290 = vmatmul.f32.gmra.mxu0 %v1636
      %v2291 = vpop.f32.mrf.mxu0
      %v2292 = vadd.f32 %v1964, %v2291
      %2293 = vmatmul.f32.gmra.mxu0 %v1639
      %v2294 = vpop.f32.mrf.mxu0
      %v2295 = vadd.f32 %v1967, %v2294
      %2296 = vmatmul.f32.gmra.mxu0 %v1642
      %v2297 = vpop.f32.mrf.mxu0
      %v2298 = vadd.f32 %v1970, %v2297
      %2299 = vmatmul.f32.gmra.mxu0 %v1645
      %v2300 = vpop.f32.mrf.mxu0
      %v2301 = vadd.f32 %v1973, %v2300
      %2302 = vmatmul.f32.gmra.mxu0 %v1648
      %v2303 = vpop.f32.mrf.mxu0
      %v2304 = vadd.f32 %v1976, %v2303
      %2305 = vmatmul.f32.gmra.mxu0 %v1651
      %v2306 = vpop.f32.mrf.mxu0
      %v2307 = vadd.f32 %v1979, %v2306
      %2308 = vmatmul.f32.gmra.mxu0 %v1654
      %v2309 = vpop.f32.mrf.mxu0
      %v2310 = vadd.f32 %v1982, %v2309
      %2311 = vmatmul.f32.gmra.mxu0 %v1657
      %v2312 = vpop.f32.mrf.mxu0
      %v2313 = vadd.f32 %v1985, %v2312
      %2314 = vmatmul.f32.gmra.mxu0 %v1660
      %v2315 = vpop.f32.mrf.mxu0
      %v2316 = vadd.f32 %v1988, %v2315
      %2317 = vmatmul.f32.gmra.mxu0 %v1663
      %v2318 = vpop.f32.mrf.mxu0
      %v2319 = vadd.f32 %v1991, %v2318
      %2320 = vmatmul.f32.gmra.mxu0 %v1666
      %v2321 = vpop.f32.mrf.mxu0
      %v2322 = vadd.f32 %v1994, %v2321
      %2323 = vmatmul.f32.gmra.mxu0 %v1669
      %v2324 = vpop.f32.mrf.mxu0
      %v2325 = vadd.f32 %v1997, %v2324
      %2326 = vmatmul.f32.gmra.mxu0 %v1672
      %v2327 = vpop.f32.mrf.mxu0
      %v2328 = vadd.f32 %v2000, %v2327
      %2329 = vmatmul.f32.gmra.mxu0 %v1675
      %v2330 = vpop.f32.mrf.mxu0
      %v2331 = vadd.f32 %v2003, %v2330
      %2332 = vmatmul.f32.gmra.mxu0 %v1678
      %v2333 = vpop.f32.mrf.mxu0
      %v2334 = vadd.f32 %v2006, %v2333
      %2335 = vmatmul.f32.gmra.mxu0 %v1681
      %v2336 = vpop.f32.mrf.mxu0
      %v2337 = vadd.f32 %v2009, %v2336
      %2338 = vmatmul.f32.gmra.mxu0 %v1684
      %v2339 = vpop.f32.mrf.mxu0
      %v2340 = vadd.f32 %v2012, %v2339
      %2341 = vmatmul.f32.gmra.mxu0 %v1687
      %v2342 = vpop.f32.mrf.mxu0
      %v2343 = vadd.f32 %v2015, %v2342
      %2344 = vmatmul.f32.gmra.mxu0 %v1690
      %v2345 = vpop.f32.mrf.mxu0
      %v2346 = vadd.f32 %v2018, %v2345
      %2347 = vmatmul.f32.gmra.mxu0 %v1693
      %v2348 = vpop.f32.mrf.mxu0
      %v2349 = vadd.f32 %v2021, %v2348
      %2350 = vmatmul.f32.gmra.mxu0 %v1696
      %v2351 = vpop.f32.mrf.mxu0
      %v2352 = vadd.f32 %v2024, %v2351
      %2353 = vmatmul.f32.gmra.mxu0 %v1699
      %v2354 = vpop.f32.mrf.mxu0
      %v2355 = vadd.f32 %v2027, %v2354
      %2356 = vdwg.mxu0
      %s2357 = scalar_lea.vmem %s3, 416
      %v2358 = vld [vmem:[%s2357] sm:$0xff]
      %v2359 = vld [vmem:[%s2357 + $0x8] sm:$0xff]
      %v2360 = vld [vmem:[%s2357 + $0x10] sm:$0xff]
      %v2361 = vld [vmem:[%s2357 + $0x18] sm:$0xff]
      %v2362 = vld [vmem:[%s2357 + $0x20] sm:$0xff]
      %v2363 = vld [vmem:[%s2357 + $0x28] sm:$0xff]
      %v2364 = vld [vmem:[%s2357 + $0x30] sm:$0xff]
      %v2365 = vld [vmem:[%s2357 + $0x38] sm:$0xff]
      %v2366 = vld [vmem:[%s2357 + $0x40] sm:$0xff]
      %v2367 = vld [vmem:[%s2357 + $0x48] sm:$0xff]
      %v2368 = vld [vmem:[%s2357 + $0x50] sm:$0xff]
      %v2369 = vld [vmem:[%s2357 + $0x58] sm:$0xff]
      %v2370 = vld [vmem:[%s2357 + $0x60] sm:$0xff]
      %v2371 = vld [vmem:[%s2357 + $0x68] sm:$0xff]
      %v2372 = vld [vmem:[%s2357 + $0x70] sm:$0xff]
      %v2373 = vld [vmem:[%s2357 + $0x78] sm:$0xff]
      %v2374 = vld [vmem:[%s2357 + $0x80] sm:$0xff]
      %v2375 = vld [vmem:[%s2357 + $0x88] sm:$0xff]
      %v2376 = vld [vmem:[%s2357 + $0x90] sm:$0xff]
      %v2377 = vld [vmem:[%s2357 + $0x98] sm:$0xff]
      %v2378 = vld [vmem:[%s2357 + $0xa0] sm:$0xff]
      %v2379 = vld [vmem:[%s2357 + $0xa8] sm:$0xff]
      %v2380 = vld [vmem:[%s2357 + $0xb0] sm:$0xff]
      %v2381 = vld [vmem:[%s2357 + $0xb8] sm:$0xff]
      %v2382 = vld [vmem:[%s2357 + $0xc0] sm:$0xff]
      %v2383 = vld [vmem:[%s2357 + $0xc8] sm:$0xff]
      %v2385 = vsel %vm1562, %v1507, 0
      %v2388 = vsel %vm1562, %v1508, 0
      %2390 = vmatpush.msra.mxu0 0.0
      %2391 = vmatpush.msra.mxu0 0.0
      %2392 = vmatpush.msra.mxu0 0.0
      %2393 = vmatpush.msra.mxu0 %v2382
      %2394 = vmatpush.msra.mxu0 %v2380
      %2395 = vmatpush.msra.mxu0 %v2378
      %2396 = vmatpush.msra.mxu0 %v2376
      %2397 = vmatpush.msra.mxu0 %v2374
      %2398 = vmatpush.msra.mxu0 %v2372
      %2399 = vmatpush.msra.mxu0 %v2370
      %2400 = vmatpush.msra.mxu0 %v2368
      %2401 = vmatpush.msra.mxu0 %v2366
      %2402 = vmatpush.msra.mxu0 %v2364
      %2403 = vmatpush.msra.mxu0 %v2362
      %2404 = vmatpush.msra.mxu0 %v2360
      %2405 = vmatpush.msra.mxu0 %v2358
      %2406 = vmatmul.f32.gmra.mxu0 %v1570
      %v2407 = vpop.f32.mrf.mxu0
      %v2408 = vadd.f32 0.0, %v2407
      %2409 = vmatmul.f32.gmra.mxu0 %v1573
      %v2410 = vpop.f32.mrf.mxu0
      %v2411 = vadd.f32 0.0, %v2410
      %2412 = vmatmul.f32.gmra.mxu0 %v1576
      %v2413 = vpop.f32.mrf.mxu0
      %v2414 = vadd.f32 0.0, %v2413
      %2415 = vmatmul.f32.gmra.mxu0 %v1579
      %v2416 = vpop.f32.mrf.mxu0
      %v2417 = vadd.f32 0.0, %v2416
      %2418 = vmatmul.f32.gmra.mxu0 %v1582
      %v2419 = vpop.f32.mrf.mxu0
      %v2420 = vadd.f32 0.0, %v2419
      %2421 = vmatmul.f32.gmra.mxu0 %v1585
      %v2422 = vpop.f32.mrf.mxu0
      %v2423 = vadd.f32 0.0, %v2422
      %2424 = vmatmul.f32.gmra.mxu0 %v1588
      %v2425 = vpop.f32.mrf.mxu0
      %v2426 = vadd.f32 0.0, %v2425
      %2427 = vmatmul.f32.gmra.mxu0 %v1591
      %v2428 = vpop.f32.mrf.mxu0
      %v2429 = vadd.f32 0.0, %v2428
      %2430 = vmatmul.f32.gmra.mxu0 %v1594
      %v2431 = vpop.f32.mrf.mxu0
      %v2432 = vadd.f32 0.0, %v2431
      %2433 = vmatmul.f32.gmra.mxu0 %v1597
      %v2434 = vpop.f32.mrf.mxu0
      %v2435 = vadd.f32 0.0, %v2434
      %2436 = vmatmul.f32.gmra.mxu0 %v1600
      %v2437 = vpop.f32.mrf.mxu0
      %v2438 = vadd.f32 0.0, %v2437
      %2439 = vmatmul.f32.gmra.mxu0 %v1603
      %v2440 = vpop.f32.mrf.mxu0
      %v2441 = vadd.f32 0.0, %v2440
      %2442 = vmatmul.f32.gmra.mxu0 %v1606
      %v2443 = vpop.f32.mrf.mxu0
      %v2444 = vadd.f32 0.0, %v2443
      %2445 = vmatmul.f32.gmra.mxu0 %v1609
      %v2446 = vpop.f32.mrf.mxu0
      %v2447 = vadd.f32 0.0, %v2446
      %2448 = vmatmul.f32.gmra.mxu0 %v1612
      %v2449 = vpop.f32.mrf.mxu0
      %v2450 = vadd.f32 0.0, %v2449
      %2451 = vmatmul.f32.gmra.mxu0 %v1615
      %v2452 = vpop.f32.mrf.mxu0
      %v2453 = vadd.f32 0.0, %v2452
      %2454 = vmatmul.f32.gmra.mxu0 %v1618
      %v2455 = vpop.f32.mrf.mxu0
      %v2456 = vadd.f32 0.0, %v2455
      %2457 = vmatmul.f32.gmra.mxu0 %v1621
      %v2458 = vpop.f32.mrf.mxu0
      %v2459 = vadd.f32 0.0, %v2458
      %2460 = vmatmul.f32.gmra.mxu0 %v1624
      %v2461 = vpop.f32.mrf.mxu0
      %v2462 = vadd.f32 0.0, %v2461
      %2463 = vmatmul.f32.gmra.mxu0 %v1627
      %v2464 = vpop.f32.mrf.mxu0
      %v2465 = vadd.f32 0.0, %v2464
      %2466 = vmatmul.f32.gmra.mxu0 %v1630
      %v2467 = vpop.f32.mrf.mxu0
      %v2468 = vadd.f32 0.0, %v2467
      %2469 = vmatmul.f32.gmra.mxu0 %v1633
      %v2470 = vpop.f32.mrf.mxu0
      %v2471 = vadd.f32 0.0, %v2470
      %2472 = vmatmul.f32.gmra.mxu0 %v1636
      %v2473 = vpop.f32.mrf.mxu0
      %v2474 = vadd.f32 0.0, %v2473
      %2475 = vmatmul.f32.gmra.mxu0 %v1639
      %v2476 = vpop.f32.mrf.mxu0
      %v2477 = vadd.f32 0.0, %v2476
      %2478 = vmatmul.f32.gmra.mxu0 %v1642
      %v2479 = vpop.f32.mrf.mxu0
      %v2480 = vadd.f32 0.0, %v2479
      %2481 = vmatmul.f32.gmra.mxu0 %v1645
      %v2482 = vpop.f32.mrf.mxu0
      %v2483 = vadd.f32 0.0, %v2482
      %2484 = vmatmul.f32.gmra.mxu0 %v1648
      %v2485 = vpop.f32.mrf.mxu0
      %v2486 = vadd.f32 0.0, %v2485
      %2487 = vmatmul.f32.gmra.mxu0 %v1651
      %v2488 = vpop.f32.mrf.mxu0
      %v2489 = vadd.f32 0.0, %v2488
      %2490 = vmatmul.f32.gmra.mxu0 %v1654
      %v2491 = vpop.f32.mrf.mxu0
      %v2492 = vadd.f32 0.0, %v2491
      %2493 = vmatmul.f32.gmra.mxu0 %v1657
      %v2494 = vpop.f32.mrf.mxu0
      %v2495 = vadd.f32 0.0, %v2494
      %2496 = vmatmul.f32.gmra.mxu0 %v1660
      %v2497 = vpop.f32.mrf.mxu0
      %v2498 = vadd.f32 0.0, %v2497
      %2499 = vmatmul.f32.gmra.mxu0 %v1663
      %v2500 = vpop.f32.mrf.mxu0
      %v2501 = vadd.f32 0.0, %v2500
      %2502 = vmatmul.f32.gmra.mxu0 %v1666
      %v2503 = vpop.f32.mrf.mxu0
      %v2504 = vadd.f32 0.0, %v2503
      %2505 = vmatmul.f32.gmra.mxu0 %v1669
      %v2506 = vpop.f32.mrf.mxu0
      %v2507 = vadd.f32 0.0, %v2506
      %2508 = vmatmul.f32.gmra.mxu0 %v1672
      %v2509 = vpop.f32.mrf.mxu0
      %v2510 = vadd.f32 0.0, %v2509
      %2511 = vmatmul.f32.gmra.mxu0 %v1675
      %v2512 = vpop.f32.mrf.mxu0
      %v2513 = vadd.f32 0.0, %v2512
      %2514 = vmatmul.f32.gmra.mxu0 %v1678
      %v2515 = vpop.f32.mrf.mxu0
      %v2516 = vadd.f32 0.0, %v2515
      %2517 = vmatmul.f32.gmra.mxu0 %v1681
      %v2518 = vpop.f32.mrf.mxu0
      %v2519 = vadd.f32 0.0, %v2518
      %2520 = vmatmul.f32.gmra.mxu0 %v1684
      %v2521 = vpop.f32.mrf.mxu0
      %v2522 = vadd.f32 0.0, %v2521
      %2523 = vmatmul.f32.gmra.mxu0 %v1687
      %v2524 = vpop.f32.mrf.mxu0
      %v2525 = vadd.f32 0.0, %v2524
      %2526 = vmatmul.f32.gmra.mxu0 %v1690
      %v2527 = vpop.f32.mrf.mxu0
      %v2528 = vadd.f32 0.0, %v2527
      %2529 = vmatmul.f32.gmra.mxu0 %v1693
      %v2530 = vpop.f32.mrf.mxu0
      %v2531 = vadd.f32 0.0, %v2530
      %2532 = vmatmul.f32.gmra.mxu0 %v1696
      %v2533 = vpop.f32.mrf.mxu0
      %v2534 = vadd.f32 0.0, %v2533
      %2535 = vmatmul.f32.gmra.mxu0 %v1699
      %v2536 = vpop.f32.mrf.mxu0
      %v2537 = vadd.f32 0.0, %v2536
      %2538 = vmatmul.f32.gmra.mxu0 %v1702
      %v2539 = vpop.f32.mrf.mxu0
      %v2540 = vadd.f32 0.0, %v2539
      %2541 = vmatmul.f32.gmra.mxu0 %v1705
      %v2542 = vpop.f32.mrf.mxu0
      %v2543 = vadd.f32 0.0, %v2542
      %2544 = vmatmul.f32.gmra.mxu0 %v2385
      %v2545 = vpop.f32.mrf.mxu0
      %v2546 = vadd.f32 0.0, %v2545
      %2547 = vmatmul.f32.gmra.mxu0 %v2388
      %v2548 = vpop.f32.mrf.mxu0
      %v2549 = vadd.f32 0.0, %v2548
      %2550 = vdwg.mxu0
      %2551 = vmatpush.msra.mxu0 0.0
      %2552 = vmatpush.msra.mxu0 0.0
      %2553 = vmatpush.msra.mxu0 0.0
      %2554 = vmatpush.msra.mxu0 %v2383
      %2555 = vmatpush.msra.mxu0 %v2381
      %2556 = vmatpush.msra.mxu0 %v2379
      %2557 = vmatpush.msra.mxu0 %v2377
      %2558 = vmatpush.msra.mxu0 %v2375
      %2559 = vmatpush.msra.mxu0 %v2373
      %2560 = vmatpush.msra.mxu0 %v2371
      %2561 = vmatpush.msra.mxu0 %v2369
      %2562 = vmatpush.msra.mxu0 %v2367
      %2563 = vmatpush.msra.mxu0 %v2365
      %2564 = vmatpush.msra.mxu0 %v2363
      %2565 = vmatpush.msra.mxu0 %v2361
      %2566 = vmatpush.msra.mxu0 %v2359
      %2567 = vmatmul.f32.gmra.mxu0 %v1570
      %v2568 = vpop.f32.mrf.mxu0
      %v2569 = vadd.f32 0.0, %v2568
      %2570 = vmatmul.f32.gmra.mxu0 %v1573
      %v2571 = vpop.f32.mrf.mxu0
      %v2572 = vadd.f32 0.0, %v2571
      %2573 = vmatmul.f32.gmra.mxu0 %v1576
      %v2574 = vpop.f32.mrf.mxu0
      %v2575 = vadd.f32 0.0, %v2574
      %2576 = vmatmul.f32.gmra.mxu0 %v1579
      %v2577 = vpop.f32.mrf.mxu0
      %v2578 = vadd.f32 0.0, %v2577
      %2579 = vmatmul.f32.gmra.mxu0 %v1582
      %v2580 = vpop.f32.mrf.mxu0
      %v2581 = vadd.f32 0.0, %v2580
      %2582 = vmatmul.f32.gmra.mxu0 %v1585
      %v2583 = vpop.f32.mrf.mxu0
      %v2584 = vadd.f32 0.0, %v2583
      %2585 = vmatmul.f32.gmra.mxu0 %v1588
      %v2586 = vpop.f32.mrf.mxu0
      %v2587 = vadd.f32 0.0, %v2586
      %2588 = vmatmul.f32.gmra.mxu0 %v1591
      %v2589 = vpop.f32.mrf.mxu0
      %v2590 = vadd.f32 0.0, %v2589
      %2591 = vmatmul.f32.gmra.mxu0 %v1594
      %v2592 = vpop.f32.mrf.mxu0
      %v2593 = vadd.f32 0.0, %v2592
      %2594 = vmatmul.f32.gmra.mxu0 %v1597
      %v2595 = vpop.f32.mrf.mxu0
      %v2596 = vadd.f32 0.0, %v2595
      %2597 = vmatmul.f32.gmra.mxu0 %v1600
      %v2598 = vpop.f32.mrf.mxu0
      %v2599 = vadd.f32 0.0, %v2598
      %2600 = vmatmul.f32.gmra.mxu0 %v1603
      %v2601 = vpop.f32.mrf.mxu0
      %v2602 = vadd.f32 0.0, %v2601
      %2603 = vmatmul.f32.gmra.mxu0 %v1606
      %v2604 = vpop.f32.mrf.mxu0
      %v2605 = vadd.f32 0.0, %v2604
      %2606 = vmatmul.f32.gmra.mxu0 %v1609
      %v2607 = vpop.f32.mrf.mxu0
      %v2608 = vadd.f32 0.0, %v2607
      %2609 = vmatmul.f32.gmra.mxu0 %v1612
      %v2610 = vpop.f32.mrf.mxu0
      %v2611 = vadd.f32 0.0, %v2610
      %2612 = vmatmul.f32.gmra.mxu0 %v1615
      %v2613 = vpop.f32.mrf.mxu0
      %v2614 = vadd.f32 0.0, %v2613
      %2615 = vmatmul.f32.gmra.mxu0 %v1618
      %v2616 = vpop.f32.mrf.mxu0
      %v2617 = vadd.f32 0.0, %v2616
      %2618 = vmatmul.f32.gmra.mxu0 %v1621
      %v2619 = vpop.f32.mrf.mxu0
      %v2620 = vadd.f32 0.0, %v2619
      %2621 = vmatmul.f32.gmra.mxu0 %v1624
      %v2622 = vpop.f32.mrf.mxu0
      %v2623 = vadd.f32 0.0, %v2622
      %2624 = vmatmul.f32.gmra.mxu0 %v1627
      %v2625 = vpop.f32.mrf.mxu0
      %v2626 = vadd.f32 0.0, %v2625
      %2627 = vmatmul.f32.gmra.mxu0 %v1630
      %v2628 = vpop.f32.mrf.mxu0
      %v2629 = vadd.f32 0.0, %v2628
      %2630 = vmatmul.f32.gmra.mxu0 %v1633
      %v2631 = vpop.f32.mrf.mxu0
      %v2632 = vadd.f32 0.0, %v2631
      %2633 = vmatmul.f32.gmra.mxu0 %v1636
      %v2634 = vpop.f32.mrf.mxu0
      %v2635 = vadd.f32 0.0, %v2634
      %2636 = vmatmul.f32.gmra.mxu0 %v1639
      %v2637 = vpop.f32.mrf.mxu0
      %v2638 = vadd.f32 0.0, %v2637
      %2639 = vmatmul.f32.gmra.mxu0 %v1642
      %v2640 = vpop.f32.mrf.mxu0
      %v2641 = vadd.f32 0.0, %v2640
      %2642 = vmatmul.f32.gmra.mxu0 %v1645
      %v2643 = vpop.f32.mrf.mxu0
      %v2644 = vadd.f32 0.0, %v2643
      %2645 = vmatmul.f32.gmra.mxu0 %v1648
      %v2646 = vpop.f32.mrf.mxu0
      %v2647 = vadd.f32 0.0, %v2646
      %2648 = vmatmul.f32.gmra.mxu0 %v1651
      %v2649 = vpop.f32.mrf.mxu0
      %v2650 = vadd.f32 0.0, %v2649
      %2651 = vmatmul.f32.gmra.mxu0 %v1654
      %v2652 = vpop.f32.mrf.mxu0
      %v2653 = vadd.f32 0.0, %v2652
      %2654 = vmatmul.f32.gmra.mxu0 %v1657
      %v2655 = vpop.f32.mrf.mxu0
      %v2656 = vadd.f32 0.0, %v2655
      %2657 = vmatmul.f32.gmra.mxu0 %v1660
      %v2658 = vpop.f32.mrf.mxu0
      %v2659 = vadd.f32 0.0, %v2658
      %2660 = vmatmul.f32.gmra.mxu0 %v1663
      %v2661 = vpop.f32.mrf.mxu0
      %v2662 = vadd.f32 0.0, %v2661
      %2663 = vmatmul.f32.gmra.mxu0 %v1666
      %v2664 = vpop.f32.mrf.mxu0
      %v2665 = vadd.f32 0.0, %v2664
      %2666 = vmatmul.f32.gmra.mxu0 %v1669
      %v2667 = vpop.f32.mrf.mxu0
      %v2668 = vadd.f32 0.0, %v2667
      %2669 = vmatmul.f32.gmra.mxu0 %v1672
      %v2670 = vpop.f32.mrf.mxu0
      %v2671 = vadd.f32 0.0, %v2670
      %2672 = vmatmul.f32.gmra.mxu0 %v1675
      %v2673 = vpop.f32.mrf.mxu0
      %v2674 = vadd.f32 0.0, %v2673
      %2675 = vmatmul.f32.gmra.mxu0 %v1678
      %v2676 = vpop.f32.mrf.mxu0
      %v2677 = vadd.f32 0.0, %v2676
      %2678 = vmatmul.f32.gmra.mxu0 %v1681
      %v2679 = vpop.f32.mrf.mxu0
      %v2680 = vadd.f32 0.0, %v2679
      %2681 = vmatmul.f32.gmra.mxu0 %v1684
      %v2682 = vpop.f32.mrf.mxu0
      %v2683 = vadd.f32 0.0, %v2682
      %2684 = vmatmul.f32.gmra.mxu0 %v1687
      %v2685 = vpop.f32.mrf.mxu0
      %v2686 = vadd.f32 0.0, %v2685
      %2687 = vmatmul.f32.gmra.mxu0 %v1690
      %v2688 = vpop.f32.mrf.mxu0
      %v2689 = vadd.f32 0.0, %v2688
      %2690 = vmatmul.f32.gmra.mxu0 %v1693
      %v2691 = vpop.f32.mrf.mxu0
      %v2692 = vadd.f32 0.0, %v2691
      %2693 = vmatmul.f32.gmra.mxu0 %v1696
      %v2694 = vpop.f32.mrf.mxu0
      %v2695 = vadd.f32 0.0, %v2694
      %2696 = vmatmul.f32.gmra.mxu0 %v1699
      %v2697 = vpop.f32.mrf.mxu0
      %v2698 = vadd.f32 0.0, %v2697
      %2699 = vmatmul.f32.gmra.mxu0 %v1702
      %v2700 = vpop.f32.mrf.mxu0
      %v2701 = vadd.f32 0.0, %v2700
      %2702 = vmatmul.f32.gmra.mxu0 %v1705
      %v2703 = vpop.f32.mrf.mxu0
      %v2704 = vadd.f32 0.0, %v2703
      %2705 = vmatmul.f32.gmra.mxu0 %v2385
      %v2706 = vpop.f32.mrf.mxu0
      %v2707 = vadd.f32 0.0, %v2706
      %2708 = vmatmul.f32.gmra.mxu0 %v2388
      %v2709 = vpop.f32.mrf.mxu0
      %v2710 = vadd.f32 0.0, %v2709
      %2711 = vdwg.mxu0
      %v2712 = vadd.f32 %v2053, %v2408
      %v2713 = vadd.f32 %v2214, %v2569
      %v2714 = vadd.f32 %v2056, %v2411
      %v2715 = vadd.f32 %v2217, %v2572
      %v2716 = vadd.f32 %v2059, %v2414
      %v2717 = vadd.f32 %v2220, %v2575
      %v2718 = vadd.f32 %v2062, %v2417
      %v2719 = vadd.f32 %v2223, %v2578
      %v2720 = vadd.f32 %v2065, %v2420
      %v2721 = vadd.f32 %v2226, %v2581
      %v2722 = vadd.f32 %v2068, %v2423
      %v2723 = vadd.f32 %v2229, %v2584
      %v2724 = vadd.f32 %v2071, %v2426
      %v2725 = vadd.f32 %v2232, %v2587
      %v2726 = vadd.f32 %v2074, %v2429
      %v2727 = vadd.f32 %v2235, %v2590
      %v2728 = vadd.f32 %v2077, %v2432
      %v2729 = vadd.f32 %v2238, %v2593
      %v2730 = vadd.f32 %v2080, %v2435
      %v2731 = vadd.f32 %v2241, %v2596
      %v2732 = vadd.f32 %v2083, %v2438
      %v2733 = vadd.f32 %v2244, %v2599
      %v2734 = vadd.f32 %v2086, %v2441
      %v2735 = vadd.f32 %v2247, %v2602
      %v2736 = vadd.f32 %v2089, %v2444
      %v2737 = vadd.f32 %v2250, %v2605
      %v2738 = vadd.f32 %v2092, %v2447
      %v2739 = vadd.f32 %v2253, %v2608
      %v2740 = vadd.f32 %v2095, %v2450
      %v2741 = vadd.f32 %v2256, %v2611
      %v2742 = vadd.f32 %v2098, %v2453
      %v2743 = vadd.f32 %v2259, %v2614
      %v2744 = vadd.f32 %v2101, %v2456
      %v2745 = vadd.f32 %v2262, %v2617
      %v2746 = vadd.f32 %v2104, %v2459
      %v2747 = vadd.f32 %v2265, %v2620
      %v2748 = vadd.f32 %v2107, %v2462
      %v2749 = vadd.f32 %v2268, %v2623
      %v2750 = vadd.f32 %v2110, %v2465
      %v2751 = vadd.f32 %v2271, %v2626
      %v2752 = vadd.f32 %v2113, %v2468
      %v2753 = vadd.f32 %v2274, %v2629
      %v2754 = vadd.f32 %v2116, %v2471
      %v2755 = vadd.f32 %v2277, %v2632
      %v2756 = vadd.f32 %v2119, %v2474
      %v2757 = vadd.f32 %v2280, %v2635
      %v2758 = vadd.f32 %v2122, %v2477
      %v2759 = vadd.f32 %v2283, %v2638
      %v2760 = vadd.f32 %v2125, %v2480
      %v2761 = vadd.f32 %v2286, %v2641
      %v2762 = vadd.f32 %v2128, %v2483
      %v2763 = vadd.f32 %v2289, %v2644
      %v2764 = vadd.f32 %v2131, %v2486
      %v2765 = vadd.f32 %v2292, %v2647
      %v2766 = vadd.f32 %v2134, %v2489
      %v2767 = vadd.f32 %v2295, %v2650
      %v2768 = vadd.f32 %v2137, %v2492
      %v2769 = vadd.f32 %v2298, %v2653
      %v2770 = vadd.f32 %v2140, %v2495
      %v2771 = vadd.f32 %v2301, %v2656
      %v2772 = vadd.f32 %v2143, %v2498
      %v2773 = vadd.f32 %v2304, %v2659
      %v2774 = vadd.f32 %v2146, %v2501
      %v2775 = vadd.f32 %v2307, %v2662
      %v2776 = vadd.f32 %v2149, %v2504
      %v2777 = vadd.f32 %v2310, %v2665
      %v2778 = vadd.f32 %v2152, %v2507
      %v2779 = vadd.f32 %v2313, %v2668
      %v2780 = vadd.f32 %v2155, %v2510
      %v2781 = vadd.f32 %v2316, %v2671
      %v2782 = vadd.f32 %v2158, %v2513
      %v2783 = vadd.f32 %v2319, %v2674
      %v2784 = vadd.f32 %v2161, %v2516
      %v2785 = vadd.f32 %v2322, %v2677
      %v2786 = vadd.f32 %v2164, %v2519
      %v2787 = vadd.f32 %v2325, %v2680
      %v2788 = vadd.f32 %v2167, %v2522
      %v2789 = vadd.f32 %v2328, %v2683
      %v2790 = vadd.f32 %v2170, %v2525
      %v2791 = vadd.f32 %v2331, %v2686
      %v2792 = vadd.f32 %v2173, %v2528
      %v2793 = vadd.f32 %v2334, %v2689
      %v2794 = vadd.f32 %v2176, %v2531
      %v2795 = vadd.f32 %v2337, %v2692
      %v2796 = vadd.f32 %v2179, %v2534
      %v2797 = vadd.f32 %v2340, %v2695
      %v2798 = vadd.f32 %v2182, %v2537
      %v2799 = vadd.f32 %v2343, %v2698
      %v2800 = vadd.f32 %v2185, %v2540
      %v2801 = vadd.f32 %v2346, %v2701
      %v2802 = vadd.f32 %v2188, %v2543
      %v2803 = vadd.f32 %v2349, %v2704
      %v2804 = vadd.f32 %v2191, %v2546
      %v2805 = vadd.f32 %v2352, %v2707
      %v2806 = vadd.f32 %v2194, %v2549
      %v2807 = vadd.f32 %v2355, %v2710
      %v2808 = vld [vmem:[%s4] sm:$0x3]
      %v2810 = vperm.slane %v2808, 0
      %v2811 = vperm.slane %v2808, 1
      %v2814 = vadd.f32 %v2712, %v2810
      %v2815 = vadd.f32 %v2713, %v2811
      %v2816 = vadd.f32 %v2714, %v2810
      %v2817 = vadd.f32 %v2715, %v2811
      %v2818 = vadd.f32 %v2716, %v2810
      %v2819 = vadd.f32 %v2717, %v2811
      %v2820 = vadd.f32 %v2718, %v2810
      %v2821 = vadd.f32 %v2719, %v2811
      %v2822 = vadd.f32 %v2720, %v2810
      %v2823 = vadd.f32 %v2721, %v2811
      %v2824 = vadd.f32 %v2722, %v2810
      %v2825 = vadd.f32 %v2723, %v2811
      %v2826 = vadd.f32 %v2724, %v2810
      %v2827 = vadd.f32 %v2725, %v2811
      %v2828 = vadd.f32 %v2726, %v2810
      %v2829 = vadd.f32 %v2727, %v2811
      %v2830 = vadd.f32 %v2728, %v2810
      %v2831 = vadd.f32 %v2729, %v2811
      %v2832 = vadd.f32 %v2730, %v2810
      %v2833 = vadd.f32 %v2731, %v2811
      %v2834 = vadd.f32 %v2732, %v2810
      %v2835 = vadd.f32 %v2733, %v2811
      %v2836 = vadd.f32 %v2734, %v2810
      %v2837 = vadd.f32 %v2735, %v2811
      %v2838 = vadd.f32 %v2736, %v2810
      %v2839 = vadd.f32 %v2737, %v2811
      %v2840 = vadd.f32 %v2738, %v2810
      %v2841 = vadd.f32 %v2739, %v2811
      %v2842 = vadd.f32 %v2740, %v2810
      %v2843 = vadd.f32 %v2741, %v2811
      %v2844 = vadd.f32 %v2742, %v2810
      %v2845 = vadd.f32 %v2743, %v2811
      %v2846 = vadd.f32 %v2744, %v2810
      %v2847 = vadd.f32 %v2745, %v2811
      %v2848 = vadd.f32 %v2746, %v2810
      %v2849 = vadd.f32 %v2747, %v2811
      %v2850 = vadd.f32 %v2748, %v2810
      %v2851 = vadd.f32 %v2749, %v2811
      %v2852 = vadd.f32 %v2750, %v2810
      %v2853 = vadd.f32 %v2751, %v2811
      %v2854 = vadd.f32 %v2752, %v2810
      %v2855 = vadd.f32 %v2753, %v2811
      %v2856 = vadd.f32 %v2754, %v2810
      %v2857 = vadd.f32 %v2755, %v2811
      %v2858 = vadd.f32 %v2756, %v2810
      %v2859 = vadd.f32 %v2757, %v2811
      %v2860 = vadd.f32 %v2758, %v2810
      %v2861 = vadd.f32 %v2759, %v2811
      %v2862 = vadd.f32 %v2760, %v2810
      %v2863 = vadd.f32 %v2761, %v2811
      %v2864 = vadd.f32 %v2762, %v2810
      %v2865 = vadd.f32 %v2763, %v2811
      %v2866 = vadd.f32 %v2764, %v2810
      %v2867 = vadd.f32 %v2765, %v2811
      %v2868 = vadd.f32 %v2766, %v2810
      %v2869 = vadd.f32 %v2767, %v2811
      %v2870 = vadd.f32 %v2768, %v2810
      %v2871 = vadd.f32 %v2769, %v2811
      %v2872 = vadd.f32 %v2770, %v2810
      %v2873 = vadd.f32 %v2771, %v2811
      %v2874 = vadd.f32 %v2772, %v2810
      %v2875 = vadd.f32 %v2773, %v2811
      %v2876 = vadd.f32 %v2774, %v2810
      %v2877 = vadd.f32 %v2775, %v2811
      %v2878 = vadd.f32 %v2776, %v2810
      %v2879 = vadd.f32 %v2777, %v2811
      %v2880 = vadd.f32 %v2778, %v2810
      %v2881 = vadd.f32 %v2779, %v2811
      %v2882 = vadd.f32 %v2780, %v2810
      %v2883 = vadd.f32 %v2781, %v2811
      %v2884 = vadd.f32 %v2782, %v2810
      %v2885 = vadd.f32 %v2783, %v2811
      %v2886 = vadd.f32 %v2784, %v2810
      %v2887 = vadd.f32 %v2785, %v2811
      %v2888 = vadd.f32 %v2786, %v2810
      %v2889 = vadd.f32 %v2787, %v2811
      %v2890 = vadd.f32 %v2788, %v2810
      %v2891 = vadd.f32 %v2789, %v2811
      %v2892 = vadd.f32 %v2790, %v2810
      %v2893 = vadd.f32 %v2791, %v2811
      %v2894 = vadd.f32 %v2792, %v2810
      %v2895 = vadd.f32 %v2793, %v2811
      %v2896 = vadd.f32 %v2794, %v2810
      %v2897 = vadd.f32 %v2795, %v2811
      %v2898 = vadd.f32 %v2796, %v2810
      %v2899 = vadd.f32 %v2797, %v2811
      %v2900 = vadd.f32 %v2798, %v2810
      %v2901 = vadd.f32 %v2799, %v2811
      %v2902 = vadd.f32 %v2800, %v2810
      %v2903 = vadd.f32 %v2801, %v2811
      %v2904 = vadd.f32 %v2802, %v2810
      %v2905 = vadd.f32 %v2803, %v2811
      %v2906 = vadd.f32 %v2804, %v2810
      %v2907 = vadd.f32 %v2805, %v2811
      %v2908 = vadd.f32 %v2806, %v2810
      %v2909 = vadd.f32 %v2807, %v2811
      %v2910 = vmax.f32 %v2814, 0.0
      %v2911 = vmax.f32 %v2815, 0.0
      %v2912 = vmax.f32 %v2816, 0.0
      %v2913 = vmax.f32 %v2817, 0.0
      %v2914 = vmax.f32 %v2818, 0.0
      %v2915 = vmax.f32 %v2819, 0.0
      %v2916 = vmax.f32 %v2820, 0.0
      %v2917 = vmax.f32 %v2821, 0.0
      %v2918 = vmax.f32 %v2822, 0.0
      %v2919 = vmax.f32 %v2823, 0.0
      %v2920 = vmax.f32 %v2824, 0.0
      %v2921 = vmax.f32 %v2825, 0.0
      %v2922 = vmax.f32 %v2826, 0.0
      %v2923 = vmax.f32 %v2827, 0.0
      %v2924 = vmax.f32 %v2828, 0.0
      %v2925 = vmax.f32 %v2829, 0.0
      %v2926 = vmax.f32 %v2830, 0.0
      %v2927 = vmax.f32 %v2831, 0.0
      %v2928 = vmax.f32 %v2832, 0.0
      %v2929 = vmax.f32 %v2833, 0.0
      %v2930 = vmax.f32 %v2834, 0.0
      %v2931 = vmax.f32 %v2835, 0.0
      %v2932 = vmax.f32 %v2836, 0.0
      %v2933 = vmax.f32 %v2837, 0.0
      %v2934 = vmax.f32 %v2838, 0.0
      %v2935 = vmax.f32 %v2839, 0.0
      %v2936 = vmax.f32 %v2840, 0.0
      %v2937 = vmax.f32 %v2841, 0.0
      %v2938 = vmax.f32 %v2842, 0.0
      %v2939 = vmax.f32 %v2843, 0.0
      %v2940 = vmax.f32 %v2844, 0.0
      %v2941 = vmax.f32 %v2845, 0.0
      %v2942 = vmax.f32 %v2846, 0.0
      %v2943 = vmax.f32 %v2847, 0.0
      %v2944 = vmax.f32 %v2848, 0.0
      %v2945 = vmax.f32 %v2849, 0.0
      %v2946 = vmax.f32 %v2850, 0.0
      %v2947 = vmax.f32 %v2851, 0.0
      %v2948 = vmax.f32 %v2852, 0.0
      %v2949 = vmax.f32 %v2853, 0.0
      %v2950 = vmax.f32 %v2854, 0.0
      %v2951 = vmax.f32 %v2855, 0.0
      %v2952 = vmax.f32 %v2856, 0.0
      %v2953 = vmax.f32 %v2857, 0.0
      %v2954 = vmax.f32 %v2858, 0.0
      %v2955 = vmax.f32 %v2859, 0.0
      %v2956 = vmax.f32 %v2860, 0.0
      %v2957 = vmax.f32 %v2861, 0.0
      %v2958 = vmax.f32 %v2862, 0.0
      %v2959 = vmax.f32 %v2863, 0.0
      %v2960 = vmax.f32 %v2864, 0.0
      %v2961 = vmax.f32 %v2865, 0.0
      %v2962 = vmax.f32 %v2866, 0.0
      %v2963 = vmax.f32 %v2867, 0.0
      %v2964 = vmax.f32 %v2868, 0.0
      %v2965 = vmax.f32 %v2869, 0.0
      %v2966 = vmax.f32 %v2870, 0.0
      %v2967 = vmax.f32 %v2871, 0.0
      %v2968 = vmax.f32 %v2872, 0.0
      %v2969 = vmax.f32 %v2873, 0.0
      %v2970 = vmax.f32 %v2874, 0.0
      %v2971 = vmax.f32 %v2875, 0.0
      %v2972 = vmax.f32 %v2876, 0.0
      %v2973 = vmax.f32 %v2877, 0.0
      %v2974 = vmax.f32 %v2878, 0.0
      %v2975 = vmax.f32 %v2879, 0.0
      %v2976 = vmax.f32 %v2880, 0.0
      %v2977 = vmax.f32 %v2881, 0.0
      %v2978 = vmax.f32 %v2882, 0.0
      %v2979 = vmax.f32 %v2883, 0.0
      %v2980 = vmax.f32 %v2884, 0.0
      %v2981 = vmax.f32 %v2885, 0.0
      %v2982 = vmax.f32 %v2886, 0.0
      %v2983 = vmax.f32 %v2887, 0.0
      %v2984 = vmax.f32 %v2888, 0.0
      %v2985 = vmax.f32 %v2889, 0.0
      %v2986 = vmax.f32 %v2890, 0.0
      %v2987 = vmax.f32 %v2891, 0.0
      %v2988 = vmax.f32 %v2892, 0.0
      %v2989 = vmax.f32 %v2893, 0.0
      %v2990 = vmax.f32 %v2894, 0.0
      %v2991 = vmax.f32 %v2895, 0.0
      %v2992 = vmax.f32 %v2896, 0.0
      %v2993 = vmax.f32 %v2897, 0.0
      %v2994 = vmax.f32 %v2898, 0.0
      %v2995 = vmax.f32 %v2899, 0.0
      %v2996 = vmax.f32 %v2900, 0.0
      %v2997 = vmax.f32 %v2901, 0.0
      %v2998 = vmax.f32 %v2902, 0.0
      %v2999 = vmax.f32 %v2903, 0.0
      %v3000 = vmax.f32 %v2904, 0.0
      %v3001 = vmax.f32 %v2905, 0.0
      %v3002 = vmax.f32 %v2906, 0.0
      %v3003 = vmax.f32 %v2907, 0.0
      %v3004 = vmax.f32 %v2908, 0.0
      %v3005 = vmax.f32 %v2909, 0.0
      %v3006 = vmax.f32 %v2910, %v2914
      %v3007 = vmax.f32 %v2911, %v2915
      %v3008 = vmax.f32 %v2912, %v2916
      %v3009 = vmax.f32 %v2913, %v2917
      %v3010 = vmax.f32 %v2918, %v2922
      %v3011 = vmax.f32 %v2919, %v2923
      %v3012 = vmax.f32 %v2920, %v2924
      %v3013 = vmax.f32 %v2921, %v2925
      %v3014 = vmax.f32 %v2926, %v2930
      %v3015 = vmax.f32 %v2927, %v2931
      %v3016 = vmax.f32 %v2928, %v2932
      %v3017 = vmax.f32 %v2929, %v2933
      %v3018 = vmax.f32 %v2934, %v2938
      %v3019 = vmax.f32 %v2935, %v2939
      %v3020 = vmax.f32 %v2936, %v2940
      %v3021 = vmax.f32 %v2937, %v2941
      %v3022 = vmax.f32 %v2942, %v2946
      %v3023 = vmax.f32 %v2943, %v2947
      %v3024 = vmax.f32 %v2944, %v2948
      %v3025 = vmax.f32 %v2945, %v2949
      %v3026 = vmax.f32 %v2950, %v2954
      %v3027 = vmax.f32 %v2951, %v2955
      %v3028 = vmax.f32 %v2952, %v2956
      %v3029 = vmax.f32 %v2953, %v2957
      %v3030 = vmax.f32 %v2958, %v2962
      %v3031 = vmax.f32 %v2959, %v2963
      %v3032 = vmax.f32 %v2960, %v2964
      %v3033 = vmax.f32 %v2961, %v2965
      %v3034 = vmax.f32 %v2966, %v2970
      %v3035 = vmax.f32 %v2967, %v2971
      %v3036 = vmax.f32 %v2968, %v2972
      %v3037 = vmax.f32 %v2969, %v2973
      %v3038 = vmax.f32 %v2974, %v2978
      %v3039 = vmax.f32 %v2975, %v2979
      %v3040 = vmax.f32 %v2976, %v2980
      %v3041 = vmax.f32 %v2977, %v2981
      %v3042 = vmax.f32 %v2982, %v2986
      %v3043 = vmax.f32 %v2983, %v2987
      %v3044 = vmax.f32 %v2984, %v2988
      %v3045 = vmax.f32 %v2985, %v2989
      %v3046 = vmax.f32 %v2990, %v2994
      %v3047 = vmax.f32 %v2991, %v2995
      %v3048 = vmax.f32 %v2992, %v2996
      %v3049 = vmax.f32 %v2993, %v2997
      %v3050 = vmax.f32 %v2998, %v3002
      %v3051 = vmax.f32 %v2999, %v3003
      %v3052 = vmax.f32 %v3000, %v3004
      %v3053 = vmax.f32 %v3001, %v3005
      %3102 = vrot.lane.b32.xlu0 %v3006, 127
      %v3103 = vpop.permute.xlu0 %3102
      %3104 = vrot.lane.b32.xlu0 %v3007, 127
      %v3105 = vpop.permute.xlu0 %3104
      %3106 = vrot.lane.b32.xlu0 %v3008, 127
      %v3107 = vpop.permute.xlu0 %3106
      %3108 = vrot.lane.b32.xlu0 %v3009, 127
      %v3109 = vpop.permute.xlu0 %3108
      %3110 = vrot.lane.b32.xlu0 %v3010, 127
      %v3111 = vpop.permute.xlu0 %3110
      %3112 = vrot.lane.b32.xlu0 %v3011, 127
      %v3113 = vpop.permute.xlu0 %3112
      %3114 = vrot.lane.b32.xlu0 %v3012, 127
      %v3115 = vpop.permute.xlu0 %3114
      %3116 = vrot.lane.b32.xlu0 %v3013, 127
      %v3117 = vpop.permute.xlu0 %3116
      %3118 = vrot.lane.b32.xlu0 %v3014, 127
      %v3119 = vpop.permute.xlu0 %3118
      %3120 = vrot.lane.b32.xlu0 %v3015, 127
      %v3121 = vpop.permute.xlu0 %3120
      %3122 = vrot.lane.b32.xlu0 %v3016, 127
      %v3123 = vpop.permute.xlu0 %3122
      %3124 = vrot.lane.b32.xlu0 %v3017, 127
      %v3125 = vpop.permute.xlu0 %3124
      %3126 = vrot.lane.b32.xlu0 %v3018, 127
      %v3127 = vpop.permute.xlu0 %3126
      %3128 = vrot.lane.b32.xlu0 %v3019, 127
      %v3129 = vpop.permute.xlu0 %3128
      %3130 = vrot.lane.b32.xlu0 %v3020, 127
      %v3131 = vpop.permute.xlu0 %3130
      %3132 = vrot.lane.b32.xlu0 %v3021, 127
      %v3133 = vpop.permute.xlu0 %3132
      %3134 = vrot.lane.b32.xlu0 %v3022, 127
      %v3135 = vpop.permute.xlu0 %3134
      %3136 = vrot.lane.b32.xlu0 %v3023, 127
      %v3137 = vpop.permute.xlu0 %3136
      %3138 = vrot.lane.b32.xlu0 %v3024, 127
      %v3139 = vpop.permute.xlu0 %3138
      %3140 = vrot.lane.b32.xlu0 %v3025, 127
      %v3141 = vpop.permute.xlu0 %3140
      %3142 = vrot.lane.b32.xlu0 %v3026, 127
      %v3143 = vpop.permute.xlu0 %3142
      %3144 = vrot.lane.b32.xlu0 %v3027, 127
      %v3145 = vpop.permute.xlu0 %3144
      %3146 = vrot.lane.b32.xlu0 %v3028, 127
      %v3147 = vpop.permute.xlu0 %3146
      %3148 = vrot.lane.b32.xlu0 %v3029, 127
      %v3149 = vpop.permute.xlu0 %3148
      %3150 = vrot.lane.b32.xlu0 %v3030, 127
      %v3151 = vpop.permute.xlu0 %3150
      %3152 = vrot.lane.b32.xlu0 %v3031, 127
      %v3153 = vpop.permute.xlu0 %3152
      %3154 = vrot.lane.b32.xlu0 %v3032, 127
      %v3155 = vpop.permute.xlu0 %3154
      %3156 = vrot.lane.b32.xlu0 %v3033, 127
      %v3157 = vpop.permute.xlu0 %3156
      %3158 = vrot.lane.b32.xlu0 %v3034, 127
      %v3159 = vpop.permute.xlu0 %3158
      %3160 = vrot.lane.b32.xlu0 %v3035, 127
      %v3161 = vpop.permute.xlu0 %3160
      %3162 = vrot.lane.b32.xlu0 %v3036, 127
      %v3163 = vpop.permute.xlu0 %3162
      %3164 = vrot.lane.b32.xlu0 %v3037, 127
      %v3165 = vpop.permute.xlu0 %3164
      %3166 = vrot.lane.b32.xlu0 %v3038, 127
      %v3167 = vpop.permute.xlu0 %3166
      %3168 = vrot.lane.b32.xlu0 %v3039, 127
      %v3169 = vpop.permute.xlu0 %3168
      %3170 = vrot.lane.b32.xlu0 %v3040, 127
      %v3171 = vpop.permute.xlu0 %3170
      %3172 = vrot.lane.b32.xlu0 %v3041, 127
      %v3173 = vpop.permute.xlu0 %3172
      %3174 = vrot.lane.b32.xlu0 %v3042, 127
      %v3175 = vpop.permute.xlu0 %3174
      %3176 = vrot.lane.b32.xlu0 %v3043, 127
      %v3177 = vpop.permute.xlu0 %3176
      %3178 = vrot.lane.b32.xlu0 %v3044, 127
      %v3179 = vpop.permute.xlu0 %3178
      %3180 = vrot.lane.b32.xlu0 %v3045, 127
      %v3181 = vpop.permute.xlu0 %3180
      %3182 = vrot.lane.b32.xlu0 %v3046, 127
      %v3183 = vpop.permute.xlu0 %3182
      %3184 = vrot.lane.b32.xlu0 %v3047, 127
      %v3185 = vpop.permute.xlu0 %3184
      %3186 = vrot.lane.b32.xlu0 %v3048, 127
      %v3187 = vpop.permute.xlu0 %3186
      %3188 = vrot.lane.b32.xlu0 %v3049, 127
      %v3189 = vpop.permute.xlu0 %3188
      %3190 = vrot.lane.b32.xlu0 %v3050, 127
      %v3191 = vpop.permute.xlu0 %3190
      %3192 = vrot.lane.b32.xlu0 %v3051, 127
      %v3193 = vpop.permute.xlu0 %3192
      %3194 = vrot.lane.b32.xlu0 %v3052, 127
      %v3195 = vpop.permute.xlu0 %3194
      %3196 = vrot.lane.b32.xlu0 %v3053, 127
      %v3197 = vpop.permute.xlu0 %3196
      %vm3198 = vcmask 1039360
      %v3199 = vsel %vm3198, %v3103, %v3105
      %v3200 = vsel %vm3198, %v3107, %v3109
      %v3201 = vsel %vm3198, %v3111, %v3113
      %v3202 = vsel %vm3198, %v3115, %v3117
      %v3203 = vsel %vm3198, %v3119, %v3121
      %v3204 = vsel %vm3198, %v3123, %v3125
      %v3205 = vsel %vm3198, %v3127, %v3129
      %v3206 = vsel %vm3198, %v3131, %v3133
      %v3207 = vsel %vm3198, %v3135, %v3137
      %v3208 = vsel %vm3198, %v3139, %v3141
      %v3209 = vsel %vm3198, %v3143, %v3145
      %v3210 = vsel %vm3198, %v3147, %v3149
      %v3211 = vsel %vm3198, %v3151, %v3153
      %v3212 = vsel %vm3198, %v3155, %v3157
      %v3213 = vsel %vm3198, %v3159, %v3161
      %v3214 = vsel %vm3198, %v3163, %v3165
      %v3215 = vsel %vm3198, %v3167, %v3169
      %v3216 = vsel %vm3198, %v3171, %v3173
      %v3217 = vsel %vm3198, %v3175, %v3177
      %v3218 = vsel %vm3198, %v3179, %v3181
      %v3219 = vsel %vm3198, %v3183, %v3185
      %v3220 = vsel %vm3198, %v3187, %v3189
      %v3221 = vsel %vm3198, %v3191, %v3193
      %v3222 = vsel %vm3198, %v3195, %v3197
      %v3271 = vmax.f32 %v3006, %v3199
      %v3272 = vmax.f32 %v3007, %v3105
      %v3273 = vmax.f32 %v3008, %v3200
      %v3274 = vmax.f32 %v3009, %v3109
      %v3275 = vmax.f32 %v3010, %v3201
      %v3276 = vmax.f32 %v3011, %v3113
      %v3277 = vmax.f32 %v3012, %v3202
      %v3278 = vmax.f32 %v3013, %v3117
      %v3279 = vmax.f32 %v3014, %v3203
      %v3280 = vmax.f32 %v3015, %v3121
      %v3281 = vmax.f32 %v3016, %v3204
      %v3282 = vmax.f32 %v3017, %v3125
      %v3283 = vmax.f32 %v3018, %v3205
      %v3284 = vmax.f32 %v3019, %v3129
      %v3285 = vmax.f32 %v3020, %v3206
      %v3286 = vmax.f32 %v3021, %v3133
      %v3287 = vmax.f32 %v3022, %v3207
      %v3288 = vmax.f32 %v3023, %v3137
      %v3289 = vmax.f32 %v3024, %v3208
      %v3290 = vmax.f32 %v3025, %v3141
      %v3291 = vmax.f32 %v3026, %v3209
      %v3292 = vmax.f32 %v3027, %v3145
      %v3293 = vmax.f32 %v3028, %v3210
      %v3294 = vmax.f32 %v3029, %v3149
      %v3295 = vmax.f32 %v3030, %v3211
      %v3296 = vmax.f32 %v3031, %v3153
      %v3297 = vmax.f32 %v3032, %v3212
      %v3298 = vmax.f32 %v3033, %v3157
      %v3299 = vmax.f32 %v3034, %v3213
      %v3300 = vmax.f32 %v3035, %v3161
      %v3301 = vmax.f32 %v3036, %v3214
      %v3302 = vmax.f32 %v3037, %v3165
      %v3303 = vmax.f32 %v3038, %v3215
      %v3304 = vmax.f32 %v3039, %v3169
      %v3305 = vmax.f32 %v3040, %v3216
      %v3306 = vmax.f32 %v3041, %v3173
      %v3307 = vmax.f32 %v3042, %v3217
      %v3308 = vmax.f32 %v3043, %v3177
      %v3309 = vmax.f32 %v3044, %v3218
      %v3310 = vmax.f32 %v3045, %v3181
      %v3311 = vmax.f32 %v3046, %v3219
      %v3312 = vmax.f32 %v3047, %v3185
      %v3313 = vmax.f32 %v3048, %v3220
      %v3314 = vmax.f32 %v3049, %v3189
      %v3315 = vmax.f32 %v3050, %v3221
      %v3316 = vmax.f32 %v3051, %v3193
      %v3317 = vmax.f32 %v3052, %v3222
      %v3318 = vmax.f32 %v3053, %v3197
      %v3319 = vld [vmem:[%s5] sm:$0xff]
      %v3320 = vld [vmem:[%s5 + $0x8] sm:$0xff]
      %v3321 = vld [vmem:[%s5 + $0x10] sm:$0xff]
      %v3322 = vld [vmem:[%s5 + $0x18] sm:$0xff]
      %v3323 = vld [vmem:[%s5 + $0x20] sm:$0xff]
      %v3324 = vld [vmem:[%s5 + $0x28] sm:$0xff]
      %v3325 = vld [vmem:[%s5 + $0x30] sm:$0xff]
      %v3326 = vld [vmem:[%s5 + $0x38] sm:$0xff]
      %v3327 = vld [vmem:[%s5 + $0x40] sm:$0xff]
      %v3328 = vld [vmem:[%s5 + $0x48] sm:$0xff]
      %v3329 = vld [vmem:[%s5 + $0x50] sm:$0xff]
      %v3330 = vld [vmem:[%s5 + $0x58] sm:$0xff]
      %v3331 = vld [vmem:[%s5 + $0x60] sm:$0xff]
      %v3332 = vld [vmem:[%s5 + $0x68] sm:$0xff]
      %v3333 = vld [vmem:[%s5 + $0x70] sm:$0xff]
      %v3334 = vld [vmem:[%s5 + $0x78] sm:$0xff]
      %v3335 = vld [vmem:[%s5 + $0x80] sm:$0xff]
      %v3336 = vld [vmem:[%s5 + $0x88] sm:$0xff]
      %v3337 = vld [vmem:[%s5 + $0x90] sm:$0xff]
      %v3338 = vld [vmem:[%s5 + $0x98] sm:$0xff]
      %v3339 = vld [vmem:[%s5 + $0xa0] sm:$0xff]
      %v3340 = vld [vmem:[%s5 + $0xa8] sm:$0xff]
      %v3341 = vld [vmem:[%s5 + $0xb0] sm:$0xff]
      %v3342 = vld [vmem:[%s5 + $0xb8] sm:$0x7f]
      %vm3343 = vcmask 515072
      %v3345 = vsel %vm3343, %v3272, 0
      %v3348 = vsel %vm3343, %v3274, 0
      %v3351 = vsel %vm3343, %v3276, 0
      %v3354 = vsel %vm3343, %v3278, 0
      %v3357 = vsel %vm3343, %v3280, 0
      %v3360 = vsel %vm3343, %v3282, 0
      %v3363 = vsel %vm3343, %v3284, 0
      %v3366 = vsel %vm3343, %v3286, 0
      %v3369 = vsel %vm3343, %v3288, 0
      %v3372 = vsel %vm3343, %v3290, 0
      %v3375 = vsel %vm3343, %v3292, 0
      %v3378 = vsel %vm3343, %v3294, 0
      %v3381 = vsel %vm3343, %v3296, 0
      %v3384 = vsel %vm3343, %v3298, 0
      %v3387 = vsel %vm3343, %v3300, 0
      %v3390 = vsel %vm3343, %v3302, 0
      %v3393 = vsel %vm3343, %v3304, 0
      %v3396 = vsel %vm3343, %v3306, 0
      %v3399 = vsel %vm3343, %v3308, 0
      %v3402 = vsel %vm3343, %v3310, 0
      %v3405 = vsel %vm3343, %v3312, 0
      %v3408 = vsel %vm3343, %v3314, 0
      %v3411 = vsel %vm3343, %v3316, 0
      %v3414 = vsel %vm3343, %v3318, 0
      %vm3416 = vcmask 1046528
      %v3418 = vsel %vm3416, %v3342, 0
      %3420 = vmatpush.msra.mxu0 %v3334
      %3421 = vmatpush.msra.mxu0 %v3333
      %3422 = vmatpush.msra.mxu0 %v3332
      %3423 = vmatpush.msra.mxu0 %v3331
      %3424 = vmatpush.msra.mxu0 %v3330
      %3425 = vmatpush.msra.mxu0 %v3329
      %3426 = vmatpush.msra.mxu0 %v3328
      %3427 = vmatpush.msra.mxu0 %v3327
      %3428 = vmatpush.msra.mxu0 %v3326
      %3429 = vmatpush.msra.mxu0 %v3325
      %3430 = vmatpush.msra.mxu0 %v3324
      %3431 = vmatpush.msra.mxu0 %v3323
      %3432 = vmatpush.msra.mxu0 %v3322
      %3433 = vmatpush.msra.mxu0 %v3321
      %3434 = vmatpush.msra.mxu0 %v3320
      %3435 = vmatpush.msra.mxu0 %v3319
      %3436 = vmatmul.f32.gmra.mxu0 %v3271
      %v3437 = vpop.f32.mrf.mxu0
      %v3438 = vadd.f32 0.0, %v3437
      %3439 = vmatmul.f32.gmra.mxu0 %v3273
      %v3440 = vpop.f32.mrf.mxu0
      %v3441 = vadd.f32 0.0, %v3440
      %3442 = vmatmul.f32.gmra.mxu0 %v3275
      %v3443 = vpop.f32.mrf.mxu0
      %v3444 = vadd.f32 0.0, %v3443
      %3445 = vmatmul.f32.gmra.mxu0 %v3277
      %v3446 = vpop.f32.mrf.mxu0
      %v3447 = vadd.f32 0.0, %v3446
      %3448 = vmatmul.f32.gmra.mxu0 %v3279
      %v3449 = vpop.f32.mrf.mxu0
      %v3450 = vadd.f32 0.0, %v3449
      %3451 = vmatmul.f32.gmra.mxu0 %v3281
      %v3452 = vpop.f32.mrf.mxu0
      %v3453 = vadd.f32 0.0, %v3452
      %3454 = vmatmul.f32.gmra.mxu0 %v3283
      %v3455 = vpop.f32.mrf.mxu0
      %v3456 = vadd.f32 0.0, %v3455
      %3457 = vmatmul.f32.gmra.mxu0 %v3285
      %v3458 = vpop.f32.mrf.mxu0
      %v3459 = vadd.f32 0.0, %v3458
      %3460 = vmatmul.f32.gmra.mxu0 %v3287
      %v3461 = vpop.f32.mrf.mxu0
      %v3462 = vadd.f32 0.0, %v3461
      %3463 = vmatmul.f32.gmra.mxu0 %v3289
      %v3464 = vpop.f32.mrf.mxu0
      %v3465 = vadd.f32 0.0, %v3464
      %3466 = vmatmul.f32.gmra.mxu0 %v3291
      %v3467 = vpop.f32.mrf.mxu0
      %v3468 = vadd.f32 0.0, %v3467
      %3469 = vmatmul.f32.gmra.mxu0 %v3293
      %v3470 = vpop.f32.mrf.mxu0
      %v3471 = vadd.f32 0.0, %v3470
      %3472 = vmatmul.f32.gmra.mxu0 %v3295
      %v3473 = vpop.f32.mrf.mxu0
      %v3474 = vadd.f32 0.0, %v3473
      %3475 = vmatmul.f32.gmra.mxu0 %v3297
      %v3476 = vpop.f32.mrf.mxu0
      %v3477 = vadd.f32 0.0, %v3476
      %3478 = vmatmul.f32.gmra.mxu0 %v3299
      %v3479 = vpop.f32.mrf.mxu0
      %v3480 = vadd.f32 0.0, %v3479
      %3481 = vmatmul.f32.gmra.mxu0 %v3301
      %v3482 = vpop.f32.mrf.mxu0
      %v3483 = vadd.f32 0.0, %v3482
      %3484 = vmatmul.f32.gmra.mxu0 %v3303
      %v3485 = vpop.f32.mrf.mxu0
      %v3486 = vadd.f32 0.0, %v3485
      %3487 = vmatmul.f32.gmra.mxu0 %v3305
      %v3488 = vpop.f32.mrf.mxu0
      %v3489 = vadd.f32 0.0, %v3488
      %3490 = vmatmul.f32.gmra.mxu0 %v3307
      %v3491 = vpop.f32.mrf.mxu0
      %v3492 = vadd.f32 0.0, %v3491
      %3493 = vmatmul.f32.gmra.mxu0 %v3309
      %v3494 = vpop.f32.mrf.mxu0
      %v3495 = vadd.f32 0.0, %v3494
      %3496 = vmatmul.f32.gmra.mxu0 %v3311
      %v3497 = vpop.f32.mrf.mxu0
      %v3498 = vadd.f32 0.0, %v3497
      %3499 = vmatmul.f32.gmra.mxu0 %v3313
      %v3500 = vpop.f32.mrf.mxu0
      %v3501 = vadd.f32 0.0, %v3500
      %3502 = vmatmul.f32.gmra.mxu0 %v3315
      %v3503 = vpop.f32.mrf.mxu0
      %v3504 = vadd.f32 0.0, %v3503
      %3505 = vmatmul.f32.gmra.mxu0 %v3317
      %v3506 = vpop.f32.mrf.mxu0
      %v3507 = vadd.f32 0.0, %v3506
      %3508 = vdwg.mxu0
      %3509 = vmatpush.msra.mxu0 0.0
      %3510 = vmatpush.msra.mxu0 0.0
      %3511 = vmatpush.msra.mxu0 0.0
      %3512 = vmatpush.msra.mxu0 0.0
      %3513 = vmatpush.msra.mxu0 0.0
      %3514 = vmatpush.msra.mxu0 0.0
      %3515 = vmatpush.msra.mxu0 0.0
      %3516 = vmatpush.msra.mxu0 0.0
      %3517 = vmatpush.msra.mxu0 %v3418
      %3518 = vmatpush.msra.mxu0 %v3341
      %3519 = vmatpush.msra.mxu0 %v3340
      %3520 = vmatpush.msra.mxu0 %v3339
      %3521 = vmatpush.msra.mxu0 %v3338
      %3522 = vmatpush.msra.mxu0 %v3337
      %3523 = vmatpush.msra.mxu0 %v3336
      %3524 = vmatpush.msra.mxu0 %v3335
      %3525 = vmatmul.f32.gmra.mxu0 %v3345
      %v3526 = vpop.f32.mrf.mxu0
      %v3527 = vadd.f32 %v3438, %v3526
      %3528 = vmatmul.f32.gmra.mxu0 %v3348
      %v3529 = vpop.f32.mrf.mxu0
      %v3530 = vadd.f32 %v3441, %v3529
      %3531 = vmatmul.f32.gmra.mxu0 %v3351
      %v3532 = vpop.f32.mrf.mxu0
      %v3533 = vadd.f32 %v3444, %v3532
      %3534 = vmatmul.f32.gmra.mxu0 %v3354
      %v3535 = vpop.f32.mrf.mxu0
      %v3536 = vadd.f32 %v3447, %v3535
      %3537 = vmatmul.f32.gmra.mxu0 %v3357
      %v3538 = vpop.f32.mrf.mxu0
      %v3539 = vadd.f32 %v3450, %v3538
      %3540 = vmatmul.f32.gmra.mxu0 %v3360
      %v3541 = vpop.f32.mrf.mxu0
      %v3542 = vadd.f32 %v3453, %v3541
      %3543 = vmatmul.f32.gmra.mxu0 %v3363
      %v3544 = vpop.f32.mrf.mxu0
      %v3545 = vadd.f32 %v3456, %v3544
      %3546 = vmatmul.f32.gmra.mxu0 %v3366
      %v3547 = vpop.f32.mrf.mxu0
      %v3548 = vadd.f32 %v3459, %v3547
      %3549 = vmatmul.f32.gmra.mxu0 %v3369
      %v3550 = vpop.f32.mrf.mxu0
      %v3551 = vadd.f32 %v3462, %v3550
      %3552 = vmatmul.f32.gmra.mxu0 %v3372
      %v3553 = vpop.f32.mrf.mxu0
      %v3554 = vadd.f32 %v3465, %v3553
      %3555 = vmatmul.f32.gmra.mxu0 %v3375
      %v3556 = vpop.f32.mrf.mxu0
      %v3557 = vadd.f32 %v3468, %v3556
      %3558 = vmatmul.f32.gmra.mxu0 %v3378
      %v3559 = vpop.f32.mrf.mxu0
      %v3560 = vadd.f32 %v3471, %v3559
      %3561 = vmatmul.f32.gmra.mxu0 %v3381
      %v3562 = vpop.f32.mrf.mxu0
      %v3563 = vadd.f32 %v3474, %v3562
      %3564 = vmatmul.f32.gmra.mxu0 %v3384
      %v3565 = vpop.f32.mrf.mxu0
      %v3566 = vadd.f32 %v3477, %v3565
      %3567 = vmatmul.f32.gmra.mxu0 %v3387
      %v3568 = vpop.f32.mrf.mxu0
      %v3569 = vadd.f32 %v3480, %v3568
      %3570 = vmatmul.f32.gmra.mxu0 %v3390
      %v3571 = vpop.f32.mrf.mxu0
      %v3572 = vadd.f32 %v3483, %v3571
      %3573 = vmatmul.f32.gmra.mxu0 %v3393
      %v3574 = vpop.f32.mrf.mxu0
      %v3575 = vadd.f32 %v3486, %v3574
      %3576 = vmatmul.f32.gmra.mxu0 %v3396
      %v3577 = vpop.f32.mrf.mxu0
      %v3578 = vadd.f32 %v3489, %v3577
      %3579 = vmatmul.f32.gmra.mxu0 %v3399
      %v3580 = vpop.f32.mrf.mxu0
      %v3581 = vadd.f32 %v3492, %v3580
      %3582 = vmatmul.f32.gmra.mxu0 %v3402
      %v3583 = vpop.f32.mrf.mxu0
      %v3584 = vadd.f32 %v3495, %v3583
      %3585 = vmatmul.f32.gmra.mxu0 %v3405
      %v3586 = vpop.f32.mrf.mxu0
      %v3587 = vadd.f32 %v3498, %v3586
      %3588 = vmatmul.f32.gmra.mxu0 %v3408
      %v3589 = vpop.f32.mrf.mxu0
      %v3590 = vadd.f32 %v3501, %v3589
      %3591 = vmatmul.f32.gmra.mxu0 %v3411
      %v3592 = vpop.f32.mrf.mxu0
      %v3593 = vadd.f32 %v3504, %v3592
      %3594 = vmatmul.f32.gmra.mxu0 %v3414
      %v3595 = vpop.f32.mrf.mxu0
      %v3596 = vadd.f32 %v3507, %v3595
      %3597 = vdwg.mxu0
      %v3598 = vld [vmem:[%s6] sm:$0xff]
      %v3599 = vld [vmem:[%s6 + $0x8] sm:$0xff]
      %v3600 = vld [vmem:[%s6 + $0x10] sm:$0xff]
      %v3601 = vld [vmem:[%s6 + $0x18] sm:$0xff]
      %v3602 = vld [vmem:[%s6 + $0x20] sm:$0xff]
      %v3603 = vld [vmem:[%s6 + $0x28] sm:$0xff]
      %v3604 = vld [vmem:[%s6 + $0x30] sm:$0xff]
      %v3605 = vld [vmem:[%s6 + $0x38] sm:$0xff]
      %v3606 = vld [vmem:[%s6 + $0x40] sm:$0xff]
      %v3607 = vld [vmem:[%s6 + $0x48] sm:$0xff]
      %v3608 = vld [vmem:[%s6 + $0x50] sm:$0xff]
      %v3609 = vld [vmem:[%s6 + $0x58] sm:$0xff]
      %v3610 = vld [vmem:[%s6 + $0x60] sm:$0xff]
      %v3611 = vld [vmem:[%s6 + $0x68] sm:$0xff]
      %v3612 = vld [vmem:[%s6 + $0x70] sm:$0xff]
      %v3613 = vld [vmem:[%s6 + $0x78] sm:$0xff]
      %v3614 = vld [vmem:[%s6 + $0x80] sm:$0xff]
      %v3615 = vld [vmem:[%s6 + $0x88] sm:$0xff]
      %v3616 = vld [vmem:[%s6 + $0x90] sm:$0xff]
      %v3617 = vld [vmem:[%s6 + $0x98] sm:$0xff]
      %v3618 = vld [vmem:[%s6 + $0xa0] sm:$0xff]
      %v3619 = vld [vmem:[%s6 + $0xa8] sm:$0xff]
      %v3620 = vld [vmem:[%s6 + $0xb0] sm:$0xff]
      %v3621 = vld [vmem:[%s6 + $0xb8] sm:$0xff]
      %s3622 = scalar_lea.vmem %s6, 192
      %v3623 = vld [vmem:[%s3622] sm:$0xff]
      %v3624 = vld [vmem:[%s3622 + $0x8] sm:$0xff]
      %v3625 = vld [vmem:[%s3622 + $0x10] sm:$0xff]
      %v3626 = vld [vmem:[%s3622 + $0x18] sm:$0xff]
      %v3627 = vld [vmem:[%s3622 + $0x20] sm:$0xff]
      %v3628 = vld [vmem:[%s3622 + $0x28] sm:$0xff]
      %v3629 = vld [vmem:[%s3622 + $0x30] sm:$0xff]
      %v3630 = vld [vmem:[%s3622 + $0x38] sm:$0xff]
      %v3631 = vld [vmem:[%s3622 + $0x40] sm:$0xff]
      %v3632 = vld [vmem:[%s3622 + $0x48] sm:$0xff]
      %v3633 = vld [vmem:[%s3622 + $0x50] sm:$0xff]
      %v3634 = vld [vmem:[%s3622 + $0x58] sm:$0xff]
      %v3635 = vld [vmem:[%s3622 + $0x60] sm:$0xff]
      %v3636 = vld [vmem:[%s3622 + $0x68] sm:$0xff]
      %v3637 = vld [vmem:[%s3622 + $0x70] sm:$0xff]
      %v3638 = vld [vmem:[%s3622 + $0x78] sm:$0xff]
      %v3639 = vld [vmem:[%s3622 + $0x80] sm:$0xff]
      %v3640 = vld [vmem:[%s3622 + $0x88] sm:$0xff]
      %v3641 = vld [vmem:[%s3622 + $0x90] sm:$0xff]
      %v3642 = vld [vmem:[%s3622 + $0x98] sm:$0xff]
      %v3643 = vld [vmem:[%s3622 + $0xa0] sm:$0xff]
      %v3644 = vld [vmem:[%s3622 + $0xa8] sm:$0xff]
      %v3645 = vld [vmem:[%s3622 + $0xb0] sm:$0xff]
      %v3646 = vld [vmem:[%s3622 + $0xb8] sm:$0xff]
      %vm3647 = vcmask 785408
      %v3649 = vsel %vm3647, %v3533, 0
      %v3652 = vsel %vm3647, %v3536, 0
      %v3655 = vsel %vm3647, %v3539, 0
      %v3658 = vsel %vm3647, %v3542, 0
      %v3661 = vsel %vm3647, %v3545, 0
      %v3664 = vsel %vm3647, %v3548, 0
      %v3667 = vsel %vm3647, %v3551, 0
      %v3670 = vsel %vm3647, %v3554, 0
      %v3673 = vsel %vm3647, %v3557, 0
      %v3676 = vsel %vm3647, %v3560, 0
      %v3679 = vsel %vm3647, %v3563, 0
      %v3682 = vsel %vm3647, %v3566, 0
      %v3685 = vsel %vm3647, %v3569, 0
      %v3688 = vsel %vm3647, %v3572, 0
      %v3691 = vsel %vm3647, %v3575, 0
      %v3694 = vsel %vm3647, %v3578, 0
      %v3697 = vsel %vm3647, %v3581, 0
      %v3700 = vsel %vm3647, %v3584, 0
      %v3703 = vsel %vm3647, %v3587, 0
      %v3706 = vsel %vm3647, %v3590, 0
      %3708 = vmatpush.msra.mxu0 0.0
      %3709 = vmatpush.msra.mxu0 0.0
      %3710 = vmatpush.msra.mxu0 0.0
      %3711 = vmatpush.msra.mxu0 0.0
      %3712 = vmatpush.msra.mxu0 %v3645
      %3713 = vmatpush.msra.mxu0 %v3643
      %3714 = vmatpush.msra.mxu0 %v3641
      %3715 = vmatpush.msra.mxu0 %v3639
      %3716 = vmatpush.msra.mxu0 %v3637
      %3717 = vmatpush.msra.mxu0 %v3635
      %3718 = vmatpush.msra.mxu0 %v3633
      %3719 = vmatpush.msra.mxu0 %v3631
      %3720 = vmatpush.msra.mxu0 %v3629
      %3721 = vmatpush.msra.mxu0 %v3627
      %3722 = vmatpush.msra.mxu0 %v3625
      %3723 = vmatpush.msra.mxu0 %v3623
      %3724 = vmatmul.f32.gmra.mxu0 %v3649
      %v3725 = vpop.f32.mrf.mxu0
      %v3726 = vadd.f32 0.0, %v3725
      %3727 = vmatmul.f32.gmra.mxu0 %v3652
      %v3728 = vpop.f32.mrf.mxu0
      %v3729 = vadd.f32 0.0, %v3728
      %3730 = vmatmul.f32.gmra.mxu0 %v3655
      %v3731 = vpop.f32.mrf.mxu0
      %v3732 = vadd.f32 0.0, %v3731
      %3733 = vmatmul.f32.gmra.mxu0 %v3658
      %v3734 = vpop.f32.mrf.mxu0
      %v3735 = vadd.f32 0.0, %v3734
      %3736 = vmatmul.f32.gmra.mxu0 %v3661
      %v3737 = vpop.f32.mrf.mxu0
      %v3738 = vadd.f32 0.0, %v3737
      %3739 = vmatmul.f32.gmra.mxu0 %v3664
      %v3740 = vpop.f32.mrf.mxu0
      %v3741 = vadd.f32 0.0, %v3740
      %3742 = vmatmul.f32.gmra.mxu0 %v3667
      %v3743 = vpop.f32.mrf.mxu0
      %v3744 = vadd.f32 0.0, %v3743
      %3745 = vmatmul.f32.gmra.mxu0 %v3670
      %v3746 = vpop.f32.mrf.mxu0
      %v3747 = vadd.f32 0.0, %v3746
      %3748 = vmatmul.f32.gmra.mxu0 %v3673
      %v3749 = vpop.f32.mrf.mxu0
      %v3750 = vadd.f32 0.0, %v3749
      %3751 = vmatmul.f32.gmra.mxu0 %v3676
      %v3752 = vpop.f32.mrf.mxu0
      %v3753 = vadd.f32 0.0, %v3752
      %3754 = vmatmul.f32.gmra.mxu0 %v3679
      %v3755 = vpop.f32.mrf.mxu0
      %v3756 = vadd.f32 0.0, %v3755
      %3757 = vmatmul.f32.gmra.mxu0 %v3682
      %v3758 = vpop.f32.mrf.mxu0
      %v3759 = vadd.f32 0.0, %v3758
      %3760 = vmatmul.f32.gmra.mxu0 %v3685
      %v3761 = vpop.f32.mrf.mxu0
      %v3762 = vadd.f32 0.0, %v3761
      %3763 = vmatmul.f32.gmra.mxu0 %v3688
      %v3764 = vpop.f32.mrf.mxu0
      %v3765 = vadd.f32 0.0, %v3764
      %3766 = vmatmul.f32.gmra.mxu0 %v3691
      %v3767 = vpop.f32.mrf.mxu0
      %v3768 = vadd.f32 0.0, %v3767
      %3769 = vmatmul.f32.gmra.mxu0 %v3694
      %v3770 = vpop.f32.mrf.mxu0
      %v3771 = vadd.f32 0.0, %v3770
      %3772 = vmatmul.f32.gmra.mxu0 %v3697
      %v3773 = vpop.f32.mrf.mxu0
      %v3774 = vadd.f32 0.0, %v3773
      %3775 = vmatmul.f32.gmra.mxu0 %v3700
      %v3776 = vpop.f32.mrf.mxu0
      %v3777 = vadd.f32 0.0, %v3776
      %3778 = vmatmul.f32.gmra.mxu0 %v3703
      %v3779 = vpop.f32.mrf.mxu0
      %v3780 = vadd.f32 0.0, %v3779
      %3781 = vmatmul.f32.gmra.mxu0 %v3706
      %v3782 = vpop.f32.mrf.mxu0
      %v3783 = vadd.f32 0.0, %v3782
      %3784 = vdwg.mxu0
      %3785 = vmatpush.msra.mxu0 0.0
      %3786 = vmatpush.msra.mxu0 0.0
      %3787 = vmatpush.msra.mxu0 0.0
      %3788 = vmatpush.msra.mxu0 0.0
      %3789 = vmatpush.msra.mxu0 %v3646
      %3790 = vmatpush.msra.mxu0 %v3644
      %3791 = vmatpush.msra.mxu0 %v3642
      %3792 = vmatpush.msra.mxu0 %v3640
      %3793 = vmatpush.msra.mxu0 %v3638
      %3794 = vmatpush.msra.mxu0 %v3636
      %3795 = vmatpush.msra.mxu0 %v3634
      %3796 = vmatpush.msra.mxu0 %v3632
      %3797 = vmatpush.msra.mxu0 %v3630
      %3798 = vmatpush.msra.mxu0 %v3628
      %3799 = vmatpush.msra.mxu0 %v3626
      %3800 = vmatpush.msra.mxu0 %v3624
      %3801 = vmatmul.f32.gmra.mxu0 %v3649
      %v3802 = vpop.f32.mrf.mxu0
      %v3803 = vadd.f32 0.0, %v3802
      %3804 = vmatmul.f32.gmra.mxu0 %v3652
      %v3805 = vpop.f32.mrf.mxu0
      %v3806 = vadd.f32 0.0, %v3805
      %3807 = vmatmul.f32.gmra.mxu0 %v3655
      %v3808 = vpop.f32.mrf.mxu0
      %v3809 = vadd.f32 0.0, %v3808
      %3810 = vmatmul.f32.gmra.mxu0 %v3658
      %v3811 = vpop.f32.mrf.mxu0
      %v3812 = vadd.f32 0.0, %v3811
      %3813 = vmatmul.f32.gmra.mxu0 %v3661
      %v3814 = vpop.f32.mrf.mxu0
      %v3815 = vadd.f32 0.0, %v3814
      %3816 = vmatmul.f32.gmra.mxu0 %v3664
      %v3817 = vpop.f32.mrf.mxu0
      %v3818 = vadd.f32 0.0, %v3817
      %3819 = vmatmul.f32.gmra.mxu0 %v3667
      %v3820 = vpop.f32.mrf.mxu0
      %v3821 = vadd.f32 0.0, %v3820
      %3822 = vmatmul.f32.gmra.mxu0 %v3670
      %v3823 = vpop.f32.mrf.mxu0
      %v3824 = vadd.f32 0.0, %v3823
      %3825 = vmatmul.f32.gmra.mxu0 %v3673
      %v3826 = vpop.f32.mrf.mxu0
      %v3827 = vadd.f32 0.0, %v3826
      %3828 = vmatmul.f32.gmra.mxu0 %v3676
      %v3829 = vpop.f32.mrf.mxu0
      %v3830 = vadd.f32 0.0, %v3829
      %3831 = vmatmul.f32.gmra.mxu0 %v3679
      %v3832 = vpop.f32.mrf.mxu0
      %v3833 = vadd.f32 0.0, %v3832
      %3834 = vmatmul.f32.gmra.mxu0 %v3682
      %v3835 = vpop.f32.mrf.mxu0
      %v3836 = vadd.f32 0.0, %v3835
      %3837 = vmatmul.f32.gmra.mxu0 %v3685
      %v3838 = vpop.f32.mrf.mxu0
      %v3839 = vadd.f32 0.0, %v3838
      %3840 = vmatmul.f32.gmra.mxu0 %v3688
      %v3841 = vpop.f32.mrf.mxu0
      %v3842 = vadd.f32 0.0, %v3841
      %3843 = vmatmul.f32.gmra.mxu0 %v3691
      %v3844 = vpop.f32.mrf.mxu0
      %v3845 = vadd.f32 0.0, %v3844
      %3846 = vmatmul.f32.gmra.mxu0 %v3694
      %v3847 = vpop.f32.mrf.mxu0
      %v3848 = vadd.f32 0.0, %v3847
      %3849 = vmatmul.f32.gmra.mxu0 %v3697
      %v3850 = vpop.f32.mrf.mxu0
      %v3851 = vadd.f32 0.0, %v3850
      %3852 = vmatmul.f32.gmra.mxu0 %v3700
      %v3853 = vpop.f32.mrf.mxu0
      %v3854 = vadd.f32 0.0, %v3853
      %3855 = vmatmul.f32.gmra.mxu0 %v3703
      %v3856 = vpop.f32.mrf.mxu0
      %v3857 = vadd.f32 0.0, %v3856
      %3858 = vmatmul.f32.gmra.mxu0 %v3706
      %v3859 = vpop.f32.mrf.mxu0
      %v3860 = vadd.f32 0.0, %v3859
      %3861 = vdwg.mxu0
      %v3863 = vsel %vm3647, %v3527, 0
      %v3866 = vsel %vm3647, %v3530, 0
      %3868 = vmatpush.msra.mxu0 0.0
      %3869 = vmatpush.msra.mxu0 0.0
      %3870 = vmatpush.msra.mxu0 0.0
      %3871 = vmatpush.msra.mxu0 0.0
      %3872 = vmatpush.msra.mxu0 %v3620
      %3873 = vmatpush.msra.mxu0 %v3618
      %3874 = vmatpush.msra.mxu0 %v3616
      %3875 = vmatpush.msra.mxu0 %v3614
      %3876 = vmatpush.msra.mxu0 %v3612
      %3877 = vmatpush.msra.mxu0 %v3610
      %3878 = vmatpush.msra.mxu0 %v3608
      %3879 = vmatpush.msra.mxu0 %v3606
      %3880 = vmatpush.msra.mxu0 %v3604
      %3881 = vmatpush.msra.mxu0 %v3602
      %3882 = vmatpush.msra.mxu0 %v3600
      %3883 = vmatpush.msra.mxu0 %v3598
      %3884 = vmatmul.f32.gmra.mxu0 %v3863
      %v3885 = vpop.f32.mrf.mxu0
      %v3886 = vadd.f32 %v3726, %v3885
      %3887 = vmatmul.f32.gmra.mxu0 %v3866
      %v3888 = vpop.f32.mrf.mxu0
      %v3889 = vadd.f32 %v3729, %v3888
      %3890 = vmatmul.f32.gmra.mxu0 %v3649
      %v3891 = vpop.f32.mrf.mxu0
      %v3892 = vadd.f32 %v3732, %v3891
      %3893 = vmatmul.f32.gmra.mxu0 %v3652
      %v3894 = vpop.f32.mrf.mxu0
      %v3895 = vadd.f32 %v3735, %v3894
      %3896 = vmatmul.f32.gmra.mxu0 %v3655
      %v3897 = vpop.f32.mrf.mxu0
      %v3898 = vadd.f32 %v3738, %v3897
      %3899 = vmatmul.f32.gmra.mxu0 %v3658
      %v3900 = vpop.f32.mrf.mxu0
      %v3901 = vadd.f32 %v3741, %v3900
      %3902 = vmatmul.f32.gmra.mxu0 %v3661
      %v3903 = vpop.f32.mrf.mxu0
      %v3904 = vadd.f32 %v3744, %v3903
      %3905 = vmatmul.f32.gmra.mxu0 %v3664
      %v3906 = vpop.f32.mrf.mxu0
      %v3907 = vadd.f32 %v3747, %v3906
      %3908 = vmatmul.f32.gmra.mxu0 %v3667
      %v3909 = vpop.f32.mrf.mxu0
      %v3910 = vadd.f32 %v3750, %v3909
      %3911 = vmatmul.f32.gmra.mxu0 %v3670
      %v3912 = vpop.f32.mrf.mxu0
      %v3913 = vadd.f32 %v3753, %v3912
      %3914 = vmatmul.f32.gmra.mxu0 %v3673
      %v3915 = vpop.f32.mrf.mxu0
      %v3916 = vadd.f32 %v3756, %v3915
      %3917 = vmatmul.f32.gmra.mxu0 %v3676
      %v3918 = vpop.f32.mrf.mxu0
      %v3919 = vadd.f32 %v3759, %v3918
      %3920 = vmatmul.f32.gmra.mxu0 %v3679
      %v3921 = vpop.f32.mrf.mxu0
      %v3922 = vadd.f32 %v3762, %v3921
      %3923 = vmatmul.f32.gmra.mxu0 %v3682
      %v3924 = vpop.f32.mrf.mxu0
      %v3925 = vadd.f32 %v3765, %v3924
      %3926 = vmatmul.f32.gmra.mxu0 %v3685
      %v3927 = vpop.f32.mrf.mxu0
      %v3928 = vadd.f32 %v3768, %v3927
      %3929 = vmatmul.f32.gmra.mxu0 %v3688
      %v3930 = vpop.f32.mrf.mxu0
      %v3931 = vadd.f32 %v3771, %v3930
      %3932 = vmatmul.f32.gmra.mxu0 %v3691
      %v3933 = vpop.f32.mrf.mxu0
      %v3934 = vadd.f32 %v3774, %v3933
      %3935 = vmatmul.f32.gmra.mxu0 %v3694
      %v3936 = vpop.f32.mrf.mxu0
      %v3937 = vadd.f32 %v3777, %v3936
      %3938 = vmatmul.f32.gmra.mxu0 %v3697
      %v3939 = vpop.f32.mrf.mxu0
      %v3940 = vadd.f32 %v3780, %v3939
      %3941 = vmatmul.f32.gmra.mxu0 %v3700
      %v3942 = vpop.f32.mrf.mxu0
      %v3943 = vadd.f32 %v3783, %v3942
      %3944 = vdwg.mxu0
      %3945 = vmatpush.msra.mxu0 0.0
      %3946 = vmatpush.msra.mxu0 0.0
      %3947 = vmatpush.msra.mxu0 0.0
      %3948 = vmatpush.msra.mxu0 0.0
      %3949 = vmatpush.msra.mxu0 %v3621
      %3950 = vmatpush.msra.mxu0 %v3619
      %3951 = vmatpush.msra.mxu0 %v3617
      %3952 = vmatpush.msra.mxu0 %v3615
      %3953 = vmatpush.msra.mxu0 %v3613
      %3954 = vmatpush.msra.mxu0 %v3611
      %3955 = vmatpush.msra.mxu0 %v3609
      %3956 = vmatpush.msra.mxu0 %v3607
      %3957 = vmatpush.msra.mxu0 %v3605
      %3958 = vmatpush.msra.mxu0 %v3603
      %3959 = vmatpush.msra.mxu0 %v3601
      %3960 = vmatpush.msra.mxu0 %v3599
      %3961 = vmatmul.f32.gmra.mxu0 %v3863
      %v3962 = vpop.f32.mrf.mxu0
      %v3963 = vadd.f32 %v3803, %v3962
      %3964 = vmatmul.f32.gmra.mxu0 %v3866
      %v3965 = vpop.f32.mrf.mxu0
      %v3966 = vadd.f32 %v3806, %v3965
      %3967 = vmatmul.f32.gmra.mxu0 %v3649
      %v3968 = vpop.f32.mrf.mxu0
      %v3969 = vadd.f32 %v3809, %v3968
      %3970 = vmatmul.f32.gmra.mxu0 %v3652
      %v3971 = vpop.f32.mrf.mxu0
      %v3972 = vadd.f32 %v3812, %v3971
      %3973 = vmatmul.f32.gmra.mxu0 %v3655
      %v3974 = vpop.f32.mrf.mxu0
      %v3975 = vadd.f32 %v3815, %v3974
      %3976 = vmatmul.f32.gmra.mxu0 %v3658
      %v3977 = vpop.f32.mrf.mxu0
      %v3978 = vadd.f32 %v3818, %v3977
      %3979 = vmatmul.f32.gmra.mxu0 %v3661
      %v3980 = vpop.f32.mrf.mxu0
      %v3981 = vadd.f32 %v3821, %v3980
      %3982 = vmatmul.f32.gmra.mxu0 %v3664
      %v3983 = vpop.f32.mrf.mxu0
      %v3984 = vadd.f32 %v3824, %v3983
      %3985 = vmatmul.f32.gmra.mxu0 %v3667
      %v3986 = vpop.f32.mrf.mxu0
      %v3987 = vadd.f32 %v3827, %v3986
      %3988 = vmatmul.f32.gmra.mxu0 %v3670
      %v3989 = vpop.f32.mrf.mxu0
      %v3990 = vadd.f32 %v3830, %v3989
      %3991 = vmatmul.f32.gmra.mxu0 %v3673
      %v3992 = vpop.f32.mrf.mxu0
      %v3993 = vadd.f32 %v3833, %v3992
      %3994 = vmatmul.f32.gmra.mxu0 %v3676
      %v3995 = vpop.f32.mrf.mxu0
      %v3996 = vadd.f32 %v3836, %v3995
      %3997 = vmatmul.f32.gmra.mxu0 %v3679
      %v3998 = vpop.f32.mrf.mxu0
      %v3999 = vadd.f32 %v3839, %v3998
      %4000 = vmatmul.f32.gmra.mxu0 %v3682
      %v4001 = vpop.f32.mrf.mxu0
      %v4002 = vadd.f32 %v3842, %v4001
      %4003 = vmatmul.f32.gmra.mxu0 %v3685
      %v4004 = vpop.f32.mrf.mxu0
      %v4005 = vadd.f32 %v3845, %v4004
      %4006 = vmatmul.f32.gmra.mxu0 %v3688
      %v4007 = vpop.f32.mrf.mxu0
      %v4008 = vadd.f32 %v3848, %v4007
      %4009 = vmatmul.f32.gmra.mxu0 %v3691
      %v4010 = vpop.f32.mrf.mxu0
      %v4011 = vadd.f32 %v3851, %v4010
      %4012 = vmatmul.f32.gmra.mxu0 %v3694
      %v4013 = vpop.f32.mrf.mxu0
      %v4014 = vadd.f32 %v3854, %v4013
      %4015 = vmatmul.f32.gmra.mxu0 %v3697
      %v4016 = vpop.f32.mrf.mxu0
      %v4017 = vadd.f32 %v3857, %v4016
      %4018 = vmatmul.f32.gmra.mxu0 %v3700
      %v4019 = vpop.f32.mrf.mxu0
      %v4020 = vadd.f32 %v3860, %v4019
      %4021 = vdwg.mxu0
      %s4022 = scalar_lea.vmem %s6, 384
      %v4023 = vld [vmem:[%s4022] sm:$0xff]
      %v4024 = vld [vmem:[%s4022 + $0x8] sm:$0xff]
      %v4025 = vld [vmem:[%s4022 + $0x10] sm:$0xff]
      %v4026 = vld [vmem:[%s4022 + $0x18] sm:$0xff]
      %v4027 = vld [vmem:[%s4022 + $0x20] sm:$0xff]
      %v4028 = vld [vmem:[%s4022 + $0x28] sm:$0xff]
      %v4029 = vld [vmem:[%s4022 + $0x30] sm:$0xff]
      %v4030 = vld [vmem:[%s4022 + $0x38] sm:$0xff]
      %v4031 = vld [vmem:[%s4022 + $0x40] sm:$0xff]
      %v4032 = vld [vmem:[%s4022 + $0x48] sm:$0xff]
      %v4033 = vld [vmem:[%s4022 + $0x50] sm:$0xff]
      %v4034 = vld [vmem:[%s4022 + $0x58] sm:$0xff]
      %v4035 = vld [vmem:[%s4022 + $0x60] sm:$0xff]
      %v4036 = vld [vmem:[%s4022 + $0x68] sm:$0xff]
      %v4037 = vld [vmem:[%s4022 + $0x70] sm:$0xff]
      %v4038 = vld [vmem:[%s4022 + $0x78] sm:$0xff]
      %v4039 = vld [vmem:[%s4022 + $0x80] sm:$0xff]
      %v4040 = vld [vmem:[%s4022 + $0x88] sm:$0xff]
      %v4041 = vld [vmem:[%s4022 + $0x90] sm:$0xff]
      %v4042 = vld [vmem:[%s4022 + $0x98] sm:$0xff]
      %v4043 = vld [vmem:[%s4022 + $0xa0] sm:$0xff]
      %v4044 = vld [vmem:[%s4022 + $0xa8] sm:$0xff]
      %v4045 = vld [vmem:[%s4022 + $0xb0] sm:$0xff]
      %v4046 = vld [vmem:[%s4022 + $0xb8] sm:$0xff]
      %v4048 = vsel %vm3647, %v3593, 0
      %v4051 = vsel %vm3647, %v3596, 0
      %4053 = vmatpush.msra.mxu0 0.0
      %4054 = vmatpush.msra.mxu0 0.0
      %4055 = vmatpush.msra.mxu0 0.0
      %4056 = vmatpush.msra.mxu0 0.0
      %4057 = vmatpush.msra.mxu0 %v4045
      %4058 = vmatpush.msra.mxu0 %v4043
      %4059 = vmatpush.msra.mxu0 %v4041
      %4060 = vmatpush.msra.mxu0 %v4039
      %4061 = vmatpush.msra.mxu0 %v4037
      %4062 = vmatpush.msra.mxu0 %v4035
      %4063 = vmatpush.msra.mxu0 %v4033
      %4064 = vmatpush.msra.mxu0 %v4031
      %4065 = vmatpush.msra.mxu0 %v4029
      %4066 = vmatpush.msra.mxu0 %v4027
      %4067 = vmatpush.msra.mxu0 %v4025
      %4068 = vmatpush.msra.mxu0 %v4023
      %4069 = vmatmul.f32.gmra.mxu0 %v3655
      %v4070 = vpop.f32.mrf.mxu0
      %v4071 = vadd.f32 0.0, %v4070
      %4072 = vmatmul.f32.gmra.mxu0 %v3658
      %v4073 = vpop.f32.mrf.mxu0
      %v4074 = vadd.f32 0.0, %v4073
      %4075 = vmatmul.f32.gmra.mxu0 %v3661
      %v4076 = vpop.f32.mrf.mxu0
      %v4077 = vadd.f32 0.0, %v4076
      %4078 = vmatmul.f32.gmra.mxu0 %v3664
      %v4079 = vpop.f32.mrf.mxu0
      %v4080 = vadd.f32 0.0, %v4079
      %4081 = vmatmul.f32.gmra.mxu0 %v3667
      %v4082 = vpop.f32.mrf.mxu0
      %v4083 = vadd.f32 0.0, %v4082
      %4084 = vmatmul.f32.gmra.mxu0 %v3670
      %v4085 = vpop.f32.mrf.mxu0
      %v4086 = vadd.f32 0.0, %v4085
      %4087 = vmatmul.f32.gmra.mxu0 %v3673
      %v4088 = vpop.f32.mrf.mxu0
      %v4089 = vadd.f32 0.0, %v4088
      %4090 = vmatmul.f32.gmra.mxu0 %v3676
      %v4091 = vpop.f32.mrf.mxu0
      %v4092 = vadd.f32 0.0, %v4091
      %4093 = vmatmul.f32.gmra.mxu0 %v3679
      %v4094 = vpop.f32.mrf.mxu0
      %v4095 = vadd.f32 0.0, %v4094
      %4096 = vmatmul.f32.gmra.mxu0 %v3682
      %v4097 = vpop.f32.mrf.mxu0
      %v4098 = vadd.f32 0.0, %v4097
      %4099 = vmatmul.f32.gmra.mxu0 %v3685
      %v4100 = vpop.f32.mrf.mxu0
      %v4101 = vadd.f32 0.0, %v4100
      %4102 = vmatmul.f32.gmra.mxu0 %v3688
      %v4103 = vpop.f32.mrf.mxu0
      %v4104 = vadd.f32 0.0, %v4103
      %4105 = vmatmul.f32.gmra.mxu0 %v3691
      %v4106 = vpop.f32.mrf.mxu0
      %v4107 = vadd.f32 0.0, %v4106
      %4108 = vmatmul.f32.gmra.mxu0 %v3694
      %v4109 = vpop.f32.mrf.mxu0
      %v4110 = vadd.f32 0.0, %v4109
      %4111 = vmatmul.f32.gmra.mxu0 %v3697
      %v4112 = vpop.f32.mrf.mxu0
      %v4113 = vadd.f32 0.0, %v4112
      %4114 = vmatmul.f32.gmra.mxu0 %v3700
      %v4115 = vpop.f32.mrf.mxu0
      %v4116 = vadd.f32 0.0, %v4115
      %4117 = vmatmul.f32.gmra.mxu0 %v3703
      %v4118 = vpop.f32.mrf.mxu0
      %v4119 = vadd.f32 0.0, %v4118
      %4120 = vmatmul.f32.gmra.mxu0 %v3706
      %v4121 = vpop.f32.mrf.mxu0
      %v4122 = vadd.f32 0.0, %v4121
      %4123 = vmatmul.f32.gmra.mxu0 %v4048
      %v4124 = vpop.f32.mrf.mxu0
      %v4125 = vadd.f32 0.0, %v4124
      %4126 = vmatmul.f32.gmra.mxu0 %v4051
      %v4127 = vpop.f32.mrf.mxu0
      %v4128 = vadd.f32 0.0, %v4127
      %4129 = vdwg.mxu0
      %4130 = vmatpush.msra.mxu0 0.0
      %4131 = vmatpush.msra.mxu0 0.0
      %4132 = vmatpush.msra.mxu0 0.0
      %4133 = vmatpush.msra.mxu0 0.0
      %4134 = vmatpush.msra.mxu0 %v4046
      %4135 = vmatpush.msra.mxu0 %v4044
      %4136 = vmatpush.msra.mxu0 %v4042
      %4137 = vmatpush.msra.mxu0 %v4040
      %4138 = vmatpush.msra.mxu0 %v4038
      %4139 = vmatpush.msra.mxu0 %v4036
      %4140 = vmatpush.msra.mxu0 %v4034
      %4141 = vmatpush.msra.mxu0 %v4032
      %4142 = vmatpush.msra.mxu0 %v4030
      %4143 = vmatpush.msra.mxu0 %v4028
      %4144 = vmatpush.msra.mxu0 %v4026
      %4145 = vmatpush.msra.mxu0 %v4024
      %4146 = vmatmul.f32.gmra.mxu0 %v3655
      %v4147 = vpop.f32.mrf.mxu0
      %v4148 = vadd.f32 0.0, %v4147
      %4149 = vmatmul.f32.gmra.mxu0 %v3658
      %v4150 = vpop.f32.mrf.mxu0
      %v4151 = vadd.f32 0.0, %v4150
      %4152 = vmatmul.f32.gmra.mxu0 %v3661
      %v4153 = vpop.f32.mrf.mxu0
      %v4154 = vadd.f32 0.0, %v4153
      %4155 = vmatmul.f32.gmra.mxu0 %v3664
      %v4156 = vpop.f32.mrf.mxu0
      %v4157 = vadd.f32 0.0, %v4156
      %4158 = vmatmul.f32.gmra.mxu0 %v3667
      %v4159 = vpop.f32.mrf.mxu0
      %v4160 = vadd.f32 0.0, %v4159
      %4161 = vmatmul.f32.gmra.mxu0 %v3670
      %v4162 = vpop.f32.mrf.mxu0
      %v4163 = vadd.f32 0.0, %v4162
      %4164 = vmatmul.f32.gmra.mxu0 %v3673
      %v4165 = vpop.f32.mrf.mxu0
      %v4166 = vadd.f32 0.0, %v4165
      %4167 = vmatmul.f32.gmra.mxu0 %v3676
      %v4168 = vpop.f32.mrf.mxu0
      %v4169 = vadd.f32 0.0, %v4168
      %4170 = vmatmul.f32.gmra.mxu0 %v3679
      %v4171 = vpop.f32.mrf.mxu0
      %v4172 = vadd.f32 0.0, %v4171
      %4173 = vmatmul.f32.gmra.mxu0 %v3682
      %v4174 = vpop.f32.mrf.mxu0
      %v4175 = vadd.f32 0.0, %v4174
      %4176 = vmatmul.f32.gmra.mxu0 %v3685
      %v4177 = vpop.f32.mrf.mxu0
      %v4178 = vadd.f32 0.0, %v4177
      %4179 = vmatmul.f32.gmra.mxu0 %v3688
      %v4180 = vpop.f32.mrf.mxu0
      %v4181 = vadd.f32 0.0, %v4180
      %4182 = vmatmul.f32.gmra.mxu0 %v3691
      %v4183 = vpop.f32.mrf.mxu0
      %v4184 = vadd.f32 0.0, %v4183
      %4185 = vmatmul.f32.gmra.mxu0 %v3694
      %v4186 = vpop.f32.mrf.mxu0
      %v4187 = vadd.f32 0.0, %v4186
      %4188 = vmatmul.f32.gmra.mxu0 %v3697
      %v4189 = vpop.f32.mrf.mxu0
      %v4190 = vadd.f32 0.0, %v4189
      %4191 = vmatmul.f32.gmra.mxu0 %v3700
      %v4192 = vpop.f32.mrf.mxu0
      %v4193 = vadd.f32 0.0, %v4192
      %4194 = vmatmul.f32.gmra.mxu0 %v3703
      %v4195 = vpop.f32.mrf.mxu0
      %v4196 = vadd.f32 0.0, %v4195
      %4197 = vmatmul.f32.gmra.mxu0 %v3706
      %v4198 = vpop.f32.mrf.mxu0
      %v4199 = vadd.f32 0.0, %v4198
      %4200 = vmatmul.f32.gmra.mxu0 %v4048
      %v4201 = vpop.f32.mrf.mxu0
      %v4202 = vadd.f32 0.0, %v4201
      %4203 = vmatmul.f32.gmra.mxu0 %v4051
      %v4204 = vpop.f32.mrf.mxu0
      %v4205 = vadd.f32 0.0, %v4204
      %4206 = vdwg.mxu0
      %v4207 = vadd.f32 %v3886, %v4071
      %v4208 = vadd.f32 %v3963, %v4148
      %v4209 = vadd.f32 %v3889, %v4074
      %v4210 = vadd.f32 %v3966, %v4151
      %v4211 = vadd.f32 %v3892, %v4077
      %v4212 = vadd.f32 %v3969, %v4154
      %v4213 = vadd.f32 %v3895, %v4080
      %v4214 = vadd.f32 %v3972, %v4157
      %v4215 = vadd.f32 %v3898, %v4083
      %v4216 = vadd.f32 %v3975, %v4160
      %v4217 = vadd.f32 %v3901, %v4086
      %v4218 = vadd.f32 %v3978, %v4163
      %v4219 = vadd.f32 %v3904, %v4089
      %v4220 = vadd.f32 %v3981, %v4166
      %v4221 = vadd.f32 %v3907, %v4092
      %v4222 = vadd.f32 %v3984, %v4169
      %v4223 = vadd.f32 %v3910, %v4095
      %v4224 = vadd.f32 %v3987, %v4172
      %v4225 = vadd.f32 %v3913, %v4098
      %v4226 = vadd.f32 %v3990, %v4175
      %v4227 = vadd.f32 %v3916, %v4101
      %v4228 = vadd.f32 %v3993, %v4178
      %v4229 = vadd.f32 %v3919, %v4104
      %v4230 = vadd.f32 %v3996, %v4181
      %v4231 = vadd.f32 %v3922, %v4107
      %v4232 = vadd.f32 %v3999, %v4184
      %v4233 = vadd.f32 %v3925, %v4110
      %v4234 = vadd.f32 %v4002, %v4187
      %v4235 = vadd.f32 %v3928, %v4113
      %v4236 = vadd.f32 %v4005, %v4190
      %v4237 = vadd.f32 %v3931, %v4116
      %v4238 = vadd.f32 %v4008, %v4193
      %v4239 = vadd.f32 %v3934, %v4119
      %v4240 = vadd.f32 %v4011, %v4196
      %v4241 = vadd.f32 %v3937, %v4122
      %v4242 = vadd.f32 %v4014, %v4199
      %v4243 = vadd.f32 %v3940, %v4125
      %v4244 = vadd.f32 %v4017, %v4202
      %v4245 = vadd.f32 %v3943, %v4128
      %v4246 = vadd.f32 %v4020, %v4205
      %v4247 = vld [vmem:[%s7] sm:$0x3]
      %v4249 = vperm.slane %v4247, 0
      %v4250 = vperm.slane %v4247, 1
      %v4253 = vadd.f32 %v4207, %v4249
      %v4254 = vadd.f32 %v4208, %v4250
      %v4255 = vadd.f32 %v4209, %v4249
      %v4256 = vadd.f32 %v4210, %v4250
      %v4257 = vadd.f32 %v4211, %v4249
      %v4258 = vadd.f32 %v4212, %v4250
      %v4259 = vadd.f32 %v4213, %v4249
      %v4260 = vadd.f32 %v4214, %v4250
      %v4261 = vadd.f32 %v4215, %v4249
      %v4262 = vadd.f32 %v4216, %v4250
      %v4263 = vadd.f32 %v4217, %v4249
      %v4264 = vadd.f32 %v4218, %v4250
      %v4265 = vadd.f32 %v4219, %v4249
      %v4266 = vadd.f32 %v4220, %v4250
      %v4267 = vadd.f32 %v4221, %v4249
      %v4268 = vadd.f32 %v4222, %v4250
      %v4269 = vadd.f32 %v4223, %v4249
      %v4270 = vadd.f32 %v4224, %v4250
      %v4271 = vadd.f32 %v4225, %v4249
      %v4272 = vadd.f32 %v4226, %v4250
      %v4273 = vadd.f32 %v4227, %v4249
      %v4274 = vadd.f32 %v4228, %v4250
      %v4275 = vadd.f32 %v4229, %v4249
      %v4276 = vadd.f32 %v4230, %v4250
      %v4277 = vadd.f32 %v4231, %v4249
      %v4278 = vadd.f32 %v4232, %v4250
      %v4279 = vadd.f32 %v4233, %v4249
      %v4280 = vadd.f32 %v4234, %v4250
      %v4281 = vadd.f32 %v4235, %v4249
      %v4282 = vadd.f32 %v4236, %v4250
      %v4283 = vadd.f32 %v4237, %v4249
      %v4284 = vadd.f32 %v4238, %v4250
      %v4285 = vadd.f32 %v4239, %v4249
      %v4286 = vadd.f32 %v4240, %v4250
      %v4287 = vadd.f32 %v4241, %v4249
      %v4288 = vadd.f32 %v4242, %v4250
      %v4289 = vadd.f32 %v4243, %v4249
      %v4290 = vadd.f32 %v4244, %v4250
      %v4291 = vadd.f32 %v4245, %v4249
      %v4292 = vadd.f32 %v4246, %v4250
      %v4293 = vmax.f32 %v4253, 0.0
      %v4294 = vmax.f32 %v4254, 0.0
      %v4295 = vmax.f32 %v4255, 0.0
      %v4296 = vmax.f32 %v4256, 0.0
      %v4297 = vmax.f32 %v4257, 0.0
      %v4298 = vmax.f32 %v4258, 0.0
      %v4299 = vmax.f32 %v4259, 0.0
      %v4300 = vmax.f32 %v4260, 0.0
      %v4301 = vmax.f32 %v4261, 0.0
      %v4302 = vmax.f32 %v4262, 0.0
      %v4303 = vmax.f32 %v4263, 0.0
      %v4304 = vmax.f32 %v4264, 0.0
      %v4305 = vmax.f32 %v4265, 0.0
      %v4306 = vmax.f32 %v4266, 0.0
      %v4307 = vmax.f32 %v4267, 0.0
      %v4308 = vmax.f32 %v4268, 0.0
      %v4309 = vmax.f32 %v4269, 0.0
      %v4310 = vmax.f32 %v4270, 0.0
      %v4311 = vmax.f32 %v4271, 0.0
      %v4312 = vmax.f32 %v4272, 0.0
      %v4313 = vmax.f32 %v4273, 0.0
      %v4314 = vmax.f32 %v4274, 0.0
      %v4315 = vmax.f32 %v4275, 0.0
      %v4316 = vmax.f32 %v4276, 0.0
      %v4317 = vmax.f32 %v4277, 0.0
      %v4318 = vmax.f32 %v4278, 0.0
      %v4319 = vmax.f32 %v4279, 0.0
      %v4320 = vmax.f32 %v4280, 0.0
      %v4321 = vmax.f32 %v4281, 0.0
      %v4322 = vmax.f32 %v4282, 0.0
      %v4323 = vmax.f32 %v4283, 0.0
      %v4324 = vmax.f32 %v4284, 0.0
      %v4325 = vmax.f32 %v4285, 0.0
      %v4326 = vmax.f32 %v4286, 0.0
      %v4327 = vmax.f32 %v4287, 0.0
      %v4328 = vmax.f32 %v4288, 0.0
      %v4329 = vmax.f32 %v4289, 0.0
      %v4330 = vmax.f32 %v4290, 0.0
      %v4331 = vmax.f32 %v4291, 0.0
      %v4332 = vmax.f32 %v4292, 0.0
      %v4333 = vld [vmem:[%s8] sm:$0xff]
      %v4334 = vld [vmem:[%s8 + $0x8] sm:$0xff]
      %v4335 = vld [vmem:[%s8 + $0x10] sm:$0xff]
      %v4336 = vld [vmem:[%s8 + $0x18] sm:$0xff]
      %v4337 = vld [vmem:[%s8 + $0x20] sm:$0xff]
      %v4338 = vld [vmem:[%s8 + $0x28] sm:$0xff]
      %v4339 = vld [vmem:[%s8 + $0x30] sm:$0xff]
      %v4340 = vld [vmem:[%s8 + $0x38] sm:$0xff]
      %v4341 = vld [vmem:[%s8 + $0x40] sm:$0xff]
      %v4342 = vld [vmem:[%s8 + $0x48] sm:$0xff]
      %v4343 = vld [vmem:[%s8 + $0x50] sm:$0xff]
      %v4344 = vld [vmem:[%s8 + $0x58] sm:$0xff]
      %v4345 = vld [vmem:[%s8 + $0x60] sm:$0xff]
      %v4346 = vld [vmem:[%s8 + $0x68] sm:$0xff]
      %v4347 = vld [vmem:[%s8 + $0x70] sm:$0xff]
      %v4348 = vld [vmem:[%s8 + $0x78] sm:$0xff]
      %v4349 = vld [vmem:[%s8 + $0x80] sm:$0xff]
      %v4350 = vld [vmem:[%s8 + $0x88] sm:$0xff]
      %v4351 = vld [vmem:[%s8 + $0x90] sm:$0xff]
      %v4352 = vld [vmem:[%s8 + $0x98] sm:$0xff]
      %v4353 = vld [vmem:[%s8 + $0xa0] sm:$0xff]
      %v4354 = vld [vmem:[%s8 + $0xa8] sm:$0xff]
      %v4355 = vld [vmem:[%s8 + $0xb0] sm:$0xff]
      %v4356 = vld [vmem:[%s8 + $0xb8] sm:$0xff]
      %v4357 = vld [vmem:[%s8 + $0xc0] sm:$0xff]
      %v4358 = vld [vmem:[%s8 + $0xc8] sm:$0xff]
      %v4359 = vld [vmem:[%s8 + $0xd0] sm:$0xff]
      %v4360 = vld [vmem:[%s8 + $0xd8] sm:$0xff]
      %v4361 = vld [vmem:[%s8 + $0xe0] sm:$0xff]
      %v4362 = vld [vmem:[%s8 + $0xe8] sm:$0xff]
      %v4363 = vld [vmem:[%s8 + $0xf0] sm:$0xff]
      %v4364 = vld [vmem:[%s8 + $0xf8] sm:$0xff]
      %v4365 = vld [vmem:[%s8 + $0x100] sm:$0xff]
      %v4366 = vld [vmem:[%s8 + $0x108] sm:$0xff]
      %v4367 = vld [vmem:[%s8 + $0x110] sm:$0xff]
      %v4368 = vld [vmem:[%s8 + $0x118] sm:$0xff]
      %v4369 = vld [vmem:[%s8 + $0x120] sm:$0xff]
      %v4370 = vld [vmem:[%s8 + $0x128] sm:$0xff]
      %v4371 = vld [vmem:[%s8 + $0x130] sm:$0xff]
      %v4372 = vld [vmem:[%s8 + $0x138] sm:$0xff]
      %s4373 = scalar_lea.vmem %s8, 320
      %v4374 = vld [vmem:[%s4373] sm:$0xff]
      %v4375 = vld [vmem:[%s4373 + $0x8] sm:$0xff]
      %v4376 = vld [vmem:[%s4373 + $0x10] sm:$0xff]
      %v4377 = vld [vmem:[%s4373 + $0x18] sm:$0xff]
      %v4378 = vld [vmem:[%s4373 + $0x20] sm:$0xff]
      %v4379 = vld [vmem:[%s4373 + $0x28] sm:$0xff]
      %v4380 = vld [vmem:[%s4373 + $0x30] sm:$0xff]
      %v4381 = vld [vmem:[%s4373 + $0x38] sm:$0xff]
      %v4382 = vld [vmem:[%s4373 + $0x40] sm:$0xff]
      %v4383 = vld [vmem:[%s4373 + $0x48] sm:$0xff]
      %v4384 = vld [vmem:[%s4373 + $0x50] sm:$0xff]
      %v4385 = vld [vmem:[%s4373 + $0x58] sm:$0xff]
      %v4386 = vld [vmem:[%s4373 + $0x60] sm:$0xff]
      %v4387 = vld [vmem:[%s4373 + $0x68] sm:$0xff]
      %v4388 = vld [vmem:[%s4373 + $0x70] sm:$0xff]
      %v4389 = vld [vmem:[%s4373 + $0x78] sm:$0xff]
      %v4390 = vld [vmem:[%s4373 + $0x80] sm:$0xff]
      %v4391 = vld [vmem:[%s4373 + $0x88] sm:$0xff]
      %v4392 = vld [vmem:[%s4373 + $0x90] sm:$0xff]
      %v4393 = vld [vmem:[%s4373 + $0x98] sm:$0xff]
      %v4394 = vld [vmem:[%s4373 + $0xa0] sm:$0xff]
      %v4395 = vld [vmem:[%s4373 + $0xa8] sm:$0xff]
      %v4396 = vld [vmem:[%s4373 + $0xb0] sm:$0xff]
      %v4397 = vld [vmem:[%s4373 + $0xb8] sm:$0xff]
      %v4398 = vld [vmem:[%s4373 + $0xc0] sm:$0xff]
      %v4399 = vld [vmem:[%s4373 + $0xc8] sm:$0xff]
      %v4400 = vld [vmem:[%s4373 + $0xd0] sm:$0xff]
      %v4401 = vld [vmem:[%s4373 + $0xd8] sm:$0xff]
      %v4402 = vld [vmem:[%s4373 + $0xe0] sm:$0xff]
      %v4403 = vld [vmem:[%s4373 + $0xe8] sm:$0xff]
      %v4404 = vld [vmem:[%s4373 + $0xf0] sm:$0xff]
      %v4405 = vld [vmem:[%s4373 + $0xf8] sm:$0xff]
      %v4406 = vld [vmem:[%s4373 + $0x100] sm:$0xff]
      %v4407 = vld [vmem:[%s4373 + $0x108] sm:$0xff]
      %v4408 = vld [vmem:[%s4373 + $0x110] sm:$0xff]
      %v4409 = vld [vmem:[%s4373 + $0x118] sm:$0xff]
      %v4410 = vld [vmem:[%s4373 + $0x120] sm:$0xff]
      %v4411 = vld [vmem:[%s4373 + $0x128] sm:$0xff]
      %v4412 = vld [vmem:[%s4373 + $0x130] sm:$0xff]
      %v4413 = vld [vmem:[%s4373 + $0x138] sm:$0xff]
      %vm4414 = vcmask 261120
      %v4416 = vsel %vm4414, %v4298, 0
      %v4419 = vsel %vm4414, %v4300, 0
      %v4422 = vsel %vm4414, %v4302, 0
      %v4425 = vsel %vm4414, %v4304, 0
      %v4428 = vsel %vm4414, %v4306, 0
      %v4431 = vsel %vm4414, %v4308, 0
      %v4434 = vsel %vm4414, %v4310, 0
      %v4437 = vsel %vm4414, %v4312, 0
      %v4440 = vsel %vm4414, %v4314, 0
      %v4443 = vsel %vm4414, %v4316, 0
      %v4446 = vsel %vm4414, %v4318, 0
      %v4449 = vsel %vm4414, %v4320, 0
      %v4452 = vsel %vm4414, %v4322, 0
      %v4455 = vsel %vm4414, %v4324, 0
      %v4458 = vsel %vm4414, %v4326, 0
      %v4461 = vsel %vm4414, %v4328, 0
      %4463 = vmatpush.msra.mxu0 %v4404
      %4464 = vmatpush.msra.mxu0 %v4402
      %4465 = vmatpush.msra.mxu0 %v4400
      %4466 = vmatpush.msra.mxu0 %v4398
      %4467 = vmatpush.msra.mxu0 %v4396
      %4468 = vmatpush.msra.mxu0 %v4394
      %4469 = vmatpush.msra.mxu0 %v4392
      %4470 = vmatpush.msra.mxu0 %v4390
      %4471 = vmatpush.msra.mxu0 %v4388
      %4472 = vmatpush.msra.mxu0 %v4386
      %4473 = vmatpush.msra.mxu0 %v4384
      %4474 = vmatpush.msra.mxu0 %v4382
      %4475 = vmatpush.msra.mxu0 %v4380
      %4476 = vmatpush.msra.mxu0 %v4378
      %4477 = vmatpush.msra.mxu0 %v4376
      %4478 = vmatpush.msra.mxu0 %v4374
      %4479 = vmatmul.f32.gmra.mxu0 %v4297
      %v4480 = vpop.f32.mrf.mxu0
      %v4481 = vadd.f32 0.0, %v4480
      %4482 = vmatmul.f32.gmra.mxu0 %v4299
      %v4483 = vpop.f32.mrf.mxu0
      %v4484 = vadd.f32 0.0, %v4483
      %4485 = vmatmul.f32.gmra.mxu0 %v4301
      %v4486 = vpop.f32.mrf.mxu0
      %v4487 = vadd.f32 0.0, %v4486
      %4488 = vmatmul.f32.gmra.mxu0 %v4303
      %v4489 = vpop.f32.mrf.mxu0
      %v4490 = vadd.f32 0.0, %v4489
      %4491 = vmatmul.f32.gmra.mxu0 %v4305
      %v4492 = vpop.f32.mrf.mxu0
      %v4493 = vadd.f32 0.0, %v4492
      %4494 = vmatmul.f32.gmra.mxu0 %v4307
      %v4495 = vpop.f32.mrf.mxu0
      %v4496 = vadd.f32 0.0, %v4495
      %4497 = vmatmul.f32.gmra.mxu0 %v4309
      %v4498 = vpop.f32.mrf.mxu0
      %v4499 = vadd.f32 0.0, %v4498
      %4500 = vmatmul.f32.gmra.mxu0 %v4311
      %v4501 = vpop.f32.mrf.mxu0
      %v4502 = vadd.f32 0.0, %v4501
      %4503 = vmatmul.f32.gmra.mxu0 %v4313
      %v4504 = vpop.f32.mrf.mxu0
      %v4505 = vadd.f32 0.0, %v4504
      %4506 = vmatmul.f32.gmra.mxu0 %v4315
      %v4507 = vpop.f32.mrf.mxu0
      %v4508 = vadd.f32 0.0, %v4507
      %4509 = vmatmul.f32.gmra.mxu0 %v4317
      %v4510 = vpop.f32.mrf.mxu0
      %v4511 = vadd.f32 0.0, %v4510
      %4512 = vmatmul.f32.gmra.mxu0 %v4319
      %v4513 = vpop.f32.mrf.mxu0
      %v4514 = vadd.f32 0.0, %v4513
      %4515 = vmatmul.f32.gmra.mxu0 %v4321
      %v4516 = vpop.f32.mrf.mxu0
      %v4517 = vadd.f32 0.0, %v4516
      %4518 = vmatmul.f32.gmra.mxu0 %v4323
      %v4519 = vpop.f32.mrf.mxu0
      %v4520 = vadd.f32 0.0, %v4519
      %4521 = vmatmul.f32.gmra.mxu0 %v4325
      %v4522 = vpop.f32.mrf.mxu0
      %v4523 = vadd.f32 0.0, %v4522
      %4524 = vmatmul.f32.gmra.mxu0 %v4327
      %v4525 = vpop.f32.mrf.mxu0
      %v4526 = vadd.f32 0.0, %v4525
      %4527 = vdwg.mxu0
      %4528 = vmatpush.msra.mxu0 0.0
      %4529 = vmatpush.msra.mxu0 0.0
      %4530 = vmatpush.msra.mxu0 0.0
      %4531 = vmatpush.msra.mxu0 0.0
      %4532 = vmatpush.msra.mxu0 0.0
      %4533 = vmatpush.msra.mxu0 0.0
      %4534 = vmatpush.msra.mxu0 0.0
      %4535 = vmatpush.msra.mxu0 0.0
      %4536 = vmatpush.msra.mxu0 0.0
      %4537 = vmatpush.msra.mxu0 0.0
      %4538 = vmatpush.msra.mxu0 0.0
      %4539 = vmatpush.msra.mxu0 0.0
      %4540 = vmatpush.msra.mxu0 %v4412
      %4541 = vmatpush.msra.mxu0 %v4410
      %4542 = vmatpush.msra.mxu0 %v4408
      %4543 = vmatpush.msra.mxu0 %v4406
      %4544 = vmatmul.f32.gmra.mxu0 %v4416
      %v4545 = vpop.f32.mrf.mxu0
      %v4546 = vadd.f32 %v4481, %v4545
      %4547 = vmatmul.f32.gmra.mxu0 %v4419
      %v4548 = vpop.f32.mrf.mxu0
      %v4549 = vadd.f32 %v4484, %v4548
      %4550 = vmatmul.f32.gmra.mxu0 %v4422
      %v4551 = vpop.f32.mrf.mxu0
      %v4552 = vadd.f32 %v4487, %v4551
      %4553 = vmatmul.f32.gmra.mxu0 %v4425
      %v4554 = vpop.f32.mrf.mxu0
      %v4555 = vadd.f32 %v4490, %v4554
      %4556 = vmatmul.f32.gmra.mxu0 %v4428
      %v4557 = vpop.f32.mrf.mxu0
      %v4558 = vadd.f32 %v4493, %v4557
      %4559 = vmatmul.f32.gmra.mxu0 %v4431
      %v4560 = vpop.f32.mrf.mxu0
      %v4561 = vadd.f32 %v4496, %v4560
      %4562 = vmatmul.f32.gmra.mxu0 %v4434
      %v4563 = vpop.f32.mrf.mxu0
      %v4564 = vadd.f32 %v4499, %v4563
      %4565 = vmatmul.f32.gmra.mxu0 %v4437
      %v4566 = vpop.f32.mrf.mxu0
      %v4567 = vadd.f32 %v4502, %v4566
      %4568 = vmatmul.f32.gmra.mxu0 %v4440
      %v4569 = vpop.f32.mrf.mxu0
      %v4570 = vadd.f32 %v4505, %v4569
      %4571 = vmatmul.f32.gmra.mxu0 %v4443
      %v4572 = vpop.f32.mrf.mxu0
      %v4573 = vadd.f32 %v4508, %v4572
      %4574 = vmatmul.f32.gmra.mxu0 %v4446
      %v4575 = vpop.f32.mrf.mxu0
      %v4576 = vadd.f32 %v4511, %v4575
      %4577 = vmatmul.f32.gmra.mxu0 %v4449
      %v4578 = vpop.f32.mrf.mxu0
      %v4579 = vadd.f32 %v4514, %v4578
      %4580 = vmatmul.f32.gmra.mxu0 %v4452
      %v4581 = vpop.f32.mrf.mxu0
      %v4582 = vadd.f32 %v4517, %v4581
      %4583 = vmatmul.f32.gmra.mxu0 %v4455
      %v4584 = vpop.f32.mrf.mxu0
      %v4585 = vadd.f32 %v4520, %v4584
      %4586 = vmatmul.f32.gmra.mxu0 %v4458
      %v4587 = vpop.f32.mrf.mxu0
      %v4588 = vadd.f32 %v4523, %v4587
      %4589 = vmatmul.f32.gmra.mxu0 %v4461
      %v4590 = vpop.f32.mrf.mxu0
      %v4591 = vadd.f32 %v4526, %v4590
      %4592 = vdwg.mxu0
      %4593 = vmatpush.msra.mxu0 %v4405
      %4594 = vmatpush.msra.mxu0 %v4403
      %4595 = vmatpush.msra.mxu0 %v4401
      %4596 = vmatpush.msra.mxu0 %v4399
      %4597 = vmatpush.msra.mxu0 %v4397
      %4598 = vmatpush.msra.mxu0 %v4395
      %4599 = vmatpush.msra.mxu0 %v4393
      %4600 = vmatpush.msra.mxu0 %v4391
      %4601 = vmatpush.msra.mxu0 %v4389
      %4602 = vmatpush.msra.mxu0 %v4387
      %4603 = vmatpush.msra.mxu0 %v4385
      %4604 = vmatpush.msra.mxu0 %v4383
      %4605 = vmatpush.msra.mxu0 %v4381
      %4606 = vmatpush.msra.mxu0 %v4379
      %4607 = vmatpush.msra.mxu0 %v4377
      %4608 = vmatpush.msra.mxu0 %v4375
      %4609 = vmatmul.f32.gmra.mxu0 %v4297
      %v4610 = vpop.f32.mrf.mxu0
      %v4611 = vadd.f32 0.0, %v4610
      %4612 = vmatmul.f32.gmra.mxu0 %v4299
      %v4613 = vpop.f32.mrf.mxu0
      %v4614 = vadd.f32 0.0, %v4613
      %4615 = vmatmul.f32.gmra.mxu0 %v4301
      %v4616 = vpop.f32.mrf.mxu0
      %v4617 = vadd.f32 0.0, %v4616
      %4618 = vmatmul.f32.gmra.mxu0 %v4303
      %v4619 = vpop.f32.mrf.mxu0
      %v4620 = vadd.f32 0.0, %v4619
      %4621 = vmatmul.f32.gmra.mxu0 %v4305
      %v4622 = vpop.f32.mrf.mxu0
      %v4623 = vadd.f32 0.0, %v4622
      %4624 = vmatmul.f32.gmra.mxu0 %v4307
      %v4625 = vpop.f32.mrf.mxu0
      %v4626 = vadd.f32 0.0, %v4625
      %4627 = vmatmul.f32.gmra.mxu0 %v4309
      %v4628 = vpop.f32.mrf.mxu0
      %v4629 = vadd.f32 0.0, %v4628
      %4630 = vmatmul.f32.gmra.mxu0 %v4311
      %v4631 = vpop.f32.mrf.mxu0
      %v4632 = vadd.f32 0.0, %v4631
      %4633 = vmatmul.f32.gmra.mxu0 %v4313
      %v4634 = vpop.f32.mrf.mxu0
      %v4635 = vadd.f32 0.0, %v4634
      %4636 = vmatmul.f32.gmra.mxu0 %v4315
      %v4637 = vpop.f32.mrf.mxu0
      %v4638 = vadd.f32 0.0, %v4637
      %4639 = vmatmul.f32.gmra.mxu0 %v4317
      %v4640 = vpop.f32.mrf.mxu0
      %v4641 = vadd.f32 0.0, %v4640
      %4642 = vmatmul.f32.gmra.mxu0 %v4319
      %v4643 = vpop.f32.mrf.mxu0
      %v4644 = vadd.f32 0.0, %v4643
      %4645 = vmatmul.f32.gmra.mxu0 %v4321
      %v4646 = vpop.f32.mrf.mxu0
      %v4647 = vadd.f32 0.0, %v4646
      %4648 = vmatmul.f32.gmra.mxu0 %v4323
      %v4649 = vpop.f32.mrf.mxu0
      %v4650 = vadd.f32 0.0, %v4649
      %4651 = vmatmul.f32.gmra.mxu0 %v4325
      %v4652 = vpop.f32.mrf.mxu0
      %v4653 = vadd.f32 0.0, %v4652
      %4654 = vmatmul.f32.gmra.mxu0 %v4327
      %v4655 = vpop.f32.mrf.mxu0
      %v4656 = vadd.f32 0.0, %v4655
      %4657 = vdwg.mxu0
      %4658 = vmatpush.msra.mxu0 0.0
      %4659 = vmatpush.msra.mxu0 0.0
      %4660 = vmatpush.msra.mxu0 0.0
      %4661 = vmatpush.msra.mxu0 0.0
      %4662 = vmatpush.msra.mxu0 0.0
      %4663 = vmatpush.msra.mxu0 0.0
      %4664 = vmatpush.msra.mxu0 0.0
      %4665 = vmatpush.msra.mxu0 0.0
      %4666 = vmatpush.msra.mxu0 0.0
      %4667 = vmatpush.msra.mxu0 0.0
      %4668 = vmatpush.msra.mxu0 0.0
      %4669 = vmatpush.msra.mxu0 0.0
      %4670 = vmatpush.msra.mxu0 %v4413
      %4671 = vmatpush.msra.mxu0 %v4411
      %4672 = vmatpush.msra.mxu0 %v4409
      %4673 = vmatpush.msra.mxu0 %v4407
      %4674 = vmatmul.f32.gmra.mxu0 %v4416
      %v4675 = vpop.f32.mrf.mxu0
      %v4676 = vadd.f32 %v4611, %v4675
      %4677 = vmatmul.f32.gmra.mxu0 %v4419
      %v4678 = vpop.f32.mrf.mxu0
      %v4679 = vadd.f32 %v4614, %v4678
      %4680 = vmatmul.f32.gmra.mxu0 %v4422
      %v4681 = vpop.f32.mrf.mxu0
      %v4682 = vadd.f32 %v4617, %v4681
      %4683 = vmatmul.f32.gmra.mxu0 %v4425
      %v4684 = vpop.f32.mrf.mxu0
      %v4685 = vadd.f32 %v4620, %v4684
      %4686 = vmatmul.f32.gmra.mxu0 %v4428
      %v4687 = vpop.f32.mrf.mxu0
      %v4688 = vadd.f32 %v4623, %v4687
      %4689 = vmatmul.f32.gmra.mxu0 %v4431
      %v4690 = vpop.f32.mrf.mxu0
      %v4691 = vadd.f32 %v4626, %v4690
      %4692 = vmatmul.f32.gmra.mxu0 %v4434
      %v4693 = vpop.f32.mrf.mxu0
      %v4694 = vadd.f32 %v4629, %v4693
      %4695 = vmatmul.f32.gmra.mxu0 %v4437
      %v4696 = vpop.f32.mrf.mxu0
      %v4697 = vadd.f32 %v4632, %v4696
      %4698 = vmatmul.f32.gmra.mxu0 %v4440
      %v4699 = vpop.f32.mrf.mxu0
      %v4700 = vadd.f32 %v4635, %v4699
      %4701 = vmatmul.f32.gmra.mxu0 %v4443
      %v4702 = vpop.f32.mrf.mxu0
      %v4703 = vadd.f32 %v4638, %v4702
      %4704 = vmatmul.f32.gmra.mxu0 %v4446
      %v4705 = vpop.f32.mrf.mxu0
      %v4706 = vadd.f32 %v4641, %v4705
      %4707 = vmatmul.f32.gmra.mxu0 %v4449
      %v4708 = vpop.f32.mrf.mxu0
      %v4709 = vadd.f32 %v4644, %v4708
      %4710 = vmatmul.f32.gmra.mxu0 %v4452
      %v4711 = vpop.f32.mrf.mxu0
      %v4712 = vadd.f32 %v4647, %v4711
      %4713 = vmatmul.f32.gmra.mxu0 %v4455
      %v4714 = vpop.f32.mrf.mxu0
      %v4715 = vadd.f32 %v4650, %v4714
      %4716 = vmatmul.f32.gmra.mxu0 %v4458
      %v4717 = vpop.f32.mrf.mxu0
      %v4718 = vadd.f32 %v4653, %v4717
      %4719 = vmatmul.f32.gmra.mxu0 %v4461
      %v4720 = vpop.f32.mrf.mxu0
      %v4721 = vadd.f32 %v4656, %v4720
      %4722 = vdwg.mxu0
      %v4724 = vsel %vm4414, %v4294, 0
      %v4727 = vsel %vm4414, %v4296, 0
      %4729 = vmatpush.msra.mxu0 %v4363
      %4730 = vmatpush.msra.mxu0 %v4361
      %4731 = vmatpush.msra.mxu0 %v4359
      %4732 = vmatpush.msra.mxu0 %v4357
      %4733 = vmatpush.msra.mxu0 %v4355
      %4734 = vmatpush.msra.mxu0 %v4353
      %4735 = vmatpush.msra.mxu0 %v4351
      %4736 = vmatpush.msra.mxu0 %v4349
      %4737 = vmatpush.msra.mxu0 %v4347
      %4738 = vmatpush.msra.mxu0 %v4345
      %4739 = vmatpush.msra.mxu0 %v4343
      %4740 = vmatpush.msra.mxu0 %v4341
      %4741 = vmatpush.msra.mxu0 %v4339
      %4742 = vmatpush.msra.mxu0 %v4337
      %4743 = vmatpush.msra.mxu0 %v4335
      %4744 = vmatpush.msra.mxu0 %v4333
      %4745 = vmatmul.f32.gmra.mxu0 %v4293
      %v4746 = vpop.f32.mrf.mxu0
      %v4747 = vadd.f32 %v4546, %v4746
      %4748 = vmatmul.f32.gmra.mxu0 %v4295
      %v4749 = vpop.f32.mrf.mxu0
      %v4750 = vadd.f32 %v4549, %v4749
      %4751 = vmatmul.f32.gmra.mxu0 %v4297
      %v4752 = vpop.f32.mrf.mxu0
      %v4753 = vadd.f32 %v4552, %v4752
      %4754 = vmatmul.f32.gmra.mxu0 %v4299
      %v4755 = vpop.f32.mrf.mxu0
      %v4756 = vadd.f32 %v4555, %v4755
      %4757 = vmatmul.f32.gmra.mxu0 %v4301
      %v4758 = vpop.f32.mrf.mxu0
      %v4759 = vadd.f32 %v4558, %v4758
      %4760 = vmatmul.f32.gmra.mxu0 %v4303
      %v4761 = vpop.f32.mrf.mxu0
      %v4762 = vadd.f32 %v4561, %v4761
      %4763 = vmatmul.f32.gmra.mxu0 %v4305
      %v4764 = vpop.f32.mrf.mxu0
      %v4765 = vadd.f32 %v4564, %v4764
      %4766 = vmatmul.f32.gmra.mxu0 %v4307
      %v4767 = vpop.f32.mrf.mxu0
      %v4768 = vadd.f32 %v4567, %v4767
      %4769 = vmatmul.f32.gmra.mxu0 %v4309
      %v4770 = vpop.f32.mrf.mxu0
      %v4771 = vadd.f32 %v4570, %v4770
      %4772 = vmatmul.f32.gmra.mxu0 %v4311
      %v4773 = vpop.f32.mrf.mxu0
      %v4774 = vadd.f32 %v4573, %v4773
      %4775 = vmatmul.f32.gmra.mxu0 %v4313
      %v4776 = vpop.f32.mrf.mxu0
      %v4777 = vadd.f32 %v4576, %v4776
      %4778 = vmatmul.f32.gmra.mxu0 %v4315
      %v4779 = vpop.f32.mrf.mxu0
      %v4780 = vadd.f32 %v4579, %v4779
      %4781 = vmatmul.f32.gmra.mxu0 %v4317
      %v4782 = vpop.f32.mrf.mxu0
      %v4783 = vadd.f32 %v4582, %v4782
      %4784 = vmatmul.f32.gmra.mxu0 %v4319
      %v4785 = vpop.f32.mrf.mxu0
      %v4786 = vadd.f32 %v4585, %v4785
      %4787 = vmatmul.f32.gmra.mxu0 %v4321
      %v4788 = vpop.f32.mrf.mxu0
      %v4789 = vadd.f32 %v4588, %v4788
      %4790 = vmatmul.f32.gmra.mxu0 %v4323
      %v4791 = vpop.f32.mrf.mxu0
      %v4792 = vadd.f32 %v4591, %v4791
      %4793 = vdwg.mxu0
      %4794 = vmatpush.msra.mxu0 0.0
      %4795 = vmatpush.msra.mxu0 0.0
      %4796 = vmatpush.msra.mxu0 0.0
      %4797 = vmatpush.msra.mxu0 0.0
      %4798 = vmatpush.msra.mxu0 0.0
      %4799 = vmatpush.msra.mxu0 0.0
      %4800 = vmatpush.msra.mxu0 0.0
      %4801 = vmatpush.msra.mxu0 0.0
      %4802 = vmatpush.msra.mxu0 0.0
      %4803 = vmatpush.msra.mxu0 0.0
      %4804 = vmatpush.msra.mxu0 0.0
      %4805 = vmatpush.msra.mxu0 0.0
      %4806 = vmatpush.msra.mxu0 %v4371
      %4807 = vmatpush.msra.mxu0 %v4369
      %4808 = vmatpush.msra.mxu0 %v4367
      %4809 = vmatpush.msra.mxu0 %v4365
      %4810 = vmatmul.f32.gmra.mxu0 %v4724
      %v4811 = vpop.f32.mrf.mxu0
      %v4812 = vadd.f32 %v4747, %v4811
      %4813 = vmatmul.f32.gmra.mxu0 %v4727
      %v4814 = vpop.f32.mrf.mxu0
      %v4815 = vadd.f32 %v4750, %v4814
      %4816 = vmatmul.f32.gmra.mxu0 %v4416
      %v4817 = vpop.f32.mrf.mxu0
      %v4818 = vadd.f32 %v4753, %v4817
      %4819 = vmatmul.f32.gmra.mxu0 %v4419
      %v4820 = vpop.f32.mrf.mxu0
      %v4821 = vadd.f32 %v4756, %v4820
      %4822 = vmatmul.f32.gmra.mxu0 %v4422
      %v4823 = vpop.f32.mrf.mxu0
      %v4824 = vadd.f32 %v4759, %v4823
      %4825 = vmatmul.f32.gmra.mxu0 %v4425
      %v4826 = vpop.f32.mrf.mxu0
      %v4827 = vadd.f32 %v4762, %v4826
      %4828 = vmatmul.f32.gmra.mxu0 %v4428
      %v4829 = vpop.f32.mrf.mxu0
      %v4830 = vadd.f32 %v4765, %v4829
      %4831 = vmatmul.f32.gmra.mxu0 %v4431
      %v4832 = vpop.f32.mrf.mxu0
      %v4833 = vadd.f32 %v4768, %v4832
      %4834 = vmatmul.f32.gmra.mxu0 %v4434
      %v4835 = vpop.f32.mrf.mxu0
      %v4836 = vadd.f32 %v4771, %v4835
      %4837 = vmatmul.f32.gmra.mxu0 %v4437
      %v4838 = vpop.f32.mrf.mxu0
      %v4839 = vadd.f32 %v4774, %v4838
      %4840 = vmatmul.f32.gmra.mxu0 %v4440
      %v4841 = vpop.f32.mrf.mxu0
      %v4842 = vadd.f32 %v4777, %v4841
      %4843 = vmatmul.f32.gmra.mxu0 %v4443
      %v4844 = vpop.f32.mrf.mxu0
      %v4845 = vadd.f32 %v4780, %v4844
      %4846 = vmatmul.f32.gmra.mxu0 %v4446
      %v4847 = vpop.f32.mrf.mxu0
      %v4848 = vadd.f32 %v4783, %v4847
      %4849 = vmatmul.f32.gmra.mxu0 %v4449
      %v4850 = vpop.f32.mrf.mxu0
      %v4851 = vadd.f32 %v4786, %v4850
      %4852 = vmatmul.f32.gmra.mxu0 %v4452
      %v4853 = vpop.f32.mrf.mxu0
      %v4854 = vadd.f32 %v4789, %v4853
      %4855 = vmatmul.f32.gmra.mxu0 %v4455
      %v4856 = vpop.f32.mrf.mxu0
      %v4857 = vadd.f32 %v4792, %v4856
      %4858 = vdwg.mxu0
      %4859 = vmatpush.msra.mxu0 %v4364
      %4860 = vmatpush.msra.mxu0 %v4362
      %4861 = vmatpush.msra.mxu0 %v4360
      %4862 = vmatpush.msra.mxu0 %v4358
      %4863 = vmatpush.msra.mxu0 %v4356
      %4864 = vmatpush.msra.mxu0 %v4354
      %4865 = vmatpush.msra.mxu0 %v4352
      %4866 = vmatpush.msra.mxu0 %v4350
      %4867 = vmatpush.msra.mxu0 %v4348
      %4868 = vmatpush.msra.mxu0 %v4346
      %4869 = vmatpush.msra.mxu0 %v4344
      %4870 = vmatpush.msra.mxu0 %v4342
      %4871 = vmatpush.msra.mxu0 %v4340
      %4872 = vmatpush.msra.mxu0 %v4338
      %4873 = vmatpush.msra.mxu0 %v4336
      %4874 = vmatpush.msra.mxu0 %v4334
      %4875 = vmatmul.f32.gmra.mxu0 %v4293
      %v4876 = vpop.f32.mrf.mxu0
      %v4877 = vadd.f32 %v4676, %v4876
      %4878 = vmatmul.f32.gmra.mxu0 %v4295
      %v4879 = vpop.f32.mrf.mxu0
      %v4880 = vadd.f32 %v4679, %v4879
      %4881 = vmatmul.f32.gmra.mxu0 %v4297
      %v4882 = vpop.f32.mrf.mxu0
      %v4883 = vadd.f32 %v4682, %v4882
      %4884 = vmatmul.f32.gmra.mxu0 %v4299
      %v4885 = vpop.f32.mrf.mxu0
      %v4886 = vadd.f32 %v4685, %v4885
      %4887 = vmatmul.f32.gmra.mxu0 %v4301
      %v4888 = vpop.f32.mrf.mxu0
      %v4889 = vadd.f32 %v4688, %v4888
      %4890 = vmatmul.f32.gmra.mxu0 %v4303
      %v4891 = vpop.f32.mrf.mxu0
      %v4892 = vadd.f32 %v4691, %v4891
      %4893 = vmatmul.f32.gmra.mxu0 %v4305
      %v4894 = vpop.f32.mrf.mxu0
      %v4895 = vadd.f32 %v4694, %v4894
      %4896 = vmatmul.f32.gmra.mxu0 %v4307
      %v4897 = vpop.f32.mrf.mxu0
      %v4898 = vadd.f32 %v4697, %v4897
      %4899 = vmatmul.f32.gmra.mxu0 %v4309
      %v4900 = vpop.f32.mrf.mxu0
      %v4901 = vadd.f32 %v4700, %v4900
      %4902 = vmatmul.f32.gmra.mxu0 %v4311
      %v4903 = vpop.f32.mrf.mxu0
      %v4904 = vadd.f32 %v4703, %v4903
      %4905 = vmatmul.f32.gmra.mxu0 %v4313
      %v4906 = vpop.f32.mrf.mxu0
      %v4907 = vadd.f32 %v4706, %v4906
      %4908 = vmatmul.f32.gmra.mxu0 %v4315
      %v4909 = vpop.f32.mrf.mxu0
      %v4910 = vadd.f32 %v4709, %v4909
      %4911 = vmatmul.f32.gmra.mxu0 %v4317
      %v4912 = vpop.f32.mrf.mxu0
      %v4913 = vadd.f32 %v4712, %v4912
      %4914 = vmatmul.f32.gmra.mxu0 %v4319
      %v4915 = vpop.f32.mrf.mxu0
      %v4916 = vadd.f32 %v4715, %v4915
      %4917 = vmatmul.f32.gmra.mxu0 %v4321
      %v4918 = vpop.f32.mrf.mxu0
      %v4919 = vadd.f32 %v4718, %v4918
      %4920 = vmatmul.f32.gmra.mxu0 %v4323
      %v4921 = vpop.f32.mrf.mxu0
      %v4922 = vadd.f32 %v4721, %v4921
      %4923 = vdwg.mxu0
      %4924 = vmatpush.msra.mxu0 0.0
      %4925 = vmatpush.msra.mxu0 0.0
      %4926 = vmatpush.msra.mxu0 0.0
      %4927 = vmatpush.msra.mxu0 0.0
      %4928 = vmatpush.msra.mxu0 0.0
      %4929 = vmatpush.msra.mxu0 0.0
      %4930 = vmatpush.msra.mxu0 0.0
      %4931 = vmatpush.msra.mxu0 0.0
      %4932 = vmatpush.msra.mxu0 0.0
      %4933 = vmatpush.msra.mxu0 0.0
      %4934 = vmatpush.msra.mxu0 0.0
      %4935 = vmatpush.msra.mxu0 0.0
      %4936 = vmatpush.msra.mxu0 %v4372
      %4937 = vmatpush.msra.mxu0 %v4370
      %4938 = vmatpush.msra.mxu0 %v4368
      %4939 = vmatpush.msra.mxu0 %v4366
      %4940 = vmatmul.f32.gmra.mxu0 %v4724
      %v4941 = vpop.f32.mrf.mxu0
      %v4942 = vadd.f32 %v4877, %v4941
      %4943 = vmatmul.f32.gmra.mxu0 %v4727
      %v4944 = vpop.f32.mrf.mxu0
      %v4945 = vadd.f32 %v4880, %v4944
      %4946 = vmatmul.f32.gmra.mxu0 %v4416
      %v4947 = vpop.f32.mrf.mxu0
      %v4948 = vadd.f32 %v4883, %v4947
      %4949 = vmatmul.f32.gmra.mxu0 %v4419
      %v4950 = vpop.f32.mrf.mxu0
      %v4951 = vadd.f32 %v4886, %v4950
      %4952 = vmatmul.f32.gmra.mxu0 %v4422
      %v4953 = vpop.f32.mrf.mxu0
      %v4954 = vadd.f32 %v4889, %v4953
      %4955 = vmatmul.f32.gmra.mxu0 %v4425
      %v4956 = vpop.f32.mrf.mxu0
      %v4957 = vadd.f32 %v4892, %v4956
      %4958 = vmatmul.f32.gmra.mxu0 %v4428
      %v4959 = vpop.f32.mrf.mxu0
      %v4960 = vadd.f32 %v4895, %v4959
      %4961 = vmatmul.f32.gmra.mxu0 %v4431
      %v4962 = vpop.f32.mrf.mxu0
      %v4963 = vadd.f32 %v4898, %v4962
      %4964 = vmatmul.f32.gmra.mxu0 %v4434
      %v4965 = vpop.f32.mrf.mxu0
      %v4966 = vadd.f32 %v4901, %v4965
      %4967 = vmatmul.f32.gmra.mxu0 %v4437
      %v4968 = vpop.f32.mrf.mxu0
      %v4969 = vadd.f32 %v4904, %v4968
      %4970 = vmatmul.f32.gmra.mxu0 %v4440
      %v4971 = vpop.f32.mrf.mxu0
      %v4972 = vadd.f32 %v4907, %v4971
      %4973 = vmatmul.f32.gmra.mxu0 %v4443
      %v4974 = vpop.f32.mrf.mxu0
      %v4975 = vadd.f32 %v4910, %v4974
      %4976 = vmatmul.f32.gmra.mxu0 %v4446
      %v4977 = vpop.f32.mrf.mxu0
      %v4978 = vadd.f32 %v4913, %v4977
      %4979 = vmatmul.f32.gmra.mxu0 %v4449
      %v4980 = vpop.f32.mrf.mxu0
      %v4981 = vadd.f32 %v4916, %v4980
      %4982 = vmatmul.f32.gmra.mxu0 %v4452
      %v4983 = vpop.f32.mrf.mxu0
      %v4984 = vadd.f32 %v4919, %v4983
      %4985 = vmatmul.f32.gmra.mxu0 %v4455
      %v4986 = vpop.f32.mrf.mxu0
      %v4987 = vadd.f32 %v4922, %v4986
      %4988 = vdwg.mxu0
      %s4989 = scalar_lea.vmem %s8, 640
      %v4990 = vld [vmem:[%s4989] sm:$0xff]
      %v4991 = vld [vmem:[%s4989 + $0x8] sm:$0xff]
      %v4992 = vld [vmem:[%s4989 + $0x10] sm:$0xff]
      %v4993 = vld [vmem:[%s4989 + $0x18] sm:$0xff]
      %v4994 = vld [vmem:[%s4989 + $0x20] sm:$0xff]
      %v4995 = vld [vmem:[%s4989 + $0x28] sm:$0xff]
      %v4996 = vld [vmem:[%s4989 + $0x30] sm:$0xff]
      %v4997 = vld [vmem:[%s4989 + $0x38] sm:$0xff]
      %v4998 = vld [vmem:[%s4989 + $0x40] sm:$0xff]
      %v4999 = vld [vmem:[%s4989 + $0x48] sm:$0xff]
      %v5000 = vld [vmem:[%s4989 + $0x50] sm:$0xff]
      %v5001 = vld [vmem:[%s4989 + $0x58] sm:$0xff]
      %v5002 = vld [vmem:[%s4989 + $0x60] sm:$0xff]
      %v5003 = vld [vmem:[%s4989 + $0x68] sm:$0xff]
      %v5004 = vld [vmem:[%s4989 + $0x70] sm:$0xff]
      %v5005 = vld [vmem:[%s4989 + $0x78] sm:$0xff]
      %v5006 = vld [vmem:[%s4989 + $0x80] sm:$0xff]
      %v5007 = vld [vmem:[%s4989 + $0x88] sm:$0xff]
      %v5008 = vld [vmem:[%s4989 + $0x90] sm:$0xff]
      %v5009 = vld [vmem:[%s4989 + $0x98] sm:$0xff]
      %v5010 = vld [vmem:[%s4989 + $0xa0] sm:$0xff]
      %v5011 = vld [vmem:[%s4989 + $0xa8] sm:$0xff]
      %v5012 = vld [vmem:[%s4989 + $0xb0] sm:$0xff]
      %v5013 = vld [vmem:[%s4989 + $0xb8] sm:$0xff]
      %v5014 = vld [vmem:[%s4989 + $0xc0] sm:$0xff]
      %v5015 = vld [vmem:[%s4989 + $0xc8] sm:$0xff]
      %v5016 = vld [vmem:[%s4989 + $0xd0] sm:$0xff]
      %v5017 = vld [vmem:[%s4989 + $0xd8] sm:$0xff]
      %v5018 = vld [vmem:[%s4989 + $0xe0] sm:$0xff]
      %v5019 = vld [vmem:[%s4989 + $0xe8] sm:$0xff]
      %v5020 = vld [vmem:[%s4989 + $0xf0] sm:$0xff]
      %v5021 = vld [vmem:[%s4989 + $0xf8] sm:$0xff]
      %v5022 = vld [vmem:[%s4989 + $0x100] sm:$0xff]
      %v5023 = vld [vmem:[%s4989 + $0x108] sm:$0xff]
      %v5024 = vld [vmem:[%s4989 + $0x110] sm:$0xff]
      %v5025 = vld [vmem:[%s4989 + $0x118] sm:$0xff]
      %v5026 = vld [vmem:[%s4989 + $0x120] sm:$0xff]
      %v5027 = vld [vmem:[%s4989 + $0x128] sm:$0xff]
      %v5028 = vld [vmem:[%s4989 + $0x130] sm:$0xff]
      %v5029 = vld [vmem:[%s4989 + $0x138] sm:$0xff]
      %v5031 = vsel %vm4414, %v4330, 0
      %v5034 = vsel %vm4414, %v4332, 0
      %5036 = vmatpush.msra.mxu0 %v5020
      %5037 = vmatpush.msra.mxu0 %v5018
      %5038 = vmatpush.msra.mxu0 %v5016
      %5039 = vmatpush.msra.mxu0 %v5014
      %5040 = vmatpush.msra.mxu0 %v5012
      %5041 = vmatpush.msra.mxu0 %v5010
      %5042 = vmatpush.msra.mxu0 %v5008
      %5043 = vmatpush.msra.mxu0 %v5006
      %5044 = vmatpush.msra.mxu0 %v5004
      %5045 = vmatpush.msra.mxu0 %v5002
      %5046 = vmatpush.msra.mxu0 %v5000
      %5047 = vmatpush.msra.mxu0 %v4998
      %5048 = vmatpush.msra.mxu0 %v4996
      %5049 = vmatpush.msra.mxu0 %v4994
      %5050 = vmatpush.msra.mxu0 %v4992
      %5051 = vmatpush.msra.mxu0 %v4990
      %5052 = vmatmul.f32.gmra.mxu0 %v4301
      %v5053 = vpop.f32.mrf.mxu0
      %v5054 = vadd.f32 0.0, %v5053
      %5055 = vmatmul.f32.gmra.mxu0 %v4303
      %v5056 = vpop.f32.mrf.mxu0
      %v5057 = vadd.f32 0.0, %v5056
      %5058 = vmatmul.f32.gmra.mxu0 %v4305
      %v5059 = vpop.f32.mrf.mxu0
      %v5060 = vadd.f32 0.0, %v5059
      %5061 = vmatmul.f32.gmra.mxu0 %v4307
      %v5062 = vpop.f32.mrf.mxu0
      %v5063 = vadd.f32 0.0, %v5062
      %5064 = vmatmul.f32.gmra.mxu0 %v4309
      %v5065 = vpop.f32.mrf.mxu0
      %v5066 = vadd.f32 0.0, %v5065
      %5067 = vmatmul.f32.gmra.mxu0 %v4311
      %v5068 = vpop.f32.mrf.mxu0
      %v5069 = vadd.f32 0.0, %v5068
      %5070 = vmatmul.f32.gmra.mxu0 %v4313
      %v5071 = vpop.f32.mrf.mxu0
      %v5072 = vadd.f32 0.0, %v5071
      %5073 = vmatmul.f32.gmra.mxu0 %v4315
      %v5074 = vpop.f32.mrf.mxu0
      %v5075 = vadd.f32 0.0, %v5074
      %5076 = vmatmul.f32.gmra.mxu0 %v4317
      %v5077 = vpop.f32.mrf.mxu0
      %v5078 = vadd.f32 0.0, %v5077
      %5079 = vmatmul.f32.gmra.mxu0 %v4319
      %v5080 = vpop.f32.mrf.mxu0
      %v5081 = vadd.f32 0.0, %v5080
      %5082 = vmatmul.f32.gmra.mxu0 %v4321
      %v5083 = vpop.f32.mrf.mxu0
      %v5084 = vadd.f32 0.0, %v5083
      %5085 = vmatmul.f32.gmra.mxu0 %v4323
      %v5086 = vpop.f32.mrf.mxu0
      %v5087 = vadd.f32 0.0, %v5086
      %5088 = vmatmul.f32.gmra.mxu0 %v4325
      %v5089 = vpop.f32.mrf.mxu0
      %v5090 = vadd.f32 0.0, %v5089
      %5091 = vmatmul.f32.gmra.mxu0 %v4327
      %v5092 = vpop.f32.mrf.mxu0
      %v5093 = vadd.f32 0.0, %v5092
      %5094 = vmatmul.f32.gmra.mxu0 %v4329
      %v5095 = vpop.f32.mrf.mxu0
      %v5096 = vadd.f32 0.0, %v5095
      %5097 = vmatmul.f32.gmra.mxu0 %v4331
      %v5098 = vpop.f32.mrf.mxu0
      %v5099 = vadd.f32 0.0, %v5098
      %5100 = vdwg.mxu0
      %5101 = vmatpush.msra.mxu0 0.0
      %5102 = vmatpush.msra.mxu0 0.0
      %5103 = vmatpush.msra.mxu0 0.0
      %5104 = vmatpush.msra.mxu0 0.0
      %5105 = vmatpush.msra.mxu0 0.0
      %5106 = vmatpush.msra.mxu0 0.0
      %5107 = vmatpush.msra.mxu0 0.0
      %5108 = vmatpush.msra.mxu0 0.0
      %5109 = vmatpush.msra.mxu0 0.0
      %5110 = vmatpush.msra.mxu0 0.0
      %5111 = vmatpush.msra.mxu0 0.0
      %5112 = vmatpush.msra.mxu0 0.0
      %5113 = vmatpush.msra.mxu0 %v5028
      %5114 = vmatpush.msra.mxu0 %v5026
      %5115 = vmatpush.msra.mxu0 %v5024
      %5116 = vmatpush.msra.mxu0 %v5022
      %5117 = vmatmul.f32.gmra.mxu0 %v4422
      %v5118 = vpop.f32.mrf.mxu0
      %v5119 = vadd.f32 %v5054, %v5118
      %5120 = vmatmul.f32.gmra.mxu0 %v4425
      %v5121 = vpop.f32.mrf.mxu0
      %v5122 = vadd.f32 %v5057, %v5121
      %5123 = vmatmul.f32.gmra.mxu0 %v4428
      %v5124 = vpop.f32.mrf.mxu0
      %v5125 = vadd.f32 %v5060, %v5124
      %5126 = vmatmul.f32.gmra.mxu0 %v4431
      %v5127 = vpop.f32.mrf.mxu0
      %v5128 = vadd.f32 %v5063, %v5127
      %5129 = vmatmul.f32.gmra.mxu0 %v4434
      %v5130 = vpop.f32.mrf.mxu0
      %v5131 = vadd.f32 %v5066, %v5130
      %5132 = vmatmul.f32.gmra.mxu0 %v4437
      %v5133 = vpop.f32.mrf.mxu0
      %v5134 = vadd.f32 %v5069, %v5133
      %5135 = vmatmul.f32.gmra.mxu0 %v4440
      %v5136 = vpop.f32.mrf.mxu0
      %v5137 = vadd.f32 %v5072, %v5136
      %5138 = vmatmul.f32.gmra.mxu0 %v4443
      %v5139 = vpop.f32.mrf.mxu0
      %v5140 = vadd.f32 %v5075, %v5139
      %5141 = vmatmul.f32.gmra.mxu0 %v4446
      %v5142 = vpop.f32.mrf.mxu0
      %v5143 = vadd.f32 %v5078, %v5142
      %5144 = vmatmul.f32.gmra.mxu0 %v4449
      %v5145 = vpop.f32.mrf.mxu0
      %v5146 = vadd.f32 %v5081, %v5145
      %5147 = vmatmul.f32.gmra.mxu0 %v4452
      %v5148 = vpop.f32.mrf.mxu0
      %v5149 = vadd.f32 %v5084, %v5148
      %5150 = vmatmul.f32.gmra.mxu0 %v4455
      %v5151 = vpop.f32.mrf.mxu0
      %v5152 = vadd.f32 %v5087, %v5151
      %5153 = vmatmul.f32.gmra.mxu0 %v4458
      %v5154 = vpop.f32.mrf.mxu0
      %v5155 = vadd.f32 %v5090, %v5154
      %5156 = vmatmul.f32.gmra.mxu0 %v4461
      %v5157 = vpop.f32.mrf.mxu0
      %v5158 = vadd.f32 %v5093, %v5157
      %5159 = vmatmul.f32.gmra.mxu0 %v5031
      %v5160 = vpop.f32.mrf.mxu0
      %v5161 = vadd.f32 %v5096, %v5160
      %5162 = vmatmul.f32.gmra.mxu0 %v5034
      %v5163 = vpop.f32.mrf.mxu0
      %v5164 = vadd.f32 %v5099, %v5163
      %5165 = vdwg.mxu0
      %5166 = vmatpush.msra.mxu0 %v5021
      %5167 = vmatpush.msra.mxu0 %v5019
      %5168 = vmatpush.msra.mxu0 %v5017
      %5169 = vmatpush.msra.mxu0 %v5015
      %5170 = vmatpush.msra.mxu0 %v5013
      %5171 = vmatpush.msra.mxu0 %v5011
      %5172 = vmatpush.msra.mxu0 %v5009
      %5173 = vmatpush.msra.mxu0 %v5007
      %5174 = vmatpush.msra.mxu0 %v5005
      %5175 = vmatpush.msra.mxu0 %v5003
      %5176 = vmatpush.msra.mxu0 %v5001
      %5177 = vmatpush.msra.mxu0 %v4999
      %5178 = vmatpush.msra.mxu0 %v4997
      %5179 = vmatpush.msra.mxu0 %v4995
      %5180 = vmatpush.msra.mxu0 %v4993
      %5181 = vmatpush.msra.mxu0 %v4991
      %5182 = vmatmul.f32.gmra.mxu0 %v4301
      %v5183 = vpop.f32.mrf.mxu0
      %v5184 = vadd.f32 0.0, %v5183
      %5185 = vmatmul.f32.gmra.mxu0 %v4303
      %v5186 = vpop.f32.mrf.mxu0
      %v5187 = vadd.f32 0.0, %v5186
      %5188 = vmatmul.f32.gmra.mxu0 %v4305
      %v5189 = vpop.f32.mrf.mxu0
      %v5190 = vadd.f32 0.0, %v5189
      %5191 = vmatmul.f32.gmra.mxu0 %v4307
      %v5192 = vpop.f32.mrf.mxu0
      %v5193 = vadd.f32 0.0, %v5192
      %5194 = vmatmul.f32.gmra.mxu0 %v4309
      %v5195 = vpop.f32.mrf.mxu0
      %v5196 = vadd.f32 0.0, %v5195
      %5197 = vmatmul.f32.gmra.mxu0 %v4311
      %v5198 = vpop.f32.mrf.mxu0
      %v5199 = vadd.f32 0.0, %v5198
      %5200 = vmatmul.f32.gmra.mxu0 %v4313
      %v5201 = vpop.f32.mrf.mxu0
      %v5202 = vadd.f32 0.0, %v5201
      %5203 = vmatmul.f32.gmra.mxu0 %v4315
      %v5204 = vpop.f32.mrf.mxu0
      %v5205 = vadd.f32 0.0, %v5204
      %5206 = vmatmul.f32.gmra.mxu0 %v4317
      %v5207 = vpop.f32.mrf.mxu0
      %v5208 = vadd.f32 0.0, %v5207
      %5209 = vmatmul.f32.gmra.mxu0 %v4319
      %v5210 = vpop.f32.mrf.mxu0
      %v5211 = vadd.f32 0.0, %v5210
      %5212 = vmatmul.f32.gmra.mxu0 %v4321
      %v5213 = vpop.f32.mrf.mxu0
      %v5214 = vadd.f32 0.0, %v5213
      %5215 = vmatmul.f32.gmra.mxu0 %v4323
      %v5216 = vpop.f32.mrf.mxu0
      %v5217 = vadd.f32 0.0, %v5216
      %5218 = vmatmul.f32.gmra.mxu0 %v4325
      %v5219 = vpop.f32.mrf.mxu0
      %v5220 = vadd.f32 0.0, %v5219
      %5221 = vmatmul.f32.gmra.mxu0 %v4327
      %v5222 = vpop.f32.mrf.mxu0
      %v5223 = vadd.f32 0.0, %v5222
      %5224 = vmatmul.f32.gmra.mxu0 %v4329
      %v5225 = vpop.f32.mrf.mxu0
      %v5226 = vadd.f32 0.0, %v5225
      %5227 = vmatmul.f32.gmra.mxu0 %v4331
      %v5228 = vpop.f32.mrf.mxu0
      %v5229 = vadd.f32 0.0, %v5228
      %5230 = vdwg.mxu0
      %5231 = vmatpush.msra.mxu0 0.0
      %5232 = vmatpush.msra.mxu0 0.0
      %5233 = vmatpush.msra.mxu0 0.0
      %5234 = vmatpush.msra.mxu0 0.0
      %5235 = vmatpush.msra.mxu0 0.0
      %5236 = vmatpush.msra.mxu0 0.0
      %5237 = vmatpush.msra.mxu0 0.0
      %5238 = vmatpush.msra.mxu0 0.0
      %5239 = vmatpush.msra.mxu0 0.0
      %5240 = vmatpush.msra.mxu0 0.0
      %5241 = vmatpush.msra.mxu0 0.0
      %5242 = vmatpush.msra.mxu0 0.0
      %5243 = vmatpush.msra.mxu0 %v5029
      %5244 = vmatpush.msra.mxu0 %v5027
      %5245 = vmatpush.msra.mxu0 %v5025
      %5246 = vmatpush.msra.mxu0 %v5023
      %5247 = vmatmul.f32.gmra.mxu0 %v4422
      %v5248 = vpop.f32.mrf.mxu0
      %v5249 = vadd.f32 %v5184, %v5248
      %5250 = vmatmul.f32.gmra.mxu0 %v4425
      %v5251 = vpop.f32.mrf.mxu0
      %v5252 = vadd.f32 %v5187, %v5251
      %5253 = vmatmul.f32.gmra.mxu0 %v4428
      %v5254 = vpop.f32.mrf.mxu0
      %v5255 = vadd.f32 %v5190, %v5254
      %5256 = vmatmul.f32.gmra.mxu0 %v4431
      %v5257 = vpop.f32.mrf.mxu0
      %v5258 = vadd.f32 %v5193, %v5257
      %5259 = vmatmul.f32.gmra.mxu0 %v4434
      %v5260 = vpop.f32.mrf.mxu0
      %v5261 = vadd.f32 %v5196, %v5260
      %5262 = vmatmul.f32.gmra.mxu0 %v4437
      %v5263 = vpop.f32.mrf.mxu0
      %v5264 = vadd.f32 %v5199, %v5263
      %5265 = vmatmul.f32.gmra.mxu0 %v4440
      %v5266 = vpop.f32.mrf.mxu0
      %v5267 = vadd.f32 %v5202, %v5266
      %5268 = vmatmul.f32.gmra.mxu0 %v4443
      %v5269 = vpop.f32.mrf.mxu0
      %v5270 = vadd.f32 %v5205, %v5269
      %5271 = vmatmul.f32.gmra.mxu0 %v4446
      %v5272 = vpop.f32.mrf.mxu0
      %v5273 = vadd.f32 %v5208, %v5272
      %5274 = vmatmul.f32.gmra.mxu0 %v4449
      %v5275 = vpop.f32.mrf.mxu0
      %v5276 = vadd.f32 %v5211, %v5275
      %5277 = vmatmul.f32.gmra.mxu0 %v4452
      %v5278 = vpop.f32.mrf.mxu0
      %v5279 = vadd.f32 %v5214, %v5278
      %5280 = vmatmul.f32.gmra.mxu0 %v4455
      %v5281 = vpop.f32.mrf.mxu0
      %v5282 = vadd.f32 %v5217, %v5281
      %5283 = vmatmul.f32.gmra.mxu0 %v4458
      %v5284 = vpop.f32.mrf.mxu0
      %v5285 = vadd.f32 %v5220, %v5284
      %5286 = vmatmul.f32.gmra.mxu0 %v4461
      %v5287 = vpop.f32.mrf.mxu0
      %v5288 = vadd.f32 %v5223, %v5287
      %5289 = vmatmul.f32.gmra.mxu0 %v5031
      %v5290 = vpop.f32.mrf.mxu0
      %v5291 = vadd.f32 %v5226, %v5290
      %5292 = vmatmul.f32.gmra.mxu0 %v5034
      %v5293 = vpop.f32.mrf.mxu0
      %v5294 = vadd.f32 %v5229, %v5293
      %5295 = vdwg.mxu0
      %v5296 = vadd.f32 %v4812, %v5119
      %v5297 = vadd.f32 %v4942, %v5249
      %v5298 = vadd.f32 %v4815, %v5122
      %v5299 = vadd.f32 %v4945, %v5252
      %v5300 = vadd.f32 %v4818, %v5125
      %v5301 = vadd.f32 %v4948, %v5255
      %v5302 = vadd.f32 %v4821, %v5128
      %v5303 = vadd.f32 %v4951, %v5258
      %v5304 = vadd.f32 %v4824, %v5131
      %v5305 = vadd.f32 %v4954, %v5261
      %v5306 = vadd.f32 %v4827, %v5134
      %v5307 = vadd.f32 %v4957, %v5264
      %v5308 = vadd.f32 %v4830, %v5137
      %v5309 = vadd.f32 %v4960, %v5267
      %v5310 = vadd.f32 %v4833, %v5140
      %v5311 = vadd.f32 %v4963, %v5270
      %v5312 = vadd.f32 %v4836, %v5143
      %v5313 = vadd.f32 %v4966, %v5273
      %v5314 = vadd.f32 %v4839, %v5146
      %v5315 = vadd.f32 %v4969, %v5276
      %v5316 = vadd.f32 %v4842, %v5149
      %v5317 = vadd.f32 %v4972, %v5279
      %v5318 = vadd.f32 %v4845, %v5152
      %v5319 = vadd.f32 %v4975, %v5282
      %v5320 = vadd.f32 %v4848, %v5155
      %v5321 = vadd.f32 %v4978, %v5285
      %v5322 = vadd.f32 %v4851, %v5158
      %v5323 = vadd.f32 %v4981, %v5288
      %v5324 = vadd.f32 %v4854, %v5161
      %v5325 = vadd.f32 %v4984, %v5291
      %v5326 = vadd.f32 %v4857, %v5164
      %v5327 = vadd.f32 %v4987, %v5294
      %v5328 = vld [vmem:[%s9] sm:$0x3]
      %v5330 = vperm.slane %v5328, 0
      %v5331 = vperm.slane %v5328, 1
      %v5334 = vadd.f32 %v5296, %v5330
      %v5335 = vadd.f32 %v5297, %v5331
      %v5336 = vadd.f32 %v5298, %v5330
      %v5337 = vadd.f32 %v5299, %v5331
      %v5338 = vadd.f32 %v5300, %v5330
      %v5339 = vadd.f32 %v5301, %v5331
      %v5340 = vadd.f32 %v5302, %v5330
      %v5341 = vadd.f32 %v5303, %v5331
      %v5342 = vadd.f32 %v5304, %v5330
      %v5343 = vadd.f32 %v5305, %v5331
      %v5344 = vadd.f32 %v5306, %v5330
      %v5345 = vadd.f32 %v5307, %v5331
      %v5346 = vadd.f32 %v5308, %v5330
      %v5347 = vadd.f32 %v5309, %v5331
      %v5348 = vadd.f32 %v5310, %v5330
      %v5349 = vadd.f32 %v5311, %v5331
      %v5350 = vadd.f32 %v5312, %v5330
      %v5351 = vadd.f32 %v5313, %v5331
      %v5352 = vadd.f32 %v5314, %v5330
      %v5353 = vadd.f32 %v5315, %v5331
      %v5354 = vadd.f32 %v5316, %v5330
      %v5355 = vadd.f32 %v5317, %v5331
      %v5356 = vadd.f32 %v5318, %v5330
      %v5357 = vadd.f32 %v5319, %v5331
      %v5358 = vadd.f32 %v5320, %v5330
      %v5359 = vadd.f32 %v5321, %v5331
      %v5360 = vadd.f32 %v5322, %v5330
      %v5361 = vadd.f32 %v5323, %v5331
      %v5362 = vadd.f32 %v5324, %v5330
      %v5363 = vadd.f32 %v5325, %v5331
      %v5364 = vadd.f32 %v5326, %v5330
      %v5365 = vadd.f32 %v5327, %v5331
      %v5366 = vmax.f32 %v5334, 0.0
      %v5367 = vmax.f32 %v5335, 0.0
      %v5368 = vmax.f32 %v5336, 0.0
      %v5369 = vmax.f32 %v5337, 0.0
      %v5370 = vmax.f32 %v5338, 0.0
      %v5371 = vmax.f32 %v5339, 0.0
      %v5372 = vmax.f32 %v5340, 0.0
      %v5373 = vmax.f32 %v5341, 0.0
      %v5374 = vmax.f32 %v5342, 0.0
      %v5375 = vmax.f32 %v5343, 0.0
      %v5376 = vmax.f32 %v5344, 0.0
      %v5377 = vmax.f32 %v5345, 0.0
      %v5378 = vmax.f32 %v5346, 0.0
      %v5379 = vmax.f32 %v5347, 0.0
      %v5380 = vmax.f32 %v5348, 0.0
      %v5381 = vmax.f32 %v5349, 0.0
      %v5382 = vmax.f32 %v5350, 0.0
      %v5383 = vmax.f32 %v5351, 0.0
      %v5384 = vmax.f32 %v5352, 0.0
      %v5385 = vmax.f32 %v5353, 0.0
      %v5386 = vmax.f32 %v5354, 0.0
      %v5387 = vmax.f32 %v5355, 0.0
      %v5388 = vmax.f32 %v5356, 0.0
      %v5389 = vmax.f32 %v5357, 0.0
      %v5390 = vmax.f32 %v5358, 0.0
      %v5391 = vmax.f32 %v5359, 0.0
      %v5392 = vmax.f32 %v5360, 0.0
      %v5393 = vmax.f32 %v5361, 0.0
      %v5394 = vmax.f32 %v5362, 0.0
      %v5395 = vmax.f32 %v5363, 0.0
      %v5396 = vmax.f32 %v5364, 0.0
      %v5397 = vmax.f32 %v5365, 0.0
      %v5398 = vmax.f32 %v5366, %v5370
      %v5399 = vmax.f32 %v5367, %v5371
      %v5400 = vmax.f32 %v5368, %v5372
      %v5401 = vmax.f32 %v5369, %v5373
      %v5402 = vmax.f32 %v5374, %v5378
      %v5403 = vmax.f32 %v5375, %v5379
      %v5404 = vmax.f32 %v5376, %v5380
      %v5405 = vmax.f32 %v5377, %v5381
      %v5406 = vmax.f32 %v5382, %v5386
      %v5407 = vmax.f32 %v5383, %v5387
      %v5408 = vmax.f32 %v5384, %v5388
      %v5409 = vmax.f32 %v5385, %v5389
      %v5410 = vmax.f32 %v5390, %v5394
      %v5411 = vmax.f32 %v5391, %v5395
      %v5412 = vmax.f32 %v5392, %v5396
      %v5413 = vmax.f32 %v5393, %v5397
      %5430 = vrot.lane.b32.xlu0 %v5398, 127
      %v5431 = vpop.permute.xlu0 %5430
      %5432 = vrot.lane.b32.xlu0 %v5399, 127
      %v5433 = vpop.permute.xlu0 %5432
      %5434 = vrot.lane.b32.xlu0 %v5400, 127
      %v5435 = vpop.permute.xlu0 %5434
      %5436 = vrot.lane.b32.xlu0 %v5401, 127
      %v5437 = vpop.permute.xlu0 %5436
      %5438 = vrot.lane.b32.xlu0 %v5402, 127
      %v5439 = vpop.permute.xlu0 %5438
      %5440 = vrot.lane.b32.xlu0 %v5403, 127
      %v5441 = vpop.permute.xlu0 %5440
      %5442 = vrot.lane.b32.xlu0 %v5404, 127
      %v5443 = vpop.permute.xlu0 %5442
      %5444 = vrot.lane.b32.xlu0 %v5405, 127
      %v5445 = vpop.permute.xlu0 %5444
      %5446 = vrot.lane.b32.xlu0 %v5406, 127
      %v5447 = vpop.permute.xlu0 %5446
      %5448 = vrot.lane.b32.xlu0 %v5407, 127
      %v5449 = vpop.permute.xlu0 %5448
      %5450 = vrot.lane.b32.xlu0 %v5408, 127
      %v5451 = vpop.permute.xlu0 %5450
      %5452 = vrot.lane.b32.xlu0 %v5409, 127
      %v5453 = vpop.permute.xlu0 %5452
      %5454 = vrot.lane.b32.xlu0 %v5410, 127
      %v5455 = vpop.permute.xlu0 %5454
      %5456 = vrot.lane.b32.xlu0 %v5411, 127
      %v5457 = vpop.permute.xlu0 %5456
      %5458 = vrot.lane.b32.xlu0 %v5412, 127
      %v5459 = vpop.permute.xlu0 %5458
      %5460 = vrot.lane.b32.xlu0 %v5413, 127
      %v5461 = vpop.permute.xlu0 %5460
      %v5462 = vsel %vm3198, %v5431, %v5433
      %v5463 = vsel %vm3198, %v5435, %v5437
      %v5464 = vsel %vm3198, %v5439, %v5441
      %v5465 = vsel %vm3198, %v5443, %v5445
      %v5466 = vsel %vm3198, %v5447, %v5449
      %v5467 = vsel %vm3198, %v5451, %v5453
      %v5468 = vsel %vm3198, %v5455, %v5457
      %v5469 = vsel %vm3198, %v5459, %v5461
      %v5486 = vmax.f32 %v5398, %v5462
      %v5487 = vmax.f32 %v5399, %v5433
      %v5488 = vmax.f32 %v5400, %v5463
      %v5489 = vmax.f32 %v5401, %v5437
      %v5490 = vmax.f32 %v5402, %v5464
      %v5491 = vmax.f32 %v5403, %v5441
      %v5492 = vmax.f32 %v5404, %v5465
      %v5493 = vmax.f32 %v5405, %v5445
      %v5494 = vmax.f32 %v5406, %v5466
      %v5495 = vmax.f32 %v5407, %v5449
      %v5496 = vmax.f32 %v5408, %v5467
      %v5497 = vmax.f32 %v5409, %v5453
      %v5498 = vmax.f32 %v5410, %v5468
      %v5499 = vmax.f32 %v5411, %v5457
      %v5500 = vmax.f32 %v5412, %v5469
      %v5501 = vmax.f32 %v5413, %v5461
      %v5502 = vld [vmem:[%s10] sm:$0xff]
      %v5503 = vld [vmem:[%s10 + $0x8] sm:$0xff]
      %v5504 = vld [vmem:[%s10 + $0x10] sm:$0xff]
      %v5505 = vld [vmem:[%s10 + $0x18] sm:$0xff]
      %v5506 = vld [vmem:[%s10 + $0x20] sm:$0xff]
      %v5507 = vld [vmem:[%s10 + $0x28] sm:$0xff]
      %v5508 = vld [vmem:[%s10 + $0x30] sm:$0xff]
      %v5509 = vld [vmem:[%s10 + $0x38] sm:$0xff]
      %v5510 = vld [vmem:[%s10 + $0x40] sm:$0xff]
      %v5511 = vld [vmem:[%s10 + $0x48] sm:$0xff]
      %v5512 = vld [vmem:[%s10 + $0x50] sm:$0xff]
      %v5513 = vld [vmem:[%s10 + $0x58] sm:$0xff]
      %v5514 = vld [vmem:[%s10 + $0x60] sm:$0xff]
      %v5515 = vld [vmem:[%s10 + $0x68] sm:$0xff]
      %v5516 = vld [vmem:[%s10 + $0x70] sm:$0xff]
      %v5517 = vld [vmem:[%s10 + $0x78] sm:$0xff]
      %v5518 = vld [vmem:[%s10 + $0x80] sm:$0xff]
      %v5519 = vld [vmem:[%s10 + $0x88] sm:$0xff]
      %v5520 = vld [vmem:[%s10 + $0x90] sm:$0xff]
      %v5521 = vld [vmem:[%s10 + $0x98] sm:$0xff]
      %v5522 = vld [vmem:[%s10 + $0xa0] sm:$0xff]
      %v5523 = vld [vmem:[%s10 + $0xa8] sm:$0xff]
      %v5524 = vld [vmem:[%s10 + $0xb0] sm:$0xff]
      %v5525 = vld [vmem:[%s10 + $0xb8] sm:$0xff]
      %v5526 = vld [vmem:[%s10 + $0xc0] sm:$0xff]
      %v5527 = vld [vmem:[%s10 + $0xc8] sm:$0xff]
      %v5528 = vld [vmem:[%s10 + $0xd0] sm:$0xff]
      %v5529 = vld [vmem:[%s10 + $0xd8] sm:$0xff]
      %v5530 = vld [vmem:[%s10 + $0xe0] sm:$0xff]
      %v5531 = vld [vmem:[%s10 + $0xe8] sm:$0xff]
      %v5532 = vld [vmem:[%s10 + $0xf0] sm:$0xff]
      %v5533 = vld [vmem:[%s10 + $0xf8] sm:$0x7f]
      %v5535 = vsel %vm3198, %v5487, 0
      %v5538 = vsel %vm3198, %v5489, 0
      %v5541 = vsel %vm3198, %v5491, 0
      %v5544 = vsel %vm3198, %v5493, 0
      %v5547 = vsel %vm3198, %v5495, 0
      %v5550 = vsel %vm3198, %v5497, 0
      %v5553 = vsel %vm3198, %v5499, 0
      %v5556 = vsel %vm3198, %v5501, 0
      %v5559 = vsel %vm3416, %v5533, 0
      %5561 = vmatpush.msra.mxu0 %v5517
      %5562 = vmatpush.msra.mxu0 %v5516
      %5563 = vmatpush.msra.mxu0 %v5515
      %5564 = vmatpush.msra.mxu0 %v5514
      %5565 = vmatpush.msra.mxu0 %v5513
      %5566 = vmatpush.msra.mxu0 %v5512
      %5567 = vmatpush.msra.mxu0 %v5511
      %5568 = vmatpush.msra.mxu0 %v5510
      %5569 = vmatpush.msra.mxu0 %v5509
      %5570 = vmatpush.msra.mxu0 %v5508
      %5571 = vmatpush.msra.mxu0 %v5507
      %5572 = vmatpush.msra.mxu0 %v5506
      %5573 = vmatpush.msra.mxu0 %v5505
      %5574 = vmatpush.msra.mxu0 %v5504
      %5575 = vmatpush.msra.mxu0 %v5503
      %5576 = vmatpush.msra.mxu0 %v5502
      %5577 = vmatmul.f32.gmra.mxu0 %v5486
      %v5578 = vpop.f32.mrf.mxu0
      %v5579 = vadd.f32 0.0, %v5578
      %5580 = vmatmul.f32.gmra.mxu0 %v5488
      %v5581 = vpop.f32.mrf.mxu0
      %v5582 = vadd.f32 0.0, %v5581
      %5583 = vmatmul.f32.gmra.mxu0 %v5490
      %v5584 = vpop.f32.mrf.mxu0
      %v5585 = vadd.f32 0.0, %v5584
      %5586 = vmatmul.f32.gmra.mxu0 %v5492
      %v5587 = vpop.f32.mrf.mxu0
      %v5588 = vadd.f32 0.0, %v5587
      %5589 = vmatmul.f32.gmra.mxu0 %v5494
      %v5590 = vpop.f32.mrf.mxu0
      %v5591 = vadd.f32 0.0, %v5590
      %5592 = vmatmul.f32.gmra.mxu0 %v5496
      %v5593 = vpop.f32.mrf.mxu0
      %v5594 = vadd.f32 0.0, %v5593
      %5595 = vmatmul.f32.gmra.mxu0 %v5498
      %v5596 = vpop.f32.mrf.mxu0
      %v5597 = vadd.f32 0.0, %v5596
      %5598 = vmatmul.f32.gmra.mxu0 %v5500
      %v5599 = vpop.f32.mrf.mxu0
      %v5600 = vadd.f32 0.0, %v5599
      %5601 = vdwg.mxu0
      %5602 = vmatpush.msra.mxu0 %v5559
      %5603 = vmatpush.msra.mxu0 %v5532
      %5604 = vmatpush.msra.mxu0 %v5531
      %5605 = vmatpush.msra.mxu0 %v5530
      %5606 = vmatpush.msra.mxu0 %v5529
      %5607 = vmatpush.msra.mxu0 %v5528
      %5608 = vmatpush.msra.mxu0 %v5527
      %5609 = vmatpush.msra.mxu0 %v5526
      %5610 = vmatpush.msra.mxu0 %v5525
      %5611 = vmatpush.msra.mxu0 %v5524
      %5612 = vmatpush.msra.mxu0 %v5523
      %5613 = vmatpush.msra.mxu0 %v5522
      %5614 = vmatpush.msra.mxu0 %v5521
      %5615 = vmatpush.msra.mxu0 %v5520
      %5616 = vmatpush.msra.mxu0 %v5519
      %5617 = vmatpush.msra.mxu0 %v5518
      %5618 = vmatmul.f32.gmra.mxu0 %v5535
      %v5619 = vpop.f32.mrf.mxu0
      %v5620 = vadd.f32 %v5579, %v5619
      %5621 = vmatmul.f32.gmra.mxu0 %v5538
      %v5622 = vpop.f32.mrf.mxu0
      %v5623 = vadd.f32 %v5582, %v5622
      %5624 = vmatmul.f32.gmra.mxu0 %v5541
      %v5625 = vpop.f32.mrf.mxu0
      %v5626 = vadd.f32 %v5585, %v5625
      %5627 = vmatmul.f32.gmra.mxu0 %v5544
      %v5628 = vpop.f32.mrf.mxu0
      %v5629 = vadd.f32 %v5588, %v5628
      %5630 = vmatmul.f32.gmra.mxu0 %v5547
      %v5631 = vpop.f32.mrf.mxu0
      %v5632 = vadd.f32 %v5591, %v5631
      %5633 = vmatmul.f32.gmra.mxu0 %v5550
      %v5634 = vpop.f32.mrf.mxu0
      %v5635 = vadd.f32 %v5594, %v5634
      %5636 = vmatmul.f32.gmra.mxu0 %v5553
      %v5637 = vpop.f32.mrf.mxu0
      %v5638 = vadd.f32 %v5597, %v5637
      %5639 = vmatmul.f32.gmra.mxu0 %v5556
      %v5640 = vpop.f32.mrf.mxu0
      %v5641 = vadd.f32 %v5600, %v5640
      %5642 = vdwg.mxu0
      %v5643 = vld [vmem:[%s11] sm:$0xff]
      %v5644 = vld [vmem:[%s11 + $0x8] sm:$0xff]
      %v5645 = vld [vmem:[%s11 + $0x10] sm:$0xff]
      %v5646 = vld [vmem:[%s11 + $0x18] sm:$0xff]
      %v5647 = vld [vmem:[%s11 + $0x20] sm:$0xff]
      %v5648 = vld [vmem:[%s11 + $0x28] sm:$0xff]
      %v5649 = vld [vmem:[%s11 + $0x30] sm:$0xff]
      %v5650 = vld [vmem:[%s11 + $0x38] sm:$0xff]
      %v5651 = vld [vmem:[%s11 + $0x40] sm:$0xff]
      %v5652 = vld [vmem:[%s11 + $0x48] sm:$0xff]
      %v5653 = vld [vmem:[%s11 + $0x50] sm:$0xff]
      %v5654 = vld [vmem:[%s11 + $0x58] sm:$0xff]
      %v5655 = vld [vmem:[%s11 + $0x60] sm:$0xff]
      %v5656 = vld [vmem:[%s11 + $0x68] sm:$0xff]
      %v5657 = vld [vmem:[%s11 + $0x70] sm:$0xff]
      %v5658 = vld [vmem:[%s11 + $0x78] sm:$0xff]
      %s5659 = scalar_lea.vmem %s11, 128
      %v5660 = vld [vmem:[%s5659] sm:$0xff]
      %v5661 = vld [vmem:[%s5659 + $0x8] sm:$0xff]
      %v5662 = vld [vmem:[%s5659 + $0x10] sm:$0xff]
      %v5663 = vld [vmem:[%s5659 + $0x18] sm:$0xff]
      %v5664 = vld [vmem:[%s5659 + $0x20] sm:$0xff]
      %v5665 = vld [vmem:[%s5659 + $0x28] sm:$0xff]
      %v5666 = vld [vmem:[%s5659 + $0x30] sm:$0xff]
      %v5667 = vld [vmem:[%s5659 + $0x38] sm:$0xff]
      %v5668 = vld [vmem:[%s5659 + $0x40] sm:$0xff]
      %v5669 = vld [vmem:[%s5659 + $0x48] sm:$0xff]
      %v5670 = vld [vmem:[%s5659 + $0x50] sm:$0xff]
      %v5671 = vld [vmem:[%s5659 + $0x58] sm:$0xff]
      %v5672 = vld [vmem:[%s5659 + $0x60] sm:$0xff]
      %v5673 = vld [vmem:[%s5659 + $0x68] sm:$0xff]
      %v5674 = vld [vmem:[%s5659 + $0x70] sm:$0xff]
      %v5675 = vld [vmem:[%s5659 + $0x78] sm:$0xff]
      %5676 = vmatpush.msra.mxu0 %v5675
      %5677 = vmatpush.msra.mxu0 %v5674
      %5678 = vmatpush.msra.mxu0 %v5673
      %5679 = vmatpush.msra.mxu0 %v5672
      %5680 = vmatpush.msra.mxu0 %v5671
      %5681 = vmatpush.msra.mxu0 %v5670
      %5682 = vmatpush.msra.mxu0 %v5669
      %5683 = vmatpush.msra.mxu0 %v5668
      %5684 = vmatpush.msra.mxu0 %v5667
      %5685 = vmatpush.msra.mxu0 %v5666
      %5686 = vmatpush.msra.mxu0 %v5665
      %5687 = vmatpush.msra.mxu0 %v5664
      %5688 = vmatpush.msra.mxu0 %v5663
      %5689 = vmatpush.msra.mxu0 %v5662
      %5690 = vmatpush.msra.mxu0 %v5661
      %5691 = vmatpush.msra.mxu0 %v5660
      %5692 = vmatmul.f32.gmra.mxu0 %v5626
      %v5693 = vpop.f32.mrf.mxu0
      %v5694 = vadd.f32 0.0, %v5693
      %5695 = vmatmul.f32.gmra.mxu0 %v5629
      %v5696 = vpop.f32.mrf.mxu0
      %v5697 = vadd.f32 0.0, %v5696
      %5698 = vmatmul.f32.gmra.mxu0 %v5632
      %v5699 = vpop.f32.mrf.mxu0
      %v5700 = vadd.f32 0.0, %v5699
      %5701 = vmatmul.f32.gmra.mxu0 %v5635
      %v5702 = vpop.f32.mrf.mxu0
      %v5703 = vadd.f32 0.0, %v5702
      %5704 = vdwg.mxu0
      %5705 = vmatpush.msra.mxu0 %v5658
      %5706 = vmatpush.msra.mxu0 %v5657
      %5707 = vmatpush.msra.mxu0 %v5656
      %5708 = vmatpush.msra.mxu0 %v5655
      %5709 = vmatpush.msra.mxu0 %v5654
      %5710 = vmatpush.msra.mxu0 %v5653
      %5711 = vmatpush.msra.mxu0 %v5652
      %5712 = vmatpush.msra.mxu0 %v5651
      %5713 = vmatpush.msra.mxu0 %v5650
      %5714 = vmatpush.msra.mxu0 %v5649
      %5715 = vmatpush.msra.mxu0 %v5648
      %5716 = vmatpush.msra.mxu0 %v5647
      %5717 = vmatpush.msra.mxu0 %v5646
      %5718 = vmatpush.msra.mxu0 %v5645
      %5719 = vmatpush.msra.mxu0 %v5644
      %5720 = vmatpush.msra.mxu0 %v5643
      %5721 = vmatmul.f32.gmra.mxu0 %v5620
      %v5722 = vpop.f32.mrf.mxu0
      %v5723 = vadd.f32 %v5694, %v5722
      %5724 = vmatmul.f32.gmra.mxu0 %v5623
      %v5725 = vpop.f32.mrf.mxu0
      %v5726 = vadd.f32 %v5697, %v5725
      %5727 = vmatmul.f32.gmra.mxu0 %v5626
      %v5728 = vpop.f32.mrf.mxu0
      %v5729 = vadd.f32 %v5700, %v5728
      %5730 = vmatmul.f32.gmra.mxu0 %v5629
      %v5731 = vpop.f32.mrf.mxu0
      %v5732 = vadd.f32 %v5703, %v5731
      %5733 = vdwg.mxu0
      %s5734 = scalar_lea.vmem %s11, 256
      %v5735 = vld [vmem:[%s5734] sm:$0xff]
      %v5736 = vld [vmem:[%s5734 + $0x8] sm:$0xff]
      %v5737 = vld [vmem:[%s5734 + $0x10] sm:$0xff]
      %v5738 = vld [vmem:[%s5734 + $0x18] sm:$0xff]
      %v5739 = vld [vmem:[%s5734 + $0x20] sm:$0xff]
      %v5740 = vld [vmem:[%s5734 + $0x28] sm:$0xff]
      %v5741 = vld [vmem:[%s5734 + $0x30] sm:$0xff]
      %v5742 = vld [vmem:[%s5734 + $0x38] sm:$0xff]
      %v5743 = vld [vmem:[%s5734 + $0x40] sm:$0xff]
      %v5744 = vld [vmem:[%s5734 + $0x48] sm:$0xff]
      %v5745 = vld [vmem:[%s5734 + $0x50] sm:$0xff]
      %v5746 = vld [vmem:[%s5734 + $0x58] sm:$0xff]
      %v5747 = vld [vmem:[%s5734 + $0x60] sm:$0xff]
      %v5748 = vld [vmem:[%s5734 + $0x68] sm:$0xff]
      %v5749 = vld [vmem:[%s5734 + $0x70] sm:$0xff]
      %v5750 = vld [vmem:[%s5734 + $0x78] sm:$0xff]
      %5751 = vmatpush.msra.mxu0 %v5750
      %5752 = vmatpush.msra.mxu0 %v5749
      %5753 = vmatpush.msra.mxu0 %v5748
      %5754 = vmatpush.msra.mxu0 %v5747
      %5755 = vmatpush.msra.mxu0 %v5746
      %5756 = vmatpush.msra.mxu0 %v5745
      %5757 = vmatpush.msra.mxu0 %v5744
      %5758 = vmatpush.msra.mxu0 %v5743
      %5759 = vmatpush.msra.mxu0 %v5742
      %5760 = vmatpush.msra.mxu0 %v5741
      %5761 = vmatpush.msra.mxu0 %v5740
      %5762 = vmatpush.msra.mxu0 %v5739
      %5763 = vmatpush.msra.mxu0 %v5738
      %5764 = vmatpush.msra.mxu0 %v5737
      %5765 = vmatpush.msra.mxu0 %v5736
      %5766 = vmatpush.msra.mxu0 %v5735
      %5767 = vmatmul.f32.gmra.mxu0 %v5632
      %v5768 = vpop.f32.mrf.mxu0
      %v5769 = vadd.f32 0.0, %v5768
      %5770 = vmatmul.f32.gmra.mxu0 %v5635
      %v5771 = vpop.f32.mrf.mxu0
      %v5772 = vadd.f32 0.0, %v5771
      %5773 = vmatmul.f32.gmra.mxu0 %v5638
      %v5774 = vpop.f32.mrf.mxu0
      %v5775 = vadd.f32 0.0, %v5774
      %5776 = vmatmul.f32.gmra.mxu0 %v5641
      %v5777 = vpop.f32.mrf.mxu0
      %v5778 = vadd.f32 0.0, %v5777
      %5779 = vdwg.mxu0
      %v5780 = vadd.f32 %v5723, %v5769
      %v5781 = vadd.f32 %v5726, %v5772
      %v5782 = vadd.f32 %v5729, %v5775
      %v5783 = vadd.f32 %v5732, %v5778
      %v5784 = vld [vmem:[%s12] sm:$0x1]
      %v5786 = vperm.slane %v5784, 0
      %v5788 = vadd.f32 %v5780, %v5786
      %v5789 = vadd.f32 %v5781, %v5786
      %v5790 = vadd.f32 %v5782, %v5786
      %v5791 = vadd.f32 %v5783, %v5786
      %v5792 = vmax.f32 %v5788, 0.0
      %v5793 = vmax.f32 %v5789, 0.0
      %v5794 = vmax.f32 %v5790, 0.0
      %v5795 = vmax.f32 %v5791, 0.0
      %v5796 = vmax.f32 %v5792, %v5794
      %v5797 = vmax.f32 %v5793, %v5795
      %5800 = vrot.lane.b32.xlu0 %v5796, 127
      %v5801 = vpop.permute.xlu0 %5800
      %5802 = vrot.lane.b32.xlu0 %v5797, 127
      %v5803 = vpop.permute.xlu0 %5802
      %v5806 = vmax.f32 %v5796, %v5801
      %v5807 = vmax.f32 %v5797, %v5803
      %v5808 = vld [vmem:[%s13] sm:$0xff]
      %v5809 = vld [vmem:[%s13 + $0x8] sm:$0xff]
      %v5810 = vld [vmem:[%s13 + $0x10] sm:$0xff]
      %v5811 = vld [vmem:[%s13 + $0x18] sm:$0xff]
      %v5812 = vld [vmem:[%s13 + $0x20] sm:$0xff]
      %v5813 = vld [vmem:[%s13 + $0x28] sm:$0xff]
      %v5814 = vld [vmem:[%s13 + $0x30] sm:$0xff]
      %v5815 = vld [vmem:[%s13 + $0x38] sm:$0xff]
      %v5816 = vld [vmem:[%s13 + $0x40] sm:$0xff]
      %v5817 = vld [vmem:[%s13 + $0x48] sm:$0xff]
      %v5818 = vld [vmem:[%s13 + $0x50] sm:$0xff]
      %v5819 = vld [vmem:[%s13 + $0x58] sm:$0xff]
      %v5820 = vld [vmem:[%s13 + $0x60] sm:$0xff]
      %v5821 = vld [vmem:[%s13 + $0x68] sm:$0xff]
      %v5822 = vld [vmem:[%s13 + $0x70] sm:$0xff]
      %v5823 = vld [vmem:[%s13 + $0x78] sm:$0x7f]
      %v5825 = vsel %vm3198, %v5806, 0
      %v5828 = vsel %vm3198, %v5807, 0
      %v5831 = vsel %vm3416, %v5823, 0
      %5833 = vmatpush.msra.mxu0 %v5831
      %5834 = vmatpush.msra.mxu0 %v5822
      %5835 = vmatpush.msra.mxu0 %v5821
      %5836 = vmatpush.msra.mxu0 %v5820
      %5837 = vmatpush.msra.mxu0 %v5819
      %5838 = vmatpush.msra.mxu0 %v5818
      %5839 = vmatpush.msra.mxu0 %v5817
      %5840 = vmatpush.msra.mxu0 %v5816
      %5841 = vmatpush.msra.mxu0 %v5815
      %5842 = vmatpush.msra.mxu0 %v5814
      %5843 = vmatpush.msra.mxu0 %v5813
      %5844 = vmatpush.msra.mxu0 %v5812
      %5845 = vmatpush.msra.mxu0 %v5811
      %5846 = vmatpush.msra.mxu0 %v5810
      %5847 = vmatpush.msra.mxu0 %v5809
      %5848 = vmatpush.msra.mxu0 %v5808
      %5849 = vmatmul.f32.gmra.mxu0 %v5825
      %v5850 = vpop.f32.mrf.mxu0
      %v5851 = vadd.f32 0.0, %v5850
      %5852 = vmatmul.f32.gmra.mxu0 %v5828
      %v5853 = vpop.f32.mrf.mxu0
      %v5854 = vadd.f32 0.0, %v5853
      %5855 = vdwg.mxu0
      %v5856 = vld [vmem:[%s14] sm:$0xff]
      %v5857 = vld [vmem:[%s14 + $0x8] sm:$0xff]
      %v5858 = vld [vmem:[%s14 + $0x10] sm:$0xff]
      %v5859 = vld [vmem:[%s14 + $0x18] sm:$0xff]
      %v5860 = vld [vmem:[%s14 + $0x20] sm:$0xff]
      %v5861 = vld [vmem:[%s14 + $0x28] sm:$0xff]
      %v5862 = vld [vmem:[%s14 + $0x30] sm:$0xff]
      %v5863 = vld [vmem:[%s14 + $0x38] sm:$0xff]
      %v5864 = vld [vmem:[%s15] sm:$0x1]
      %v5866 = vperm.slane %v5864, 0
      %vm5868 = vcmask 523264
      %v5870 = vsel %vm5868, %v5851, 0
      %v5873 = vsel %vm5868, %v5854, 0
      %5875 = vmatpush.msra.mxu0 0.0
      %5876 = vmatpush.msra.mxu0 0.0
      %5877 = vmatpush.msra.mxu0 0.0
      %5878 = vmatpush.msra.mxu0 0.0
      %5879 = vmatpush.msra.mxu0 0.0
      %5880 = vmatpush.msra.mxu0 0.0
      %5881 = vmatpush.msra.mxu0 0.0
      %5882 = vmatpush.msra.mxu0 0.0
      %5883 = vmatpush.msra.mxu0 %v5863
      %5884 = vmatpush.msra.mxu0 %v5862
      %5885 = vmatpush.msra.mxu0 %v5861
      %5886 = vmatpush.msra.mxu0 %v5860
      %5887 = vmatpush.msra.mxu0 %v5859
      %5888 = vmatpush.msra.mxu0 %v5858
      %5889 = vmatpush.msra.mxu0 %v5857
      %5890 = vmatpush.msra.mxu0 %v5856
      %5891 = vmatmul.f32.gmra.mxu0 %v5870
      %v5892 = vpop.f32.mrf.mxu0
      %v5893 = vadd.f32 %v5866, %v5892
      %5894 = vmatmul.f32.gmra.mxu0 %v5873
      %v5895 = vpop.f32.mrf.mxu0
      %v5896 = vadd.f32 %v5866, %v5895
      %5897 = vdwg.mxu0
      %5898 = vst [vmem:[%s523] sm:$0xff] %v5893
      %5899 = vst [vmem:[%s523 + $0x8] sm:$0xff] %v5896
      %s5900 = smul.u32 2, %s27
      %p5901 = scmp.lt.s32.totalorder %s5900, 3
      %s5902 = scalar_select %p5901, %s5900, 3
      %s5903 = smul.addr %s5902, 8
      %s5904 = scalar_lea.vmem %s16, %s5903
      // Predicated region
      $region85: #{forward.1} parent=83 // pred_check
        %p5905 = pneg %p386
      $region86: #{forward.1} parent=83 // pred_check_branch
        %5907 = sbr.rel (%p5905) target = $region88
      $region87: #{forward.1} parent=83 // pred_region
        %s5908 = smul.u32 2, %s27
      $region88: #{forward.1} parent=83 // pred_fallthru
        _
    $region84: #{forward.1} parent=5 // pred_fallthru
      _
    %p5909 = scmp.le.s32.totalorder 2, %s22
    // Predicated region
    $region89: #{forward.1} parent=5 // pred_check
      %p5910 = pneg %p5909
    $region90: #{forward.1} parent=5 // pred_check_branch
      %5912 = sbr.rel (%p5910) target = $region92
    $region91: #{forward.1} parent=5 // pred_region
      %s5913 = ssub.s32 %s22, 2
      // Predicated region
      $region93: #{forward.1} parent=91 // pred_check
        %p5914 = pneg %p392
      $region94: #{forward.1} parent=91 // pred_check_branch
        %5916 = sbr.rel (%p5914) target = $region96
      $region95: #{forward.1} parent=91 // pred_region
        %s5917 = smul.u32 2, %s28
        %p5918 = scmp.lt.s32.totalorder %s5917, 3
        %s5919 = scalar_select %p5918, %s5917, 3
        %s5920 = smul.addr %s5919, 8
        %s5921 = scalar_lea.vmem %s16, %s5920
      $region96: #{forward.1} parent=91 // pred_fallthru
        _
    $region92: #{forward.1} parent=5 // pred_fallthru
      _
  $region6: #{forward.1} parent=0 // loop_footer
    %s26 = sadd.s32 1, %s22
  $region7: #{forward.1} parent=0 // loop_footer_branch
    %21 = sbr.rel target = $region3
  $region8: #{forward.1} parent=0 // loop_exit
    _

</llo_original>
